<compile_context>
chip_gen: v7x
topology: tpu7x:2x2x1
jax: 0.10.0
libtpu: 0.0.40
codegen_flags: <defaults>
</compile_context>

<pallas_src>
import functools

import jax
import jax.numpy as jnp
import numpy as np
from jax.experimental import pallas as pl
from jax.experimental.pallas import tpu as pltpu

# Synthetic "tokenizer": digits '0'..'9' map to token ids 2..11 (contiguous).
DIGIT_TOKENS = tuple(range(2, 12))

MAX_SEQ_LENGTH = 256   # embedding-table rows (module's max_seq_length)
EMBED_DIM = 128        # embedding_dim (>= 128 keeps output stores lane-dense)


def _digit_mask(ids, digit_tokens):
    """torch.isin(ids, digit_tokens); cheap range test when ids are contiguous."""
    toks = sorted(int(t) for t in digit_tokens)
    if toks == list(range(toks[0], toks[0] + len(toks))):
        return jnp.logical_and(ids >= toks[0], ids <= toks[-1])
    mask = jnp.zeros(ids.shape, dtype=jnp.bool_)
    for t in toks:                                  # fallback: OR-chain
        mask = jnp.logical_or(mask, ids == t)
    return mask


def _gather_chunk(l):
    """K-chunk size for the one-hot gather (bounds VMEM for large tables)."""
    if l > 512 and l % 512 == 0:
        return 512
    return l


def _abacus_kernel(ids_ref, emb_ref, out_ref, *, digit_tokens):
    # ids_ref: (TB, SP) int32   -- lane-dense: sequence on the 128-lane axis
    # emb_ref: (L, D)   float32 -- full embedding table, resident in VMEM
    # out_ref: (TB*SP, D) float32 -- contiguous lane-dense output slab
    tb, sp = ids_ref.shape
    l, d = emb_ref.shape

    ids = ids_ref[...]                                            # (TB, SP)
    is_digit = _digit_mask(ids, digit_tokens)                     # (TB, SP) bool

    col = jax.lax.broadcasted_iota(jnp.int32, (tb, sp), 1)        # 0..SP-1 per row
    # z = col on non-digits, -1 on digits.  An inclusive cummax of z along the
    # row is then "index of the last non-digit at-or-before i" (-1 if none).
    z = jnp.where(is_digit, jnp.int32(-1), col)

    # Hillis-Steele inclusive cummax: log2(SP) steps, one lane-roll each
    # (pltpu.roll follows jnp.roll: rolled[:, i] = z[:, i - shift]).
    shift = 1
    while shift < sp:
        rolled = pltpu.roll(z, shift, axis=1)
        z = jnp.maximum(z, jnp.where(col >= shift, rolled, jnp.int32(-1)))
        shift *= 2

    pos = col - z                       # 0 on non-digits, 1..run_len on digits
    # TODO(synk): torch nn.Embedding raises for digit runs >= max_seq_length; we
    # clamp instead.  Training-mode random "+k" shift (host RNG) not implemented.
    pos = jnp.minimum(pos, l - 1)

    # Exact gather = one-hot @ table on the MXU.  pos is transposed once (8x128
    # aligned) so each batch row becomes a single-lane column; the one-hot is
    # built per batch row (sequence on the sublane axis) and K-chunked over the
    # table rows so its footprint stays bounded for large tables.
    pos_t = jnp.transpose(pos)                                    # (SP, TB)
    chunk = _gather_chunk(l)
    lane = jax.lax.broadcasted_iota(jnp.int32, (sp, chunk), 1)    # hoisted
    for bi in range(tb):
        pos_col = pos_t[:, bi:bi + 1]                             # (SP, 1)
        acc = None
        for start in range(0, l, chunk):
            onehot = (pos_col == lane + start).astype(jnp.float32)
            part = jnp.dot(onehot, emb_ref[start:start + chunk, :],
                           preferred_element_type=jnp.float32)
            acc = part if acc is None else acc + part
        out_ref[bi * sp:(bi + 1) * sp, :] = acc.astype(out_ref.dtype)


def _choose_block_b(sp, d):
    """Batch rows per grid step: >= 512 KiB of output per step, multiple of 8,
    capped so the per-row unroll stays small."""
    rows = pl.cdiv(512 * 1024, sp * d * 4)
    tb = max(8, 8 * pl.cdiv(rows, 8))
    return min(tb, 32)


def abacus_forward(input_ids, embedding, *, digit_tokens=DIGIT_TOKENS, block_b=None):
    """Eval-mode Abacus forward: (B, S) int ids -> (B, S, D) embeddings."""
    b, s = input_ids.shape
    l, d = embedding.shape

    # Pad the sequence to a lane multiple with a non-digit pad token (0): the
    # scan is causal per row, so right-padding cannot change real positions.
    sp = max(128, 128 * pl.cdiv(s, 128))
    ids = input_ids.astype(jnp.int32)
    if sp != s:
        ids = jnp.pad(ids, ((0, 0), (0, sp - s)))

    if block_b is None:
        tb = _choose_block_b(sp, d)
    else:
        tb = 8 * pl.cdiv(max(1, int(block_b)), 8)
    tb = max(8, min(tb, 8 * pl.cdiv(b, 8)))        # never larger than padded batch
    g = pl.cdiv(b, tb)
    bp = g * tb
    if bp != b:
        # Pad batch rows (token 0).  Rows are scanned independently, so pad rows
        # cannot contaminate real rows; their output is sliced off below.
        ids = jnp.pad(ids, ((0, bp - b), (0, 0)))

    # VMEM budget derived from actual block sizes (+ slack) instead of a blanket
    # limit: safe on v7x's 64 MiB physical VMEM, frees scoped VMEM elsewhere.
    chunk = _gather_chunk(l)
    need = 2 * (tb * sp * 4 + l * d * 4 + tb * sp * d * 4) \
        + sp * chunk * 4 + sp * d * 4
    vmem_limit = int(min(96 * 2 ** 20, max(8 * 2 ** 20, 2 * need)))

    kernel = functools.partial(
        _abacus_kernel, digit_tokens=tuple(int(t) for t in digit_tokens))

    out = pl.pallas_call(
        kernel,
        out_shape=jax.ShapeDtypeStruct((bp * sp, d), embedding.dtype),
        grid_spec=pltpu.PrefetchScalarGridSpec(
            num_scalar_prefetch=0,
            grid=(g,),
            in_specs=[
                pl.BlockSpec((tb, sp), lambda i: (i, 0)),   # lane-dense ids block
                pl.BlockSpec((l, d), lambda i: (0, 0)),     # full table, VMEM-resident
            ],
            out_specs=pl.BlockSpec((tb * sp, d), lambda i: (i, 0)),
        ),
        compiler_params=pltpu.CompilerParams(
            # NOTE: on v7x, pltpu.CORE_PARALLEL here would shard grid steps across
            # both TensorCores; "parallel" kept for portability to v5e/v6e.
            dimension_semantics=("parallel",),
            vmem_limit_bytes=vmem_limit,
        ),
    )(ids, embedding)
    return out.reshape(bp, sp, d)[:b, :s]


def abacus_reference(input_ids, embedding, digit_tokens=DIGIT_TOKENS):
    """Pure-JAX reference of the PyTorch forward (eval mode, k = 0)."""
    mask = jnp.isin(input_ids, jnp.asarray(digit_tokens, dtype=input_ids.dtype))
    s = input_ids.shape[1]
    idx = jnp.arange(s, dtype=jnp.int32)[None, :]
    z = jnp.where(mask, jnp.int32(-1), idx)
    lzi = jax.lax.cummax(z, axis=1)
    pos = idx - lzi                                   # 0 where not a digit
    return embedding[pos]


if __name__ == "__main__":
    key = jax.random.PRNGKey(0)
    k_emb, k1, k2, k3 = jax.random.split(key, 4)

    # nn.Embedding(max_seq_length, embedding_dim) -> N(0, 1) init, deterministic.
    embedding = jax.random.normal(k_emb, (MAX_SEQ_LENGTH, EMBED_DIM), dtype=jnp.float32)

    def check(ids):
        out = jax.block_until_ready(abacus_forward(ids, embedding))
        ref = abacus_reference(ids, embedding)
        assert out.shape == ref.shape
        np.testing.assert_allclose(np.asarray(out), np.asarray(ref), rtol=1e-5, atol=1e-5)

    # 1) B=8, S=128: single grid step (TB=B), lane-dense rows; row 0 is made all
    #    digits to lock in the longest-run (length == S) invariant.
    ids1 = jax.random.randint(k1, (8, 128), 0, 20, dtype=jnp.int32)
    ids1 = ids1.at[0].set(jnp.full((128,), DIGIT_TOKENS[3], dtype=jnp.int32))
    check(ids1)

    # 2) B=5 (not a multiple of 8), S=64: exercises batch padding to 8 and
    #    sequence padding to the 128-lane width.
    ids2 = jax.random.randint(k2, (5, 64), 0, 20, dtype=jnp.int32)
    check(ids2)

    # 3) B=20, S=128: TB=8 -> grid=3 with batch padding (multi-step pipeline).
    ids3 = jax.random.randint(k3, (20, 128), 0, 20, dtype=jnp.int32)
    check(ids3)

    print("KERNEL_OK")
</pallas_src>

<mosaic_0001>
module attributes {stable_mosaic.version = 11 : i64} {
  func.func @_abacus_kernel(%arg0: i32, %arg1: memref<8x128xi32, #tpu.memory_space<vmem>>, %arg2: memref<256x128xf32, #tpu.memory_space<vmem>>, %arg3: memref<1024x128xf32, #tpu.memory_space<vmem>>) attributes {dimension_semantics = [#tpu.dimension_semantics<parallel>], iteration_bounds = array<i64: 1>, scalar_prefetch = 0 : i64, scratch_operands = 0 : i64, tpu.core_type = #tpu.core_type<tc>, window_params = [{transform_indices = @transform_0, window_bounds = array<i64: 8, 128>}, {pipeline_mode = #tpu.pipeline_mode<synchronous>, transform_indices = @transform_1, window_bounds = array<i64: 256, 128>}, {transform_indices = @transform_2, window_bounds = array<i64: 1024, 128>}]} {
    %c0 = arith.constant 0 : index
    %c0_0 = arith.constant 0 : index
    %0 = vector.load %arg1[%c0, %c0_0] : memref<8x128xi32, #tpu.memory_space<vmem>>, vector<8x128xi32>
    %c2_i32 = arith.constant 2 : i32
    %1 = vector.broadcast %c2_i32 : i32 to vector<8x128xi32>
    %2 = arith.cmpi sge, %0, %1 : vector<8x128xi32>
    %c11_i32 = arith.constant 11 : i32
    %3 = vector.broadcast %c11_i32 : i32 to vector<8x128xi32>
    %4 = arith.cmpi sle, %0, %3 : vector<8x128xi32>
    %5 = arith.andi %2, %4 : vector<8x128xi1>
    %6 = tpu.iota {dimensions = array<i32: 1>} : vector<8x128xi32>
    %c-1_i32 = arith.constant -1 : i32
    %7 = vector.broadcast %c-1_i32 : i32 to vector<8x128xi32>
    %8 = arith.select %5, %7, %6 : vector<8x128xi1>, vector<8x128xi32>
    %c1_i32 = arith.constant 1 : i32
    %9 = tpu.dynamic_rotate %8 by %c1_i32 dim 1 : vector<8x128xi32>, i32 -> vector<8x128xi32>
    %c1_i32_1 = arith.constant 1 : i32
    %10 = vector.broadcast %c1_i32_1 : i32 to vector<8x128xi32>
    %11 = arith.cmpi sge, %6, %10 : vector<8x128xi32>
    %c-1_i32_2 = arith.constant -1 : i32
    %12 = vector.broadcast %c-1_i32_2 : i32 to vector<8x128xi32>
    %13 = arith.select %11, %9, %12 : vector<8x128xi1>, vector<8x128xi32>
    %14 = arith.maxsi %8, %13 : vector<8x128xi32>
    %c2_i32_3 = arith.constant 2 : i32
    %15 = tpu.dynamic_rotate %14 by %c2_i32_3 dim 1 : vector<8x128xi32>, i32 -> vector<8x128xi32>
    %c2_i32_4 = arith.constant 2 : i32
    %16 = vector.broadcast %c2_i32_4 : i32 to vector<8x128xi32>
    %17 = arith.cmpi sge, %6, %16 : vector<8x128xi32>
    %c-1_i32_5 = arith.constant -1 : i32
    %18 = vector.broadcast %c-1_i32_5 : i32 to vector<8x128xi32>
    %19 = arith.select %17, %15, %18 : vector<8x128xi1>, vector<8x128xi32>
    %20 = arith.maxsi %14, %19 : vector<8x128xi32>
    %c4_i32 = arith.constant 4 : i32
    %21 = tpu.dynamic_rotate %20 by %c4_i32 dim 1 : vector<8x128xi32>, i32 -> vector<8x128xi32>
    %c4_i32_6 = arith.constant 4 : i32
    %22 = vector.broadcast %c4_i32_6 : i32 to vector<8x128xi32>
    %23 = arith.cmpi sge, %6, %22 : vector<8x128xi32>
    %c-1_i32_7 = arith.constant -1 : i32
    %24 = vector.broadcast %c-1_i32_7 : i32 to vector<8x128xi32>
    %25 = arith.select %23, %21, %24 : vector<8x128xi1>, vector<8x128xi32>
    %26 = arith.maxsi %20, %25 : vector<8x128xi32>
    %c8_i32 = arith.constant 8 : i32
    %27 = tpu.dynamic_rotate %26 by %c8_i32 dim 1 : vector<8x128xi32>, i32 -> vector<8x128xi32>
    %c8_i32_8 = arith.constant 8 : i32
    %28 = vector.broadcast %c8_i32_8 : i32 to vector<8x128xi32>
    %29 = arith.cmpi sge, %6, %28 : vector<8x128xi32>
    %c-1_i32_9 = arith.constant -1 : i32
    %30 = vector.broadcast %c-1_i32_9 : i32 to vector<8x128xi32>
    %31 = arith.select %29, %27, %30 : vector<8x128xi1>, vector<8x128xi32>
    %32 = arith.maxsi %26, %31 : vector<8x128xi32>
    %c16_i32 = arith.constant 16 : i32
    %33 = tpu.dynamic_rotate %32 by %c16_i32 dim 1 : vector<8x128xi32>, i32 -> vector<8x128xi32>
    %c16_i32_10 = arith.constant 16 : i32
    %34 = vector.broadcast %c16_i32_10 : i32 to vector<8x128xi32>
    %35 = arith.cmpi sge, %6, %34 : vector<8x128xi32>
    %c-1_i32_11 = arith.constant -1 : i32
    %36 = vector.broadcast %c-1_i32_11 : i32 to vector<8x128xi32>
    %37 = arith.select %35, %33, %36 : vector<8x128xi1>, vector<8x128xi32>
    %38 = arith.maxsi %32, %37 : vector<8x128xi32>
    %c32_i32 = arith.constant 32 : i32
    %39 = tpu.dynamic_rotate %38 by %c32_i32 dim 1 : vector<8x128xi32>, i32 -> vector<8x128xi32>
    %c32_i32_12 = arith.constant 32 : i32
    %40 = vector.broadcast %c32_i32_12 : i32 to vector<8x128xi32>
    %41 = arith.cmpi sge, %6, %40 : vector<8x128xi32>
    %c-1_i32_13 = arith.constant -1 : i32
    %42 = vector.broadcast %c-1_i32_13 : i32 to vector<8x128xi32>
    %43 = arith.select %41, %39, %42 : vector<8x128xi1>, vector<8x128xi32>
    %44 = arith.maxsi %38, %43 : vector<8x128xi32>
    %c64_i32 = arith.constant 64 : i32
    %45 = tpu.dynamic_rotate %44 by %c64_i32 dim 1 : vector<8x128xi32>, i32 -> vector<8x128xi32>
    %c64_i32_14 = arith.constant 64 : i32
    %46 = vector.broadcast %c64_i32_14 : i32 to vector<8x128xi32>
    %47 = arith.cmpi sge, %6, %46 : vector<8x128xi32>
    %c-1_i32_15 = arith.constant -1 : i32
    %48 = vector.broadcast %c-1_i32_15 : i32 to vector<8x128xi32>
    %49 = arith.select %47, %45, %48 : vector<8x128xi1>, vector<8x128xi32>
    %50 = arith.maxsi %44, %49 : vector<8x128xi32>
    %51 = arith.subi %6, %50 : vector<8x128xi32>
    %c255_i32 = arith.constant 255 : i32
    %52 = vector.broadcast %c255_i32 : i32 to vector<8x128xi32>
    %53 = arith.minsi %51, %52 : vector<8x128xi32>
    %54 = tpu.transpose %53, [1, 0] : vector<8x128xi32> -> vector<128x8xi32>
    %55 = tpu.iota {dimensions = array<i32: 1>} : vector<128x256xi32>
    %56 = vector.extract_strided_slice %54 {offsets = [0, 0], sizes = [128, 1], strides = [1, 1]} : vector<128x8xi32> to vector<128x1xi32>
    %c0_i32 = arith.constant 0 : i32
    %57 = vector.broadcast %c0_i32 : i32 to vector<128x256xi32>
    %58 = arith.addi %55, %57 : vector<128x256xi32>
    %59 = vector.broadcast %56 : vector<128x1xi32> to vector<128x256xi32>
    %60 = arith.cmpi eq, %59, %58 : vector<128x256xi32>
    %61 = arith.extui %60 : vector<128x256xi1> to vector<128x256xi32>
    %62 = arith.sitofp %61 : vector<128x256xi32> to vector<128x256xf32>
    %c0_16 = arith.constant 0 : index
    %c0_17 = arith.constant 0 : index
    %63 = vector.load %arg2[%c0_16, %c0_17] : memref<256x128xf32, #tpu.memory_space<vmem>>, vector<256x128xf32>
    %cst = arith.constant dense<0.000000e+00> : vector<128x128xf32>
    %64 = tpu.matmul %62, %63, %cst {dimension_numbers = #tpu.dot_dimension_numbers<[1], [0], [0], [1], [0, 0, 1, 1], [], []>} : vector<128x256xf32>, vector<256x128xf32>, vector<128x128xf32> -> vector<128x128xf32>
    %c0_18 = arith.constant 0 : index
    %c0_19 = arith.constant 0 : index
    %65 = vector.load %arg3[%c0_18, %c0_19] : memref<1024x128xf32, #tpu.memory_space<vmem>>, vector<128x128xf32>
    tpu.vector_store %arg3[%c0_18, %c0_19], %64 {strides = array<i32>} : memref<1024x128xf32, #tpu.memory_space<vmem>>, vector<128x128xf32>,
    %66 = vector.extract_strided_slice %54 {offsets = [0, 1], sizes = [128, 1], strides = [1, 1]} : vector<128x8xi32> to vector<128x1xi32>
    %c0_i32_20 = arith.constant 0 : i32
    %67 = vector.broadcast %c0_i32_20 : i32 to vector<128x256xi32>
    %68 = arith.addi %55, %67 : vector<128x256xi32>
    %69 = vector.broadcast %66 : vector<128x1xi32> to vector<128x256xi32>
    %70 = arith.cmpi eq, %69, %68 : vector<128x256xi32>
    %71 = arith.extui %70 : vector<128x256xi1> to vector<128x256xi32>
    %72 = arith.sitofp %71 : vector<128x256xi32> to vector<128x256xf32>
    %c0_21 = arith.constant 0 : index
    %c0_22 = arith.constant 0 : index
    %73 = vector.load %arg2[%c0_21, %c0_22] : memref<256x128xf32, #tpu.memory_space<vmem>>, vector<256x128xf32>
    %cst_23 = arith.constant dense<0.000000e+00> : vector<128x128xf32>
    %74 = tpu.matmul %72, %73, %cst_23 {dimension_numbers = #tpu.dot_dimension_numbers<[1], [0], [0], [1], [0, 0, 1, 1], [], []>} : vector<128x256xf32>, vector<256x128xf32>, vector<128x128xf32> -> vector<128x128xf32>
    %c128 = arith.constant 128 : index
    %c0_24 = arith.constant 0 : index
    %75 = vector.load %arg3[%c128, %c0_24] : memref<1024x128xf32, #tpu.memory_space<vmem>>, vector<128x128xf32>
    tpu.vector_store %arg3[%c128, %c0_24], %74 {strides = array<i32>} : memref<1024x128xf32, #tpu.memory_space<vmem>>, vector<128x128xf32>,
    %76 = vector.extract_strided_slice %54 {offsets = [0, 2], sizes = [128, 1], strides = [1, 1]} : vector<128x8xi32> to vector<128x1xi32>
    %c0_i32_25 = arith.constant 0 : i32
    %77 = vector.broadcast %c0_i32_25 : i32 to vector<128x256xi32>
    %78 = arith.addi %55, %77 : vector<128x256xi32>
    %79 = vector.broadcast %76 : vector<128x1xi32> to vector<128x256xi32>
    %80 = arith.cmpi eq, %79, %78 : vector<128x256xi32>
    %81 = arith.extui %80 : vector<128x256xi1> to vector<128x256xi32>
    %82 = arith.sitofp %81 : vector<128x256xi32> to vector<128x256xf32>
    %c0_26 = arith.constant 0 : index
    %c0_27 = arith.constant 0 : index
    %83 = vector.load %arg2[%c0_26, %c0_27] : memref<256x128xf32, #tpu.memory_space<vmem>>, vector<256x128xf32>
    %cst_28 = arith.constant dense<0.000000e+00> : vector<128x128xf32>
    %84 = tpu.matmul %82, %83, %cst_28 {dimension_numbers = #tpu.dot_dimension_numbers<[1], [0], [0], [1], [0, 0, 1, 1], [], []>} : vector<128x256xf32>, vector<256x128xf32>, vector<128x128xf32> -> vector<128x128xf32>
    %c256 = arith.constant 256 : index
    %c0_29 = arith.constant 0 : index
    %85 = vector.load %arg3[%c256, %c0_29] : memref<1024x128xf32, #tpu.memory_space<vmem>>, vector<128x128xf32>
    tpu.vector_store %arg3[%c256, %c0_29], %84 {strides = array<i32>} : memref<1024x128xf32, #tpu.memory_space<vmem>>, vector<128x128xf32>,
    %86 = vector.extract_strided_slice %54 {offsets = [0, 3], sizes = [128, 1], strides = [1, 1]} : vector<128x8xi32> to vector<128x1xi32>
    %c0_i32_30 = arith.constant 0 : i32
    %87 = vector.broadcast %c0_i32_30 : i32 to vector<128x256xi32>
    %88 = arith.addi %55, %87 : vector<128x256xi32>
    %89 = vector.broadcast %86 : vector<128x1xi32> to vector<128x256xi32>
    %90 = arith.cmpi eq, %89, %88 : vector<128x256xi32>
    %91 = arith.extui %90 : vector<128x256xi1> to vector<128x256xi32>
    %92 = arith.sitofp %91 : vector<128x256xi32> to vector<128x256xf32>
    %c0_31 = arith.constant 0 : index
    %c0_32 = arith.constant 0 : index
    %93 = vector.load %arg2[%c0_31, %c0_32] : memref<256x128xf32, #tpu.memory_space<vmem>>, vector<256x128xf32>
    %cst_33 = arith.constant dense<0.000000e+00> : vector<128x128xf32>
    %94 = tpu.matmul %92, %93, %cst_33 {dimension_numbers = #tpu.dot_dimension_numbers<[1], [0], [0], [1], [0, 0, 1, 1], [], []>} : vector<128x256xf32>, vector<256x128xf32>, vector<128x128xf32> -> vector<128x128xf32>
    %c384 = arith.constant 384 : index
    %c0_34 = arith.constant 0 : index
    %95 = vector.load %arg3[%c384, %c0_34] : memref<1024x128xf32, #tpu.memory_space<vmem>>, vector<128x128xf32>
    tpu.vector_store %arg3[%c384, %c0_34], %94 {strides = array<i32>} : memref<1024x128xf32, #tpu.memory_space<vmem>>, vector<128x128xf32>,
    %96 = vector.extract_strided_slice %54 {offsets = [0, 4], sizes = [128, 1], strides = [1, 1]} : vector<128x8xi32> to vector<128x1xi32>
    %c0_i32_35 = arith.constant 0 : i32
    %97 = vector.broadcast %c0_i32_35 : i32 to vector<128x256xi32>
    %98 = arith.addi %55, %97 : vector<128x256xi32>
    %99 = vector.broadcast %96 : vector<128x1xi32> to vector<128x256xi32>
    %100 = arith.cmpi eq, %99, %98 : vector<128x256xi32>
    %101 = arith.extui %100 : vector<128x256xi1> to vector<128x256xi32>
    %102 = arith.sitofp %101 : vector<128x256xi32> to vector<128x256xf32>
    %c0_36 = arith.constant 0 : index
    %c0_37 = arith.constant 0 : index
    %103 = vector.load %arg2[%c0_36, %c0_37] : memref<256x128xf32, #tpu.memory_space<vmem>>, vector<256x128xf32>
    %cst_38 = arith.constant dense<0.000000e+00> : vector<128x128xf32>
    %104 = tpu.matmul %102, %103, %cst_38 {dimension_numbers = #tpu.dot_dimension_numbers<[1], [0], [0], [1], [0, 0, 1, 1], [], []>} : vector<128x256xf32>, vector<256x128xf32>, vector<128x128xf32> -> vector<128x128xf32>
    %c512 = arith.constant 512 : index
    %c0_39 = arith.constant 0 : index
    %105 = vector.load %arg3[%c512, %c0_39] : memref<1024x128xf32, #tpu.memory_space<vmem>>, vector<128x128xf32>
    tpu.vector_store %arg3[%c512, %c0_39], %104 {strides = array<i32>} : memref<1024x128xf32, #tpu.memory_space<vmem>>, vector<128x128xf32>,
    %106 = vector.extract_strided_slice %54 {offsets = [0, 5], sizes = [128, 1], strides = [1, 1]} : vector<128x8xi32> to vector<128x1xi32>
    %c0_i32_40 = arith.constant 0 : i32
    %107 = vector.broadcast %c0_i32_40 : i32 to vector<128x256xi32>
    %108 = arith.addi %55, %107 : vector<128x256xi32>
    %109 = vector.broadcast %106 : vector<128x1xi32> to vector<128x256xi32>
    %110 = arith.cmpi eq, %109, %108 : vector<128x256xi32>
    %111 = arith.extui %110 : vector<128x256xi1> to vector<128x256xi32>
    %112 = arith.sitofp %111 : vector<128x256xi32> to vector<128x256xf32>
    %c0_41 = arith.constant 0 : index
    %c0_42 = arith.constant 0 : index
    %113 = vector.load %arg2[%c0_41, %c0_42] : memref<256x128xf32, #tpu.memory_space<vmem>>, vector<256x128xf32>
    %cst_43 = arith.constant dense<0.000000e+00> : vector<128x128xf32>
    %114 = tpu.matmul %112, %113, %cst_43 {dimension_numbers = #tpu.dot_dimension_numbers<[1], [0], [0], [1], [0, 0, 1, 1], [], []>} : vector<128x256xf32>, vector<256x128xf32>, vector<128x128xf32> -> vector<128x128xf32>
    %c640 = arith.constant 640 : index
    %c0_44 = arith.constant 0 : index
    %115 = vector.load %arg3[%c640, %c0_44] : memref<1024x128xf32, #tpu.memory_space<vmem>>, vector<128x128xf32>
    tpu.vector_store %arg3[%c640, %c0_44], %114 {strides = array<i32>} : memref<1024x128xf32, #tpu.memory_space<vmem>>, vector<128x128xf32>,
    %116 = vector.extract_strided_slice %54 {offsets = [0, 6], sizes = [128, 1], strides = [1, 1]} : vector<128x8xi32> to vector<128x1xi32>
    %c0_i32_45 = arith.constant 0 : i32
    %117 = vector.broadcast %c0_i32_45 : i32 to vector<128x256xi32>
    %118 = arith.addi %55, %117 : vector<128x256xi32>
    %119 = vector.broadcast %116 : vector<128x1xi32> to vector<128x256xi32>
    %120 = arith.cmpi eq, %119, %118 : vector<128x256xi32>
    %121 = arith.extui %120 : vector<128x256xi1> to vector<128x256xi32>
    %122 = arith.sitofp %121 : vector<128x256xi32> to vector<128x256xf32>
    %c0_46 = arith.constant 0 : index
    %c0_47 = arith.constant 0 : index
    %123 = vector.load %arg2[%c0_46, %c0_47] : memref<256x128xf32, #tpu.memory_space<vmem>>, vector<256x128xf32>
    %cst_48 = arith.constant dense<0.000000e+00> : vector<128x128xf32>
    %124 = tpu.matmul %122, %123, %cst_48 {dimension_numbers = #tpu.dot_dimension_numbers<[1], [0], [0], [1], [0, 0, 1, 1], [], []>} : vector<128x256xf32>, vector<256x128xf32>, vector<128x128xf32> -> vector<128x128xf32>
    %c768 = arith.constant 768 : index
    %c0_49 = arith.constant 0 : index
    %125 = vector.load %arg3[%c768, %c0_49] : memref<1024x128xf32, #tpu.memory_space<vmem>>, vector<128x128xf32>
    tpu.vector_store %arg3[%c768, %c0_49], %124 {strides = array<i32>} : memref<1024x128xf32, #tpu.memory_space<vmem>>, vector<128x128xf32>,
    %126 = vector.extract_strided_slice %54 {offsets = [0, 7], sizes = [128, 1], strides = [1, 1]} : vector<128x8xi32> to vector<128x1xi32>
    %c0_i32_50 = arith.constant 0 : i32
    %127 = vector.broadcast %c0_i32_50 : i32 to vector<128x256xi32>
    %128 = arith.addi %55, %127 : vector<128x256xi32>
    %129 = vector.broadcast %126 : vector<128x1xi32> to vector<128x256xi32>
    %130 = arith.cmpi eq, %129, %128 : vector<128x256xi32>
    %131 = arith.extui %130 : vector<128x256xi1> to vector<128x256xi32>
    %132 = arith.sitofp %131 : vector<128x256xi32> to vector<128x256xf32>
    %c0_51 = arith.constant 0 : index
    %c0_52 = arith.constant 0 : index
    %133 = vector.load %arg2[%c0_51, %c0_52] : memref<256x128xf32, #tpu.memory_space<vmem>>, vector<256x128xf32>
    %cst_53 = arith.constant dense<0.000000e+00> : vector<128x128xf32>
    %134 = tpu.matmul %132, %133, %cst_53 {dimension_numbers = #tpu.dot_dimension_numbers<[1], [0], [0], [1], [0, 0, 1, 1], [], []>} : vector<128x256xf32>, vector<256x128xf32>, vector<128x128xf32> -> vector<128x128xf32>
    %c896 = arith.constant 896 : index
    %c0_54 = arith.constant 0 : index
    %135 = vector.load %arg3[%c896, %c0_54] : memref<1024x128xf32, #tpu.memory_space<vmem>>, vector<128x128xf32>
    tpu.vector_store %arg3[%c896, %c0_54], %134 {strides = array<i32>} : memref<1024x128xf32, #tpu.memory_space<vmem>>, vector<128x128xf32>,
    return
  }
  func.func @transform_0(%arg0: i32) -> (i32, i32) {
    %c0_i32 = arith.constant 0 : i32
    %c0_i32_0 = arith.constant 0 : i32
    return %arg0, %c0_i32 : i32, i32
  }
  func.func @transform_1(%arg0: i32) -> (i32, i32) {
    %c0_i32 = arith.constant 0 : i32
    %c0_i32_0 = arith.constant 0 : i32
    %c0_i32_1 = arith.constant 0 : i32
    return %c0_i32, %c0_i32_0 : i32, i32
  }
  func.func @transform_2(%arg0: i32) -> (i32, i32) {
    %c0_i32 = arith.constant 0 : i32
    %c0_i32_0 = arith.constant 0 : i32
    return %arg0, %c0_i32 : i32, i32
  }
}

</mosaic_0001>

<llo_original>
// kernel: tpu_custom_call.1
$region0: #{tpu_custom_call.1}
  #allocation0 [shape = 'u32[]', space=smem, size = 0x4, offset = 0x4, fixed_abs, tag = 'smem constant byte address 0x4 - core index']
  #allocation1 [shape = 'u32[144,128]{1,0:T(1,128)}', space=vmem, size = 0x12000, scoped, tag = 'internal scratch']
  %s0 = inlined_call_operand.hbm [shape: s32[8,128], index: 0, kind: input, shape index: {}]
  %s1 = inlined_call_operand.hbm [shape: f32[256,128], index: 1, kind: input, shape index: {}]
  %s2 = inlined_call_operand.hbm [shape: f32[1024,128], index: 2, kind: output, shape index: {}]
  %s3 = sld [smem:[#allocation0]]
  $region26: #{tpu_custom_call.1} parent=0
    _
  %s5 = ssub.s32 1, %s3
  %s6 = scalar_select 0, %s5, %s3
  $region1: #{tpu_custom_call.1} parent=0
    #allocation2 [shape = 'u8[4096]{0}', space=vmem, size = 0x1000, scoped, tag = 'input window, operand 0, single buffered']
    #allocation3 [shape = 's32[1]{0}', space=sflag, size = 0x4, scoped, tag = 'scoped memory for tpu_custom_call.1']
    #allocation4 [shape = 's32[1]{0}', space=sflag, size = 0x4, scoped, tag = 'scoped memory for tpu_custom_call.1']
    #allocation5 [shape = 'u8[131072]{0}', space=vmem, size = 0x20000, scoped, tag = 'input window, operand 1, single buffered']
    #allocation6 [shape = 's32[1]{0}', space=sflag, size = 0x4, scoped, tag = 'scoped memory for tpu_custom_call.1']
    #allocation7 [shape = 'u8[524288]{0}', space=vmem, size = 0x80000, scoped, tag = 'output window, operand 0, single buffered']
    %7 = vsyncpa [#allocation3], 0
    %8 = vsyncpa [#allocation6], 0
    %9 = vsyncpa [#allocation4], 0
    // Predicated region
    $region2: #{tpu_custom_call.1} parent=1 // pred_check
      _
    $region3: #{tpu_custom_call.1} parent=1 // pred_check_branch
      %11 = sbr.rel (0) target = $region5
    $region4: #{tpu_custom_call.1} parent=1 // pred_region
      %s13 = ssub.s32 128, 128
      %14 = vsyncadd [#allocation3], %s13
      %s16 = sshll.u32 [#allocation2], 4
      %s17 = int_to_ptr.vmem [resolvable:$true] %s16
      %19 = dma.hbm_to_vmem [thread:$0]  %s0, 128, %s17, [#allocation3]
    $region5: #{tpu_custom_call.1} parent=1 // pred_fallthru
      _
    // Predicated region
    $region6: #{tpu_custom_call.1} parent=1 // pred_check
      _
    $region7: #{tpu_custom_call.1} parent=1 // pred_check_branch
      %21 = sbr.rel (0) target = $region9
    $region8: #{tpu_custom_call.1} parent=1 // pred_region
      %s23 = ssub.s32 4096, 4096
      %24 = vsyncadd [#allocation6], %s23
      %s25 = sshll.u32 [#allocation5], 4
      %s26 = int_to_ptr.vmem [resolvable:$true] %s25
      %31 = dma.hbm_to_vmem [thread:$0]  %s1, 4096, %s26, [#allocation6], 128, 128, 8
    $region9: #{tpu_custom_call.1} parent=1 // pred_fallthru
      _
    // Predicated region
    $region10: #{tpu_custom_call.1} parent=1 // pred_check
      _
    $region11: #{tpu_custom_call.1} parent=1 // pred_check_branch
      %33 = sbr.rel (0) target = $region13
    $region12: #{tpu_custom_call.1} parent=1 // pred_region
      %34 = dma.done [#allocation3], 128
    $region13: #{tpu_custom_call.1} parent=1 // pred_fallthru
      _
    // Predicated region
    $region14: #{tpu_custom_call.1} parent=1 // pred_check
      _
    $region15: #{tpu_custom_call.1} parent=1 // pred_check_branch
      %36 = sbr.rel (0) target = $region17
    $region16: #{tpu_custom_call.1} parent=1 // pred_region
      %37 = dma.done [#allocation6], 4096
    $region17: #{tpu_custom_call.1} parent=1 // pred_fallthru
      _
    %v38 = vld [vmem:[#allocation2] sm:$0xff]
    %vm39 = vcmp.ge.s32.totalorder %v38, 2
    %vm40 = vcmp.le.s32.totalorder %v38, 11
    %vm41 = vmand %vm39, %vm40
    %v42 = vlaneseq
    %v43 = vand.u32 %v42, 127
    %v44 = vsel %vm41, 4294967295, %v43
    %45 = vrot.lane.b32.xlu0 %v44, 1
    %v46 = vpop.permute.xlu0 %45
    %vm47 = vcmp.ge.s32.totalorder %v43, 1
    %v48 = vsel %vm47, %v46, 4294967295
    %vm49 = vcmp.gt.s32.totalorder %v44, %v48
    %v50 = vsel %vm49, %v44, %v48
    %51 = vrot.lane.b32.xlu0 %v50, 2
    %v52 = vpop.permute.xlu0 %51
    %vm53 = vcmp.ge.s32.totalorder %v43, 2
    %v54 = vsel %vm53, %v52, 4294967295
    %vm55 = vcmp.gt.s32.totalorder %v50, %v54
    %v56 = vsel %vm55, %v50, %v54
    %57 = vrot.lane.b32.xlu0 %v56, 4
    %v58 = vpop.permute.xlu0 %57
    %vm59 = vcmp.ge.s32.totalorder %v43, 4
    %v60 = vsel %vm59, %v58, 4294967295
    %vm61 = vcmp.gt.s32.totalorder %v56, %v60
    %v62 = vsel %vm61, %v56, %v60
    %63 = vrot.lane.b32.xlu0 %v62, 8
    %v64 = vpop.permute.xlu0 %63
    %vm65 = vcmp.ge.s32.totalorder %v43, 8
    %v66 = vsel %vm65, %v64, 4294967295
    %vm67 = vcmp.gt.s32.totalorder %v62, %v66
    %v68 = vsel %vm67, %v62, %v66
    %69 = vrot.lane.b32.xlu0 %v68, 16
    %v70 = vpop.permute.xlu0 %69
    %vm71 = vcmp.ge.s32.totalorder %v43, 16
    %v72 = vsel %vm71, %v70, 4294967295
    %vm73 = vcmp.gt.s32.totalorder %v68, %v72
    %v74 = vsel %vm73, %v68, %v72
    %75 = vrot.lane.b32.xlu0 %v74, 32
    %v76 = vpop.permute.xlu0 %75
    %vm77 = vcmp.ge.s32.totalorder %v43, 32
    %v78 = vsel %vm77, %v76, 4294967295
    %vm79 = vcmp.gt.s32.totalorder %v74, %v78
    %v80 = vsel %vm79, %v74, %v78
    %81 = vrot.lane.b32.xlu0 %v80, 64
    %v82 = vpop.permute.xlu0 %81
    %vm83 = vcmp.ge.s32.totalorder %v43, 64
    %v84 = vsel %vm83, %v82, 4294967295
    %vm85 = vcmp.gt.s32.totalorder %v80, %v84
    %v86 = vsel %vm85, %v80, %v84
    %v87 = vsub.s32 %v43, %v86
    %vm88 = vcmp.lt.s32.totalorder %v87, 255
    %v89 = vsel %vm88, %v87, 255
    %90 = vxpose.xlu0.b32.start [1/16] %v89, 128
    %91 = vxpose.xlu0.b32.cont [2/16] 0, 128
    %92 = vxpose.xlu0.b32.cont [3/16] 0, 128
    %93 = vxpose.xlu0.b32.cont [4/16] 0, 128
    %94 = vxpose.xlu0.b32.cont [5/16] 0, 128
    %95 = vxpose.xlu0.b32.cont [6/16] 0, 128
    %96 = vxpose.xlu0.b32.cont [7/16] 0, 128
    %97 = vxpose.xlu0.b32.cont [8/16] 0, 128
    %98 = vxpose.xlu0.b32.cont [9/16] 0, 128
    %99 = vxpose.xlu0.b32.cont [10/16] 0, 128
    %100 = vxpose.xlu0.b32.cont [11/16] 0, 128
    %101 = vxpose.xlu0.b32.cont [12/16] 0, 128
    %102 = vxpose.xlu0.b32.cont [13/16] 0, 128
    %103 = vxpose.xlu0.b32.cont [14/16] 0, 128
    %104 = vxpose.xlu0.b32.cont [15/16] 0, 128
    %105 = vxpose.xlu0.b32.end [16/16] 0, 128
    %v106 = vpop.trf.xlu0
    %v107 = vpop.trf.xlu0
    %v108 = vpop.trf.xlu0
    %v109 = vpop.trf.xlu0
    %v110 = vpop.trf.xlu0
    %v111 = vpop.trf.xlu0
    %v112 = vpop.trf.xlu0
    %v113 = vpop.trf.xlu0
    %v114 = vpop.trf.xlu0
    %v115 = vpop.trf.xlu0
    %v116 = vpop.trf.xlu0
    %v117 = vpop.trf.xlu0
    %v118 = vpop.trf.xlu0
    %v119 = vpop.trf.xlu0
    %v120 = vpop.trf.xlu0
    %v121 = vpop.trf.xlu0
    %v122 = vadd.s32 %v43, 128
    %123 = vset.pattern.permute.xlu0 0
    %124 = vperm.xlu0 %123, %v106
    %v125 = vpop.permute.xlu0 %124
    %126 = vset.pattern.permute.xlu0 0
    %127 = vperm.xlu0 %126, %v107
    %v128 = vpop.permute.xlu0 %127
    %129 = vset.pattern.permute.xlu0 0
    %130 = vperm.xlu0 %129, %v108
    %v131 = vpop.permute.xlu0 %130
    %132 = vset.pattern.permute.xlu0 0
    %133 = vperm.xlu0 %132, %v109
    %v134 = vpop.permute.xlu0 %133
    %135 = vset.pattern.permute.xlu0 0
    %136 = vperm.xlu0 %135, %v110
    %v137 = vpop.permute.xlu0 %136
    %138 = vset.pattern.permute.xlu0 0
    %139 = vperm.xlu0 %138, %v111
    %v140 = vpop.permute.xlu0 %139
    %141 = vset.pattern.permute.xlu0 0
    %142 = vperm.xlu0 %141, %v112
    %v143 = vpop.permute.xlu0 %142
    %144 = vset.pattern.permute.xlu0 0
    %145 = vperm.xlu0 %144, %v113
    %v146 = vpop.permute.xlu0 %145
    %147 = vset.pattern.permute.xlu0 0
    %148 = vperm.xlu0 %147, %v114
    %v149 = vpop.permute.xlu0 %148
    %150 = vset.pattern.permute.xlu0 0
    %151 = vperm.xlu0 %150, %v115
    %v152 = vpop.permute.xlu0 %151
    %153 = vset.pattern.permute.xlu0 0
    %154 = vperm.xlu0 %153, %v116
    %v155 = vpop.permute.xlu0 %154
    %156 = vset.pattern.permute.xlu0 0
    %157 = vperm.xlu0 %156, %v117
    %v158 = vpop.permute.xlu0 %157
    %159 = vset.pattern.permute.xlu0 0
    %160 = vperm.xlu0 %159, %v118
    %v161 = vpop.permute.xlu0 %160
    %162 = vset.pattern.permute.xlu0 0
    %163 = vperm.xlu0 %162, %v119
    %v164 = vpop.permute.xlu0 %163
    %165 = vset.pattern.permute.xlu0 0
    %166 = vperm.xlu0 %165, %v120
    %v167 = vpop.permute.xlu0 %166
    %168 = vset.pattern.permute.xlu0 0
    %169 = vperm.xlu0 %168, %v121
    %v170 = vpop.permute.xlu0 %169
    %vm171 = vcmp.eq.s32.totalorder %v125, %v43
    %vm172 = vcmp.eq.s32.totalorder %v125, %v122
    %vm173 = vcmp.eq.s32.totalorder %v128, %v43
    %vm174 = vcmp.eq.s32.totalorder %v128, %v122
    %vm175 = vcmp.eq.s32.totalorder %v131, %v43
    %vm176 = vcmp.eq.s32.totalorder %v131, %v122
    %vm177 = vcmp.eq.s32.totalorder %v134, %v43
    %vm178 = vcmp.eq.s32.totalorder %v134, %v122
    %vm179 = vcmp.eq.s32.totalorder %v137, %v43
    %vm180 = vcmp.eq.s32.totalorder %v137, %v122
    %vm181 = vcmp.eq.s32.totalorder %v140, %v43
    %vm182 = vcmp.eq.s32.totalorder %v140, %v122
    %vm183 = vcmp.eq.s32.totalorder %v143, %v43
    %vm184 = vcmp.eq.s32.totalorder %v143, %v122
    %vm185 = vcmp.eq.s32.totalorder %v146, %v43
    %vm186 = vcmp.eq.s32.totalorder %v146, %v122
    %vm187 = vcmp.eq.s32.totalorder %v149, %v43
    %vm188 = vcmp.eq.s32.totalorder %v149, %v122
    %vm189 = vcmp.eq.s32.totalorder %v152, %v43
    %vm190 = vcmp.eq.s32.totalorder %v152, %v122
    %vm191 = vcmp.eq.s32.totalorder %v155, %v43
    %vm192 = vcmp.eq.s32.totalorder %v155, %v122
    %vm193 = vcmp.eq.s32.totalorder %v158, %v43
    %vm194 = vcmp.eq.s32.totalorder %v158, %v122
    %vm195 = vcmp.eq.s32.totalorder %v161, %v43
    %vm196 = vcmp.eq.s32.totalorder %v161, %v122
    %vm197 = vcmp.eq.s32.totalorder %v164, %v43
    %vm198 = vcmp.eq.s32.totalorder %v164, %v122
    %vm199 = vcmp.eq.s32.totalorder %v167, %v43
    %vm200 = vcmp.eq.s32.totalorder %v167, %v122
    %vm201 = vcmp.eq.s32.totalorder %v170, %v43
    %vm202 = vcmp.eq.s32.totalorder %v170, %v122
    %v203 = vsel %vm171, 1, 0
    %v204 = vsel %vm172, 1, 0
    %v205 = vsel %vm173, 1, 0
    %v206 = vsel %vm174, 1, 0
    %v207 = vsel %vm175, 1, 0
    %v208 = vsel %vm176, 1, 0
    %v209 = vsel %vm177, 1, 0
    %v210 = vsel %vm178, 1, 0
    %v211 = vsel %vm179, 1, 0
    %v212 = vsel %vm180, 1, 0
    %v213 = vsel %vm181, 1, 0
    %v214 = vsel %vm182, 1, 0
    %v215 = vsel %vm183, 1, 0
    %v216 = vsel %vm184, 1, 0
    %v217 = vsel %vm185, 1, 0
    %v218 = vsel %vm186, 1, 0
    %v219 = vsel %vm187, 1, 0
    %v220 = vsel %vm188, 1, 0
    %v221 = vsel %vm189, 1, 0
    %v222 = vsel %vm190, 1, 0
    %v223 = vsel %vm191, 1, 0
    %v224 = vsel %vm192, 1, 0
    %v225 = vsel %vm193, 1, 0
    %v226 = vsel %vm194, 1, 0
    %v227 = vsel %vm195, 1, 0
    %v228 = vsel %vm196, 1, 0
    %v229 = vsel %vm197, 1, 0
    %v230 = vsel %vm198, 1, 0
    %v231 = vsel %vm199, 1, 0
    %v232 = vsel %vm200, 1, 0
    %v233 = vsel %vm201, 1, 0
    %v234 = vsel %vm202, 1, 0
    %v235 = vcvt.s32.f32 %v203
    %v236 = vcvt.s32.f32 %v204
    %v237 = vcvt.s32.f32 %v205
    %v238 = vcvt.s32.f32 %v206
    %v239 = vcvt.s32.f32 %v207
    %v240 = vcvt.s32.f32 %v208
    %v241 = vcvt.s32.f32 %v209
    %v242 = vcvt.s32.f32 %v210
    %v243 = vcvt.s32.f32 %v211
    %v244 = vcvt.s32.f32 %v212
    %v245 = vcvt.s32.f32 %v213
    %v246 = vcvt.s32.f32 %v214
    %v247 = vcvt.s32.f32 %v215
    %v248 = vcvt.s32.f32 %v216
    %v249 = vcvt.s32.f32 %v217
    %v250 = vcvt.s32.f32 %v218
    %v251 = vcvt.s32.f32 %v219
    %v252 = vcvt.s32.f32 %v220
    %v253 = vcvt.s32.f32 %v221
    %v254 = vcvt.s32.f32 %v222
    %v255 = vcvt.s32.f32 %v223
    %v256 = vcvt.s32.f32 %v224
    %v257 = vcvt.s32.f32 %v225
    %v258 = vcvt.s32.f32 %v226
    %v259 = vcvt.s32.f32 %v227
    %v260 = vcvt.s32.f32 %v228
    %v261 = vcvt.s32.f32 %v229
    %v262 = vcvt.s32.f32 %v230
    %v263 = vcvt.s32.f32 %v231
    %v264 = vcvt.s32.f32 %v232
    %v265 = vcvt.s32.f32 %v233
    %v266 = vcvt.s32.f32 %v234
    %v267 = vld [vmem:[#allocation5] sm:$0xff]
    %v268 = vld [vmem:[#allocation5 + $0x8] sm:$0xff]
    %v269 = vld [vmem:[#allocation5 + $0x10] sm:$0xff]
    %v270 = vld [vmem:[#allocation5 + $0x18] sm:$0xff]
    %v271 = vld [vmem:[#allocation5 + $0x20] sm:$0xff]
    %v272 = vld [vmem:[#allocation5 + $0x28] sm:$0xff]
    %v273 = vld [vmem:[#allocation5 + $0x30] sm:$0xff]
    %v274 = vld [vmem:[#allocation5 + $0x38] sm:$0xff]
    %v275 = vld [vmem:[#allocation5 + $0x40] sm:$0xff]
    %v276 = vld [vmem:[#allocation5 + $0x48] sm:$0xff]
    %v277 = vld [vmem:[#allocation5 + $0x50] sm:$0xff]
    %v278 = vld [vmem:[#allocation5 + $0x58] sm:$0xff]
    %v279 = vld [vmem:[#allocation5 + $0x60] sm:$0xff]
    %v280 = vld [vmem:[#allocation5 + $0x68] sm:$0xff]
    %v281 = vld [vmem:[#allocation5 + $0x70] sm:$0xff]
    %v282 = vld [vmem:[#allocation5 + $0x78] sm:$0xff]
    %v283 = vld [vmem:[#allocation5 + $0x80] sm:$0xff]
    %v284 = vld [vmem:[#allocation5 + $0x88] sm:$0xff]
    %v285 = vld [vmem:[#allocation5 + $0x90] sm:$0xff]
    %v286 = vld [vmem:[#allocation5 + $0x98] sm:$0xff]
    %v287 = vld [vmem:[#allocation5 + $0xa0] sm:$0xff]
    %v288 = vld [vmem:[#allocation5 + $0xa8] sm:$0xff]
    %v289 = vld [vmem:[#allocation5 + $0xb0] sm:$0xff]
    %v290 = vld [vmem:[#allocation5 + $0xb8] sm:$0xff]
    %v291 = vld [vmem:[#allocation5 + $0xc0] sm:$0xff]
    %v292 = vld [vmem:[#allocation5 + $0xc8] sm:$0xff]
    %v293 = vld [vmem:[#allocation5 + $0xd0] sm:$0xff]
    %v294 = vld [vmem:[#allocation5 + $0xd8] sm:$0xff]
    %v295 = vld [vmem:[#allocation5 + $0xe0] sm:$0xff]
    %v296 = vld [vmem:[#allocation5 + $0xe8] sm:$0xff]
    %v297 = vld [vmem:[#allocation5 + $0xf0] sm:$0xff]
    %v298 = vld [vmem:[#allocation5 + $0xf8] sm:$0xff]
    %299 = vmatprep.subr.mxu0 0.0
    %300 = vmatpush1.msra.mxu0 %v267
    %301 = vmatprep.subr.mxu0 0.0
    %302 = vmatpush1.msra.mxu0 %v268
    %303 = vmatprep.subr.mxu0 0.0
    %304 = vmatpush1.msra.mxu0 %v269
    %305 = vmatprep.subr.mxu0 0.0
    %306 = vmatpush1.msra.mxu0 %v270
    %307 = vmatprep.subr.mxu0 0.0
    %308 = vmatpush1.msra.mxu0 %v271
    %309 = vmatprep.subr.mxu0 0.0
    %310 = vmatpush1.msra.mxu0 %v272
    %311 = vmatprep.subr.mxu0 0.0
    %312 = vmatpush1.msra.mxu0 %v273
    %313 = vmatprep.subr.mxu0 0.0
    %314 = vmatpush1.msra.mxu0 %v274
    %315 = vmatprep.subr.mxu0 0.0
    %316 = vmatpush1.msra.mxu0 %v275
    %317 = vmatprep.subr.mxu0 0.0
    %318 = vmatpush1.msra.mxu0 %v276
    %319 = vmatprep.subr.mxu0 0.0
    %320 = vmatpush1.msra.mxu0 %v277
    %321 = vmatprep.subr.mxu0 0.0
    %322 = vmatpush1.msra.mxu0 %v278
    %323 = vmatprep.subr.mxu0 0.0
    %324 = vmatpush1.msra.mxu0 %v279
    %325 = vmatprep.subr.mxu0 0.0
    %326 = vmatpush1.msra.mxu0 %v280
    %327 = vmatprep.subr.mxu0 0.0
    %328 = vmatpush1.msra.mxu0 %v281
    %329 = vmatprep.subr.mxu0 0.0
    %330 = vmatpush1.msra.mxu0 %v282
    %331 = vmatprep.subr.mxu0 0.0
    %332 = vmatpush1.msra.mxu0 %v283
    %333 = vmatprep.subr.mxu0 0.0
    %334 = vmatpush1.msra.mxu0 %v284
    %335 = vmatprep.subr.mxu0 0.0
    %336 = vmatpush1.msra.mxu0 %v285
    %337 = vmatprep.subr.mxu0 0.0
    %338 = vmatpush1.msra.mxu0 %v286
    %339 = vmatprep.subr.mxu0 0.0
    %340 = vmatpush1.msra.mxu0 %v287
    %341 = vmatprep.subr.mxu0 0.0
    %342 = vmatpush1.msra.mxu0 %v288
    %343 = vmatprep.subr.mxu0 0.0
    %344 = vmatpush1.msra.mxu0 %v289
    %345 = vmatprep.subr.mxu0 0.0
    %346 = vmatpush1.msra.mxu0 %v290
    %347 = vmatprep.subr.mxu0 0.0
    %348 = vmatpush1.msra.mxu0 %v291
    %349 = vmatprep.subr.mxu0 0.0
    %350 = vmatpush1.msra.mxu0 %v292
    %351 = vmatprep.subr.mxu0 0.0
    %352 = vmatpush1.msra.mxu0 %v293
    %353 = vmatprep.subr.mxu0 0.0
    %354 = vmatpush1.msra.mxu0 %v294
    %355 = vmatprep.subr.mxu0 0.0
    %356 = vmatpush1.msra.mxu0 %v295
    %357 = vmatprep.subr.mxu0 0.0
    %358 = vmatpush1.msra.mxu0 %v296
    %359 = vmatprep.subr.mxu0 0.0
    %360 = vmatpush1.msra.mxu0 %v297
    %361 = vmatprep.subr.mxu0 0.0
    %362 = vmatpush1.msra.mxu0 %v298
    %363 = vmatprep.mubr.f32.mxu0 %v236
    %364 = vmatmul.mubr.f32.gmra.mrb[0].mxu0 %v235
    %v365 = vpop.f32.mrb[0].mxu0
    %v366 = vadd.f32 0.0, %v365
    %v367 = vpop.f32.mrb[0].mxu0
    %368 = vmatprep.mubr.f32.mxu0 %v238
    %369 = vmatmul.mubr.f32.gmra.mrb[0].mxu0 %v237
    %v370 = vpop.f32.mrb[0].mxu0
    %v371 = vadd.f32 0.0, %v370
    %v372 = vpop.f32.mrb[0].mxu0
    %373 = vmatprep.mubr.f32.mxu0 %v240
    %374 = vmatmul.mubr.f32.gmra.mrb[0].mxu0 %v239
    %v375 = vpop.f32.mrb[0].mxu0
    %v376 = vadd.f32 0.0, %v375
    %v377 = vpop.f32.mrb[0].mxu0
    %378 = vmatprep.mubr.f32.mxu0 %v242
    %379 = vmatmul.mubr.f32.gmra.mrb[0].mxu0 %v241
    %v380 = vpop.f32.mrb[0].mxu0
    %v381 = vadd.f32 0.0, %v380
    %v382 = vpop.f32.mrb[0].mxu0
    %383 = vmatprep.mubr.f32.mxu0 %v244
    %384 = vmatmul.mubr.f32.gmra.mrb[0].mxu0 %v243
    %v385 = vpop.f32.mrb[0].mxu0
    %v386 = vadd.f32 0.0, %v385
    %v387 = vpop.f32.mrb[0].mxu0
    %388 = vmatprep.mubr.f32.mxu0 %v246
    %389 = vmatmul.mubr.f32.gmra.mrb[0].mxu0 %v245
    %v390 = vpop.f32.mrb[0].mxu0
    %v391 = vadd.f32 0.0, %v390
    %v392 = vpop.f32.mrb[0].mxu0
    %393 = vmatprep.mubr.f32.mxu0 %v248
    %394 = vmatmul.mubr.f32.gmra.mrb[0].mxu0 %v247
    %v395 = vpop.f32.mrb[0].mxu0
    %v396 = vadd.f32 0.0, %v395
    %v397 = vpop.f32.mrb[0].mxu0
    %398 = vmatprep.mubr.f32.mxu0 %v250
    %399 = vmatmul.mubr.f32.gmra.mrb[0].mxu0 %v249
    %v400 = vpop.f32.mrb[0].mxu0
    %v401 = vadd.f32 0.0, %v400
    %v402 = vpop.f32.mrb[0].mxu0
    %403 = vmatprep.mubr.f32.mxu0 %v252
    %404 = vmatmul.mubr.f32.gmra.mrb[0].mxu0 %v251
    %v405 = vpop.f32.mrb[0].mxu0
    %v406 = vadd.f32 0.0, %v405
    %v407 = vpop.f32.mrb[0].mxu0
    %408 = vmatprep.mubr.f32.mxu0 %v254
    %409 = vmatmul.mubr.f32.gmra.mrb[0].mxu0 %v253
    %v410 = vpop.f32.mrb[0].mxu0
    %v411 = vadd.f32 0.0, %v410
    %v412 = vpop.f32.mrb[0].mxu0
    %413 = vmatprep.mubr.f32.mxu0 %v256
    %414 = vmatmul.mubr.f32.gmra.mrb[0].mxu0 %v255
    %v415 = vpop.f32.mrb[0].mxu0
    %v416 = vadd.f32 0.0, %v415
    %v417 = vpop.f32.mrb[0].mxu0
    %418 = vmatprep.mubr.f32.mxu0 %v258
    %419 = vmatmul.mubr.f32.gmra.mrb[0].mxu0 %v257
    %v420 = vpop.f32.mrb[0].mxu0
    %v421 = vadd.f32 0.0, %v420
    %v422 = vpop.f32.mrb[0].mxu0
    %423 = vmatprep.mubr.f32.mxu0 %v260
    %424 = vmatmul.mubr.f32.gmra.mrb[0].mxu0 %v259
    %v425 = vpop.f32.mrb[0].mxu0
    %v426 = vadd.f32 0.0, %v425
    %v427 = vpop.f32.mrb[0].mxu0
    %428 = vmatprep.mubr.f32.mxu0 %v262
    %429 = vmatmul.mubr.f32.gmra.mrb[0].mxu0 %v261
    %v430 = vpop.f32.mrb[0].mxu0
    %v431 = vadd.f32 0.0, %v430
    %v432 = vpop.f32.mrb[0].mxu0
    %433 = vmatprep.mubr.f32.mxu0 %v264
    %434 = vmatmul.mubr.f32.gmra.mrb[0].mxu0 %v263
    %v435 = vpop.f32.mrb[0].mxu0
    %v436 = vadd.f32 0.0, %v435
    %v437 = vpop.f32.mrb[0].mxu0
    %438 = vmatprep.mubr.f32.mxu0 %v266
    %439 = vmatmul.mubr.f32.gmra.mrb[0].mxu0 %v265
    %v440 = vpop.f32.mrb[0].mxu0
    %v441 = vadd.f32 0.0, %v440
    %v442 = vpop.f32.mrb[0].mxu0
    %443 = vdwg.mxu0
    %444 = vst [vmem:[#allocation7] sm:$0xff] %v366
    %445 = vst [vmem:[#allocation7 + $0x8] sm:$0xff] %v371
    %446 = vst [vmem:[#allocation7 + $0x10] sm:$0xff] %v376
    %447 = vst [vmem:[#allocation7 + $0x18] sm:$0xff] %v381
    %448 = vst [vmem:[#allocation7 + $0x20] sm:$0xff] %v386
    %449 = vst [vmem:[#allocation7 + $0x28] sm:$0xff] %v391
    %450 = vst [vmem:[#allocation7 + $0x30] sm:$0xff] %v396
    %451 = vst [vmem:[#allocation7 + $0x38] sm:$0xff] %v401
    %452 = vst [vmem:[#allocation7 + $0x40] sm:$0xff] %v406
    %453 = vst [vmem:[#allocation7 + $0x48] sm:$0xff] %v411
    %454 = vst [vmem:[#allocation7 + $0x50] sm:$0xff] %v416
    %455 = vst [vmem:[#allocation7 + $0x58] sm:$0xff] %v421
    %456 = vst [vmem:[#allocation7 + $0x60] sm:$0xff] %v426
    %457 = vst [vmem:[#allocation7 + $0x68] sm:$0xff] %v431
    %458 = vst [vmem:[#allocation7 + $0x70] sm:$0xff] %v436
    %459 = vst [vmem:[#allocation7 + $0x78] sm:$0xff] %v441
    %460 = vset.pattern.permute.xlu0 1
    %461 = vperm.xlu0 %460, %v106
    %v462 = vpop.permute.xlu0 %461
    %463 = vset.pattern.permute.xlu0 1
    %464 = vperm.xlu0 %463, %v107
    %v465 = vpop.permute.xlu0 %464
    %466 = vset.pattern.permute.xlu0 1
    %467 = vperm.xlu0 %466, %v108
    %v468 = vpop.permute.xlu0 %467
    %469 = vset.pattern.permute.xlu0 1
    %470 = vperm.xlu0 %469, %v109
    %v471 = vpop.permute.xlu0 %470
    %472 = vset.pattern.permute.xlu0 1
    %473 = vperm.xlu0 %472, %v110
    %v474 = vpop.permute.xlu0 %473
    %475 = vset.pattern.permute.xlu0 1
    %476 = vperm.xlu0 %475, %v111
    %v477 = vpop.permute.xlu0 %476
    %478 = vset.pattern.permute.xlu0 1
    %479 = vperm.xlu0 %478, %v112
    %v480 = vpop.permute.xlu0 %479
    %481 = vset.pattern.permute.xlu0 1
    %482 = vperm.xlu0 %481, %v113
    %v483 = vpop.permute.xlu0 %482
    %484 = vset.pattern.permute.xlu0 1
    %485 = vperm.xlu0 %484, %v114
    %v486 = vpop.permute.xlu0 %485
    %487 = vset.pattern.permute.xlu0 1
    %488 = vperm.xlu0 %487, %v115
    %v489 = vpop.permute.xlu0 %488
    %490 = vset.pattern.permute.xlu0 1
    %491 = vperm.xlu0 %490, %v116
    %v492 = vpop.permute.xlu0 %491
    %493 = vset.pattern.permute.xlu0 1
    %494 = vperm.xlu0 %493, %v117
    %v495 = vpop.permute.xlu0 %494
    %496 = vset.pattern.permute.xlu0 1
    %497 = vperm.xlu0 %496, %v118
    %v498 = vpop.permute.xlu0 %497
    %499 = vset.pattern.permute.xlu0 1
    %500 = vperm.xlu0 %499, %v119
    %v501 = vpop.permute.xlu0 %500
    %502 = vset.pattern.permute.xlu0 1
    %503 = vperm.xlu0 %502, %v120
    %v504 = vpop.permute.xlu0 %503
    %505 = vset.pattern.permute.xlu0 1
    %506 = vperm.xlu0 %505, %v121
    %v507 = vpop.permute.xlu0 %506
    %vm508 = vcmp.eq.s32.totalorder %v462, %v43
    %vm509 = vcmp.eq.s32.totalorder %v462, %v122
    %vm510 = vcmp.eq.s32.totalorder %v465, %v43
    %vm511 = vcmp.eq.s32.totalorder %v465, %v122
    %vm512 = vcmp.eq.s32.totalorder %v468, %v43
    %vm513 = vcmp.eq.s32.totalorder %v468, %v122
    %vm514 = vcmp.eq.s32.totalorder %v471, %v43
    %vm515 = vcmp.eq.s32.totalorder %v471, %v122
    %vm516 = vcmp.eq.s32.totalorder %v474, %v43
    %vm517 = vcmp.eq.s32.totalorder %v474, %v122
    %vm518 = vcmp.eq.s32.totalorder %v477, %v43
    %vm519 = vcmp.eq.s32.totalorder %v477, %v122
    %vm520 = vcmp.eq.s32.totalorder %v480, %v43
    %vm521 = vcmp.eq.s32.totalorder %v480, %v122
    %vm522 = vcmp.eq.s32.totalorder %v483, %v43
    %vm523 = vcmp.eq.s32.totalorder %v483, %v122
    %vm524 = vcmp.eq.s32.totalorder %v486, %v43
    %vm525 = vcmp.eq.s32.totalorder %v486, %v122
    %vm526 = vcmp.eq.s32.totalorder %v489, %v43
    %vm527 = vcmp.eq.s32.totalorder %v489, %v122
    %vm528 = vcmp.eq.s32.totalorder %v492, %v43
    %vm529 = vcmp.eq.s32.totalorder %v492, %v122
    %vm530 = vcmp.eq.s32.totalorder %v495, %v43
    %vm531 = vcmp.eq.s32.totalorder %v495, %v122
    %vm532 = vcmp.eq.s32.totalorder %v498, %v43
    %vm533 = vcmp.eq.s32.totalorder %v498, %v122
    %vm534 = vcmp.eq.s32.totalorder %v501, %v43
    %vm535 = vcmp.eq.s32.totalorder %v501, %v122
    %vm536 = vcmp.eq.s32.totalorder %v504, %v43
    %vm537 = vcmp.eq.s32.totalorder %v504, %v122
    %vm538 = vcmp.eq.s32.totalorder %v507, %v43
    %vm539 = vcmp.eq.s32.totalorder %v507, %v122
    %v540 = vsel %vm508, 1, 0
    %v541 = vsel %vm509, 1, 0
    %v542 = vsel %vm510, 1, 0
    %v543 = vsel %vm511, 1, 0
    %v544 = vsel %vm512, 1, 0
    %v545 = vsel %vm513, 1, 0
    %v546 = vsel %vm514, 1, 0
    %v547 = vsel %vm515, 1, 0
    %v548 = vsel %vm516, 1, 0
    %v549 = vsel %vm517, 1, 0
    %v550 = vsel %vm518, 1, 0
    %v551 = vsel %vm519, 1, 0
    %v552 = vsel %vm520, 1, 0
    %v553 = vsel %vm521, 1, 0
    %v554 = vsel %vm522, 1, 0
    %v555 = vsel %vm523, 1, 0
    %v556 = vsel %vm524, 1, 0
    %v557 = vsel %vm525, 1, 0
    %v558 = vsel %vm526, 1, 0
    %v559 = vsel %vm527, 1, 0
    %v560 = vsel %vm528, 1, 0
    %v561 = vsel %vm529, 1, 0
    %v562 = vsel %vm530, 1, 0
    %v563 = vsel %vm531, 1, 0
    %v564 = vsel %vm532, 1, 0
    %v565 = vsel %vm533, 1, 0
    %v566 = vsel %vm534, 1, 0
    %v567 = vsel %vm535, 1, 0
    %v568 = vsel %vm536, 1, 0
    %v569 = vsel %vm537, 1, 0
    %v570 = vsel %vm538, 1, 0
    %v571 = vsel %vm539, 1, 0
    %v572 = vcvt.s32.f32 %v540
    %v573 = vcvt.s32.f32 %v541
    %v574 = vcvt.s32.f32 %v542
    %v575 = vcvt.s32.f32 %v543
    %v576 = vcvt.s32.f32 %v544
    %v577 = vcvt.s32.f32 %v545
    %v578 = vcvt.s32.f32 %v546
    %v579 = vcvt.s32.f32 %v547
    %v580 = vcvt.s32.f32 %v548
    %v581 = vcvt.s32.f32 %v549
    %v582 = vcvt.s32.f32 %v550
    %v583 = vcvt.s32.f32 %v551
    %v584 = vcvt.s32.f32 %v552
    %v585 = vcvt.s32.f32 %v553
    %v586 = vcvt.s32.f32 %v554
    %v587 = vcvt.s32.f32 %v555
    %v588 = vcvt.s32.f32 %v556
    %v589 = vcvt.s32.f32 %v557
    %v590 = vcvt.s32.f32 %v558
    %v591 = vcvt.s32.f32 %v559
    %v592 = vcvt.s32.f32 %v560
    %v593 = vcvt.s32.f32 %v561
    %v594 = vcvt.s32.f32 %v562
    %v595 = vcvt.s32.f32 %v563
    %v596 = vcvt.s32.f32 %v564
    %v597 = vcvt.s32.f32 %v565
    %v598 = vcvt.s32.f32 %v566
    %v599 = vcvt.s32.f32 %v567
    %v600 = vcvt.s32.f32 %v568
    %v601 = vcvt.s32.f32 %v569
    %v602 = vcvt.s32.f32 %v570
    %v603 = vcvt.s32.f32 %v571
    %v604 = vld [vmem:[#allocation5] sm:$0xff]
    %v605 = vld [vmem:[#allocation5 + $0x8] sm:$0xff]
    %v606 = vld [vmem:[#allocation5 + $0x10] sm:$0xff]
    %v607 = vld [vmem:[#allocation5 + $0x18] sm:$0xff]
    %v608 = vld [vmem:[#allocation5 + $0x20] sm:$0xff]
    %v609 = vld [vmem:[#allocation5 + $0x28] sm:$0xff]
    %v610 = vld [vmem:[#allocation5 + $0x30] sm:$0xff]
    %v611 = vld [vmem:[#allocation5 + $0x38] sm:$0xff]
    %v612 = vld [vmem:[#allocation5 + $0x40] sm:$0xff]
    %v613 = vld [vmem:[#allocation5 + $0x48] sm:$0xff]
    %v614 = vld [vmem:[#allocation5 + $0x50] sm:$0xff]
    %v615 = vld [vmem:[#allocation5 + $0x58] sm:$0xff]
    %v616 = vld [vmem:[#allocation5 + $0x60] sm:$0xff]
    %v617 = vld [vmem:[#allocation5 + $0x68] sm:$0xff]
    %v618 = vld [vmem:[#allocation5 + $0x70] sm:$0xff]
    %v619 = vld [vmem:[#allocation5 + $0x78] sm:$0xff]
    %v620 = vld [vmem:[#allocation5 + $0x80] sm:$0xff]
    %v621 = vld [vmem:[#allocation5 + $0x88] sm:$0xff]
    %v622 = vld [vmem:[#allocation5 + $0x90] sm:$0xff]
    %v623 = vld [vmem:[#allocation5 + $0x98] sm:$0xff]
    %v624 = vld [vmem:[#allocation5 + $0xa0] sm:$0xff]
    %v625 = vld [vmem:[#allocation5 + $0xa8] sm:$0xff]
    %v626 = vld [vmem:[#allocation5 + $0xb0] sm:$0xff]
    %v627 = vld [vmem:[#allocation5 + $0xb8] sm:$0xff]
    %v628 = vld [vmem:[#allocation5 + $0xc0] sm:$0xff]
    %v629 = vld [vmem:[#allocation5 + $0xc8] sm:$0xff]
    %v630 = vld [vmem:[#allocation5 + $0xd0] sm:$0xff]
    %v631 = vld [vmem:[#allocation5 + $0xd8] sm:$0xff]
    %v632 = vld [vmem:[#allocation5 + $0xe0] sm:$0xff]
    %v633 = vld [vmem:[#allocation5 + $0xe8] sm:$0xff]
    %v634 = vld [vmem:[#allocation5 + $0xf0] sm:$0xff]
    %v635 = vld [vmem:[#allocation5 + $0xf8] sm:$0xff]
    %636 = vmatprep.subr.mxu0 0.0
    %637 = vmatpush1.msra.mxu0 %v604
    %638 = vmatprep.subr.mxu0 0.0
    %639 = vmatpush1.msra.mxu0 %v605
    %640 = vmatprep.subr.mxu0 0.0
    %641 = vmatpush1.msra.mxu0 %v606
    %642 = vmatprep.subr.mxu0 0.0
    %643 = vmatpush1.msra.mxu0 %v607
    %644 = vmatprep.subr.mxu0 0.0
    %645 = vmatpush1.msra.mxu0 %v608
    %646 = vmatprep.subr.mxu0 0.0
    %647 = vmatpush1.msra.mxu0 %v609
    %648 = vmatprep.subr.mxu0 0.0
    %649 = vmatpush1.msra.mxu0 %v610
    %650 = vmatprep.subr.mxu0 0.0
    %651 = vmatpush1.msra.mxu0 %v611
    %652 = vmatprep.subr.mxu0 0.0
    %653 = vmatpush1.msra.mxu0 %v612
    %654 = vmatprep.subr.mxu0 0.0
    %655 = vmatpush1.msra.mxu0 %v613
    %656 = vmatprep.subr.mxu0 0.0
    %657 = vmatpush1.msra.mxu0 %v614
    %658 = vmatprep.subr.mxu0 0.0
    %659 = vmatpush1.msra.mxu0 %v615
    %660 = vmatprep.subr.mxu0 0.0
    %661 = vmatpush1.msra.mxu0 %v616
    %662 = vmatprep.subr.mxu0 0.0
    %663 = vmatpush1.msra.mxu0 %v617
    %664 = vmatprep.subr.mxu0 0.0
    %665 = vmatpush1.msra.mxu0 %v618
    %666 = vmatprep.subr.mxu0 0.0
    %667 = vmatpush1.msra.mxu0 %v619
    %668 = vmatprep.subr.mxu0 0.0
    %669 = vmatpush1.msra.mxu0 %v620
    %670 = vmatprep.subr.mxu0 0.0
    %671 = vmatpush1.msra.mxu0 %v621
    %672 = vmatprep.subr.mxu0 0.0
    %673 = vmatpush1.msra.mxu0 %v622
    %674 = vmatprep.subr.mxu0 0.0
    %675 = vmatpush1.msra.mxu0 %v623
    %676 = vmatprep.subr.mxu0 0.0
    %677 = vmatpush1.msra.mxu0 %v624
    %678 = vmatprep.subr.mxu0 0.0
    %679 = vmatpush1.msra.mxu0 %v625
    %680 = vmatprep.subr.mxu0 0.0
    %681 = vmatpush1.msra.mxu0 %v626
    %682 = vmatprep.subr.mxu0 0.0
    %683 = vmatpush1.msra.mxu0 %v627
    %684 = vmatprep.subr.mxu0 0.0
    %685 = vmatpush1.msra.mxu0 %v628
    %686 = vmatprep.subr.mxu0 0.0
    %687 = vmatpush1.msra.mxu0 %v629
    %688 = vmatprep.subr.mxu0 0.0
    %689 = vmatpush1.msra.mxu0 %v630
    %690 = vmatprep.subr.mxu0 0.0
    %691 = vmatpush1.msra.mxu0 %v631
    %692 = vmatprep.subr.mxu0 0.0
    %693 = vmatpush1.msra.mxu0 %v632
    %694 = vmatprep.subr.mxu0 0.0
    %695 = vmatpush1.msra.mxu0 %v633
    %696 = vmatprep.subr.mxu0 0.0
    %697 = vmatpush1.msra.mxu0 %v634
    %698 = vmatprep.subr.mxu0 0.0
    %699 = vmatpush1.msra.mxu0 %v635
    %700 = vmatprep.mubr.f32.mxu0 %v573
    %701 = vmatmul.mubr.f32.gmra.mrb[0].mxu0 %v572
    %v702 = vpop.f32.mrb[0].mxu0
    %v703 = vadd.f32 0.0, %v702
    %v704 = vpop.f32.mrb[0].mxu0
    %705 = vmatprep.mubr.f32.mxu0 %v575
    %706 = vmatmul.mubr.f32.gmra.mrb[0].mxu0 %v574
    %v707 = vpop.f32.mrb[0].mxu0
    %v708 = vadd.f32 0.0, %v707
    %v709 = vpop.f32.mrb[0].mxu0
    %710 = vmatprep.mubr.f32.mxu0 %v577
    %711 = vmatmul.mubr.f32.gmra.mrb[0].mxu0 %v576
    %v712 = vpop.f32.mrb[0].mxu0
    %v713 = vadd.f32 0.0, %v712
    %v714 = vpop.f32.mrb[0].mxu0
    %715 = vmatprep.mubr.f32.mxu0 %v579
    %716 = vmatmul.mubr.f32.gmra.mrb[0].mxu0 %v578
    %v717 = vpop.f32.mrb[0].mxu0
    %v718 = vadd.f32 0.0, %v717
    %v719 = vpop.f32.mrb[0].mxu0
    %720 = vmatprep.mubr.f32.mxu0 %v581
    %721 = vmatmul.mubr.f32.gmra.mrb[0].mxu0 %v580
    %v722 = vpop.f32.mrb[0].mxu0
    %v723 = vadd.f32 0.0, %v722
    %v724 = vpop.f32.mrb[0].mxu0
    %725 = vmatprep.mubr.f32.mxu0 %v583
    %726 = vmatmul.mubr.f32.gmra.mrb[0].mxu0 %v582
    %v727 = vpop.f32.mrb[0].mxu0
    %v728 = vadd.f32 0.0, %v727
    %v729 = vpop.f32.mrb[0].mxu0
    %730 = vmatprep.mubr.f32.mxu0 %v585
    %731 = vmatmul.mubr.f32.gmra.mrb[0].mxu0 %v584
    %v732 = vpop.f32.mrb[0].mxu0
    %v733 = vadd.f32 0.0, %v732
    %v734 = vpop.f32.mrb[0].mxu0
    %735 = vmatprep.mubr.f32.mxu0 %v587
    %736 = vmatmul.mubr.f32.gmra.mrb[0].mxu0 %v586
    %v737 = vpop.f32.mrb[0].mxu0
    %v738 = vadd.f32 0.0, %v737
    %v739 = vpop.f32.mrb[0].mxu0
    %740 = vmatprep.mubr.f32.mxu0 %v589
    %741 = vmatmul.mubr.f32.gmra.mrb[0].mxu0 %v588
    %v742 = vpop.f32.mrb[0].mxu0
    %v743 = vadd.f32 0.0, %v742
    %v744 = vpop.f32.mrb[0].mxu0
    %745 = vmatprep.mubr.f32.mxu0 %v591
    %746 = vmatmul.mubr.f32.gmra.mrb[0].mxu0 %v590
    %v747 = vpop.f32.mrb[0].mxu0
    %v748 = vadd.f32 0.0, %v747
    %v749 = vpop.f32.mrb[0].mxu0
    %750 = vmatprep.mubr.f32.mxu0 %v593
    %751 = vmatmul.mubr.f32.gmra.mrb[0].mxu0 %v592
    %v752 = vpop.f32.mrb[0].mxu0
    %v753 = vadd.f32 0.0, %v752
    %v754 = vpop.f32.mrb[0].mxu0
    %755 = vmatprep.mubr.f32.mxu0 %v595
    %756 = vmatmul.mubr.f32.gmra.mrb[0].mxu0 %v594
    %v757 = vpop.f32.mrb[0].mxu0
    %v758 = vadd.f32 0.0, %v757
    %v759 = vpop.f32.mrb[0].mxu0
    %760 = vmatprep.mubr.f32.mxu0 %v597
    %761 = vmatmul.mubr.f32.gmra.mrb[0].mxu0 %v596
    %v762 = vpop.f32.mrb[0].mxu0
    %v763 = vadd.f32 0.0, %v762
    %v764 = vpop.f32.mrb[0].mxu0
    %765 = vmatprep.mubr.f32.mxu0 %v599
    %766 = vmatmul.mubr.f32.gmra.mrb[0].mxu0 %v598
    %v767 = vpop.f32.mrb[0].mxu0
    %v768 = vadd.f32 0.0, %v767
    %v769 = vpop.f32.mrb[0].mxu0
    %770 = vmatprep.mubr.f32.mxu0 %v601
    %771 = vmatmul.mubr.f32.gmra.mrb[0].mxu0 %v600
    %v772 = vpop.f32.mrb[0].mxu0
    %v773 = vadd.f32 0.0, %v772
    %v774 = vpop.f32.mrb[0].mxu0
    %775 = vmatprep.mubr.f32.mxu0 %v603
    %776 = vmatmul.mubr.f32.gmra.mrb[0].mxu0 %v602
    %v777 = vpop.f32.mrb[0].mxu0
    %v778 = vadd.f32 0.0, %v777
    %v779 = vpop.f32.mrb[0].mxu0
    %780 = vdwg.mxu0
    %781 = vst [vmem:[#allocation7 + $0x80] sm:$0xff] %v703
    %782 = vst [vmem:[#allocation7 + $0x88] sm:$0xff] %v708
    %783 = vst [vmem:[#allocation7 + $0x90] sm:$0xff] %v713
    %784 = vst [vmem:[#allocation7 + $0x98] sm:$0xff] %v718
    %785 = vst [vmem:[#allocation7 + $0xa0] sm:$0xff] %v723
    %786 = vst [vmem:[#allocation7 + $0xa8] sm:$0xff] %v728
    %787 = vst [vmem:[#allocation7 + $0xb0] sm:$0xff] %v733
    %788 = vst [vmem:[#allocation7 + $0xb8] sm:$0xff] %v738
    %789 = vst [vmem:[#allocation7 + $0xc0] sm:$0xff] %v743
    %790 = vst [vmem:[#allocation7 + $0xc8] sm:$0xff] %v748
    %791 = vst [vmem:[#allocation7 + $0xd0] sm:$0xff] %v753
    %792 = vst [vmem:[#allocation7 + $0xd8] sm:$0xff] %v758
    %793 = vst [vmem:[#allocation7 + $0xe0] sm:$0xff] %v763
    %794 = vst [vmem:[#allocation7 + $0xe8] sm:$0xff] %v768
    %795 = vst [vmem:[#allocation7 + $0xf0] sm:$0xff] %v773
    %796 = vst [vmem:[#allocation7 + $0xf8] sm:$0xff] %v778
    %797 = vset.pattern.permute.xlu0 2
    %798 = vperm.xlu0 %797, %v106
    %v799 = vpop.permute.xlu0 %798
    %800 = vset.pattern.permute.xlu0 2
    %801 = vperm.xlu0 %800, %v107
    %v802 = vpop.permute.xlu0 %801
    %803 = vset.pattern.permute.xlu0 2
    %804 = vperm.xlu0 %803, %v108
    %v805 = vpop.permute.xlu0 %804
    %806 = vset.pattern.permute.xlu0 2
    %807 = vperm.xlu0 %806, %v109
    %v808 = vpop.permute.xlu0 %807
    %809 = vset.pattern.permute.xlu0 2
    %810 = vperm.xlu0 %809, %v110
    %v811 = vpop.permute.xlu0 %810
    %812 = vset.pattern.permute.xlu0 2
    %813 = vperm.xlu0 %812, %v111
    %v814 = vpop.permute.xlu0 %813
    %815 = vset.pattern.permute.xlu0 2
    %816 = vperm.xlu0 %815, %v112
    %v817 = vpop.permute.xlu0 %816
    %818 = vset.pattern.permute.xlu0 2
    %819 = vperm.xlu0 %818, %v113
    %v820 = vpop.permute.xlu0 %819
    %821 = vset.pattern.permute.xlu0 2
    %822 = vperm.xlu0 %821, %v114
    %v823 = vpop.permute.xlu0 %822
    %824 = vset.pattern.permute.xlu0 2
    %825 = vperm.xlu0 %824, %v115
    %v826 = vpop.permute.xlu0 %825
    %827 = vset.pattern.permute.xlu0 2
    %828 = vperm.xlu0 %827, %v116
    %v829 = vpop.permute.xlu0 %828
    %830 = vset.pattern.permute.xlu0 2
    %831 = vperm.xlu0 %830, %v117
    %v832 = vpop.permute.xlu0 %831
    %833 = vset.pattern.permute.xlu0 2
    %834 = vperm.xlu0 %833, %v118
    %v835 = vpop.permute.xlu0 %834
    %836 = vset.pattern.permute.xlu0 2
    %837 = vperm.xlu0 %836, %v119
    %v838 = vpop.permute.xlu0 %837
    %839 = vset.pattern.permute.xlu0 2
    %840 = vperm.xlu0 %839, %v120
    %v841 = vpop.permute.xlu0 %840
    %842 = vset.pattern.permute.xlu0 2
    %843 = vperm.xlu0 %842, %v121
    %v844 = vpop.permute.xlu0 %843
    %vm845 = vcmp.eq.s32.totalorder %v799, %v43
    %vm846 = vcmp.eq.s32.totalorder %v799, %v122
    %vm847 = vcmp.eq.s32.totalorder %v802, %v43
    %vm848 = vcmp.eq.s32.totalorder %v802, %v122
    %vm849 = vcmp.eq.s32.totalorder %v805, %v43
    %vm850 = vcmp.eq.s32.totalorder %v805, %v122
    %vm851 = vcmp.eq.s32.totalorder %v808, %v43
    %vm852 = vcmp.eq.s32.totalorder %v808, %v122
    %vm853 = vcmp.eq.s32.totalorder %v811, %v43
    %vm854 = vcmp.eq.s32.totalorder %v811, %v122
    %vm855 = vcmp.eq.s32.totalorder %v814, %v43
    %vm856 = vcmp.eq.s32.totalorder %v814, %v122
    %vm857 = vcmp.eq.s32.totalorder %v817, %v43
    %vm858 = vcmp.eq.s32.totalorder %v817, %v122
    %vm859 = vcmp.eq.s32.totalorder %v820, %v43
    %vm860 = vcmp.eq.s32.totalorder %v820, %v122
    %vm861 = vcmp.eq.s32.totalorder %v823, %v43
    %vm862 = vcmp.eq.s32.totalorder %v823, %v122
    %vm863 = vcmp.eq.s32.totalorder %v826, %v43
    %vm864 = vcmp.eq.s32.totalorder %v826, %v122
    %vm865 = vcmp.eq.s32.totalorder %v829, %v43
    %vm866 = vcmp.eq.s32.totalorder %v829, %v122
    %vm867 = vcmp.eq.s32.totalorder %v832, %v43
    %vm868 = vcmp.eq.s32.totalorder %v832, %v122
    %vm869 = vcmp.eq.s32.totalorder %v835, %v43
    %vm870 = vcmp.eq.s32.totalorder %v835, %v122
    %vm871 = vcmp.eq.s32.totalorder %v838, %v43
    %vm872 = vcmp.eq.s32.totalorder %v838, %v122
    %vm873 = vcmp.eq.s32.totalorder %v841, %v43
    %vm874 = vcmp.eq.s32.totalorder %v841, %v122
    %vm875 = vcmp.eq.s32.totalorder %v844, %v43
    %vm876 = vcmp.eq.s32.totalorder %v844, %v122
    %v877 = vsel %vm845, 1, 0
    %v878 = vsel %vm846, 1, 0
    %v879 = vsel %vm847, 1, 0
    %v880 = vsel %vm848, 1, 0
    %v881 = vsel %vm849, 1, 0
    %v882 = vsel %vm850, 1, 0
    %v883 = vsel %vm851, 1, 0
    %v884 = vsel %vm852, 1, 0
    %v885 = vsel %vm853, 1, 0
    %v886 = vsel %vm854, 1, 0
    %v887 = vsel %vm855, 1, 0
    %v888 = vsel %vm856, 1, 0
    %v889 = vsel %vm857, 1, 0
    %v890 = vsel %vm858, 1, 0
    %v891 = vsel %vm859, 1, 0
    %v892 = vsel %vm860, 1, 0
    %v893 = vsel %vm861, 1, 0
    %v894 = vsel %vm862, 1, 0
    %v895 = vsel %vm863, 1, 0
    %v896 = vsel %vm864, 1, 0
    %v897 = vsel %vm865, 1, 0
    %v898 = vsel %vm866, 1, 0
    %v899 = vsel %vm867, 1, 0
    %v900 = vsel %vm868, 1, 0
    %v901 = vsel %vm869, 1, 0
    %v902 = vsel %vm870, 1, 0
    %v903 = vsel %vm871, 1, 0
    %v904 = vsel %vm872, 1, 0
    %v905 = vsel %vm873, 1, 0
    %v906 = vsel %vm874, 1, 0
    %v907 = vsel %vm875, 1, 0
    %v908 = vsel %vm876, 1, 0
    %v909 = vcvt.s32.f32 %v877
    %v910 = vcvt.s32.f32 %v878
    %v911 = vcvt.s32.f32 %v879
    %v912 = vcvt.s32.f32 %v880
    %v913 = vcvt.s32.f32 %v881
    %v914 = vcvt.s32.f32 %v882
    %v915 = vcvt.s32.f32 %v883
    %v916 = vcvt.s32.f32 %v884
    %v917 = vcvt.s32.f32 %v885
    %v918 = vcvt.s32.f32 %v886
    %v919 = vcvt.s32.f32 %v887
    %v920 = vcvt.s32.f32 %v888
    %v921 = vcvt.s32.f32 %v889
    %v922 = vcvt.s32.f32 %v890
    %v923 = vcvt.s32.f32 %v891
    %v924 = vcvt.s32.f32 %v892
    %v925 = vcvt.s32.f32 %v893
    %v926 = vcvt.s32.f32 %v894
    %v927 = vcvt.s32.f32 %v895
    %v928 = vcvt.s32.f32 %v896
    %v929 = vcvt.s32.f32 %v897
    %v930 = vcvt.s32.f32 %v898
    %v931 = vcvt.s32.f32 %v899
    %v932 = vcvt.s32.f32 %v900
    %v933 = vcvt.s32.f32 %v901
    %v934 = vcvt.s32.f32 %v902
    %v935 = vcvt.s32.f32 %v903
    %v936 = vcvt.s32.f32 %v904
    %v937 = vcvt.s32.f32 %v905
    %v938 = vcvt.s32.f32 %v906
    %v939 = vcvt.s32.f32 %v907
    %v940 = vcvt.s32.f32 %v908
    %v941 = vld [vmem:[#allocation5] sm:$0xff]
    %v942 = vld [vmem:[#allocation5 + $0x8] sm:$0xff]
    %v943 = vld [vmem:[#allocation5 + $0x10] sm:$0xff]
    %v944 = vld [vmem:[#allocation5 + $0x18] sm:$0xff]
    %v945 = vld [vmem:[#allocation5 + $0x20] sm:$0xff]
    %v946 = vld [vmem:[#allocation5 + $0x28] sm:$0xff]
    %v947 = vld [vmem:[#allocation5 + $0x30] sm:$0xff]
    %v948 = vld [vmem:[#allocation5 + $0x38] sm:$0xff]
    %v949 = vld [vmem:[#allocation5 + $0x40] sm:$0xff]
    %v950 = vld [vmem:[#allocation5 + $0x48] sm:$0xff]
    %v951 = vld [vmem:[#allocation5 + $0x50] sm:$0xff]
    %v952 = vld [vmem:[#allocation5 + $0x58] sm:$0xff]
    %v953 = vld [vmem:[#allocation5 + $0x60] sm:$0xff]
    %v954 = vld [vmem:[#allocation5 + $0x68] sm:$0xff]
    %v955 = vld [vmem:[#allocation5 + $0x70] sm:$0xff]
    %v956 = vld [vmem:[#allocation5 + $0x78] sm:$0xff]
    %v957 = vld [vmem:[#allocation5 + $0x80] sm:$0xff]
    %v958 = vld [vmem:[#allocation5 + $0x88] sm:$0xff]
    %v959 = vld [vmem:[#allocation5 + $0x90] sm:$0xff]
    %v960 = vld [vmem:[#allocation5 + $0x98] sm:$0xff]
    %v961 = vld [vmem:[#allocation5 + $0xa0] sm:$0xff]
    %v962 = vld [vmem:[#allocation5 + $0xa8] sm:$0xff]
    %v963 = vld [vmem:[#allocation5 + $0xb0] sm:$0xff]
    %v964 = vld [vmem:[#allocation5 + $0xb8] sm:$0xff]
    %v965 = vld [vmem:[#allocation5 + $0xc0] sm:$0xff]
    %v966 = vld [vmem:[#allocation5 + $0xc8] sm:$0xff]
    %v967 = vld [vmem:[#allocation5 + $0xd0] sm:$0xff]
    %v968 = vld [vmem:[#allocation5 + $0xd8] sm:$0xff]
    %v969 = vld [vmem:[#allocation5 + $0xe0] sm:$0xff]
    %v970 = vld [vmem:[#allocation5 + $0xe8] sm:$0xff]
    %v971 = vld [vmem:[#allocation5 + $0xf0] sm:$0xff]
    %v972 = vld [vmem:[#allocation5 + $0xf8] sm:$0xff]
    %973 = vmatprep.subr.mxu0 0.0
    %974 = vmatpush1.msra.mxu0 %v941
    %975 = vmatprep.subr.mxu0 0.0
    %976 = vmatpush1.msra.mxu0 %v942
    %977 = vmatprep.subr.mxu0 0.0
    %978 = vmatpush1.msra.mxu0 %v943
    %979 = vmatprep.subr.mxu0 0.0
    %980 = vmatpush1.msra.mxu0 %v944
    %981 = vmatprep.subr.mxu0 0.0
    %982 = vmatpush1.msra.mxu0 %v945
    %983 = vmatprep.subr.mxu0 0.0
    %984 = vmatpush1.msra.mxu0 %v946
    %985 = vmatprep.subr.mxu0 0.0
    %986 = vmatpush1.msra.mxu0 %v947
    %987 = vmatprep.subr.mxu0 0.0
    %988 = vmatpush1.msra.mxu0 %v948
    %989 = vmatprep.subr.mxu0 0.0
    %990 = vmatpush1.msra.mxu0 %v949
    %991 = vmatprep.subr.mxu0 0.0
    %992 = vmatpush1.msra.mxu0 %v950
    %993 = vmatprep.subr.mxu0 0.0
    %994 = vmatpush1.msra.mxu0 %v951
    %995 = vmatprep.subr.mxu0 0.0
    %996 = vmatpush1.msra.mxu0 %v952
    %997 = vmatprep.subr.mxu0 0.0
    %998 = vmatpush1.msra.mxu0 %v953
    %999 = vmatprep.subr.mxu0 0.0
    %1000 = vmatpush1.msra.mxu0 %v954
    %1001 = vmatprep.subr.mxu0 0.0
    %1002 = vmatpush1.msra.mxu0 %v955
    %1003 = vmatprep.subr.mxu0 0.0
    %1004 = vmatpush1.msra.mxu0 %v956
    %1005 = vmatprep.subr.mxu0 0.0
    %1006 = vmatpush1.msra.mxu0 %v957
    %1007 = vmatprep.subr.mxu0 0.0
    %1008 = vmatpush1.msra.mxu0 %v958
    %1009 = vmatprep.subr.mxu0 0.0
    %1010 = vmatpush1.msra.mxu0 %v959
    %1011 = vmatprep.subr.mxu0 0.0
    %1012 = vmatpush1.msra.mxu0 %v960
    %1013 = vmatprep.subr.mxu0 0.0
    %1014 = vmatpush1.msra.mxu0 %v961
    %1015 = vmatprep.subr.mxu0 0.0
    %1016 = vmatpush1.msra.mxu0 %v962
    %1017 = vmatprep.subr.mxu0 0.0
    %1018 = vmatpush1.msra.mxu0 %v963
    %1019 = vmatprep.subr.mxu0 0.0
    %1020 = vmatpush1.msra.mxu0 %v964
    %1021 = vmatprep.subr.mxu0 0.0
    %1022 = vmatpush1.msra.mxu0 %v965
    %1023 = vmatprep.subr.mxu0 0.0
    %1024 = vmatpush1.msra.mxu0 %v966
    %1025 = vmatprep.subr.mxu0 0.0
    %1026 = vmatpush1.msra.mxu0 %v967
    %1027 = vmatprep.subr.mxu0 0.0
    %1028 = vmatpush1.msra.mxu0 %v968
    %1029 = vmatprep.subr.mxu0 0.0
    %1030 = vmatpush1.msra.mxu0 %v969
    %1031 = vmatprep.subr.mxu0 0.0
    %1032 = vmatpush1.msra.mxu0 %v970
    %1033 = vmatprep.subr.mxu0 0.0
    %1034 = vmatpush1.msra.mxu0 %v971
    %1035 = vmatprep.subr.mxu0 0.0
    %1036 = vmatpush1.msra.mxu0 %v972
    %1037 = vmatprep.mubr.f32.mxu0 %v910
    %1038 = vmatmul.mubr.f32.gmra.mrb[0].mxu0 %v909
    %v1039 = vpop.f32.mrb[0].mxu0
    %v1040 = vadd.f32 0.0, %v1039
    %v1041 = vpop.f32.mrb[0].mxu0
    %1042 = vmatprep.mubr.f32.mxu0 %v912
    %1043 = vmatmul.mubr.f32.gmra.mrb[0].mxu0 %v911
    %v1044 = vpop.f32.mrb[0].mxu0
    %v1045 = vadd.f32 0.0, %v1044
    %v1046 = vpop.f32.mrb[0].mxu0
    %1047 = vmatprep.mubr.f32.mxu0 %v914
    %1048 = vmatmul.mubr.f32.gmra.mrb[0].mxu0 %v913
    %v1049 = vpop.f32.mrb[0].mxu0
    %v1050 = vadd.f32 0.0, %v1049
    %v1051 = vpop.f32.mrb[0].mxu0
    %1052 = vmatprep.mubr.f32.mxu0 %v916
    %1053 = vmatmul.mubr.f32.gmra.mrb[0].mxu0 %v915
    %v1054 = vpop.f32.mrb[0].mxu0
    %v1055 = vadd.f32 0.0, %v1054
    %v1056 = vpop.f32.mrb[0].mxu0
    %1057 = vmatprep.mubr.f32.mxu0 %v918
    %1058 = vmatmul.mubr.f32.gmra.mrb[0].mxu0 %v917
    %v1059 = vpop.f32.mrb[0].mxu0
    %v1060 = vadd.f32 0.0, %v1059
    %v1061 = vpop.f32.mrb[0].mxu0
    %1062 = vmatprep.mubr.f32.mxu0 %v920
    %1063 = vmatmul.mubr.f32.gmra.mrb[0].mxu0 %v919
    %v1064 = vpop.f32.mrb[0].mxu0
    %v1065 = vadd.f32 0.0, %v1064
    %v1066 = vpop.f32.mrb[0].mxu0
    %1067 = vmatprep.mubr.f32.mxu0 %v922
    %1068 = vmatmul.mubr.f32.gmra.mrb[0].mxu0 %v921
    %v1069 = vpop.f32.mrb[0].mxu0
    %v1070 = vadd.f32 0.0, %v1069
    %v1071 = vpop.f32.mrb[0].mxu0
    %1072 = vmatprep.mubr.f32.mxu0 %v924
    %1073 = vmatmul.mubr.f32.gmra.mrb[0].mxu0 %v923
    %v1074 = vpop.f32.mrb[0].mxu0
    %v1075 = vadd.f32 0.0, %v1074
    %v1076 = vpop.f32.mrb[0].mxu0
    %1077 = vmatprep.mubr.f32.mxu0 %v926
    %1078 = vmatmul.mubr.f32.gmra.mrb[0].mxu0 %v925
    %v1079 = vpop.f32.mrb[0].mxu0
    %v1080 = vadd.f32 0.0, %v1079
    %v1081 = vpop.f32.mrb[0].mxu0
    %1082 = vmatprep.mubr.f32.mxu0 %v928
    %1083 = vmatmul.mubr.f32.gmra.mrb[0].mxu0 %v927
    %v1084 = vpop.f32.mrb[0].mxu0
    %v1085 = vadd.f32 0.0, %v1084
    %v1086 = vpop.f32.mrb[0].mxu0
    %1087 = vmatprep.mubr.f32.mxu0 %v930
    %1088 = vmatmul.mubr.f32.gmra.mrb[0].mxu0 %v929
    %v1089 = vpop.f32.mrb[0].mxu0
    %v1090 = vadd.f32 0.0, %v1089
    %v1091 = vpop.f32.mrb[0].mxu0
    %1092 = vmatprep.mubr.f32.mxu0 %v932
    %1093 = vmatmul.mubr.f32.gmra.mrb[0].mxu0 %v931
    %v1094 = vpop.f32.mrb[0].mxu0
    %v1095 = vadd.f32 0.0, %v1094
    %v1096 = vpop.f32.mrb[0].mxu0
    %1097 = vmatprep.mubr.f32.mxu0 %v934
    %1098 = vmatmul.mubr.f32.gmra.mrb[0].mxu0 %v933
    %v1099 = vpop.f32.mrb[0].mxu0
    %v1100 = vadd.f32 0.0, %v1099
    %v1101 = vpop.f32.mrb[0].mxu0
    %1102 = vmatprep.mubr.f32.mxu0 %v936
    %1103 = vmatmul.mubr.f32.gmra.mrb[0].mxu0 %v935
    %v1104 = vpop.f32.mrb[0].mxu0
    %v1105 = vadd.f32 0.0, %v1104
    %v1106 = vpop.f32.mrb[0].mxu0
    %1107 = vmatprep.mubr.f32.mxu0 %v938
    %1108 = vmatmul.mubr.f32.gmra.mrb[0].mxu0 %v937
    %v1109 = vpop.f32.mrb[0].mxu0
    %v1110 = vadd.f32 0.0, %v1109
    %v1111 = vpop.f32.mrb[0].mxu0
    %1112 = vmatprep.mubr.f32.mxu0 %v940
    %1113 = vmatmul.mubr.f32.gmra.mrb[0].mxu0 %v939
    %v1114 = vpop.f32.mrb[0].mxu0
    %v1115 = vadd.f32 0.0, %v1114
    %v1116 = vpop.f32.mrb[0].mxu0
    %1117 = vdwg.mxu0
    %1118 = vst [vmem:[#allocation7 + $0x100] sm:$0xff] %v1040
    %1119 = vst [vmem:[#allocation7 + $0x108] sm:$0xff] %v1045
    %1120 = vst [vmem:[#allocation7 + $0x110] sm:$0xff] %v1050
    %1121 = vst [vmem:[#allocation7 + $0x118] sm:$0xff] %v1055
    %1122 = vst [vmem:[#allocation7 + $0x120] sm:$0xff] %v1060
    %1123 = vst [vmem:[#allocation7 + $0x128] sm:$0xff] %v1065
    %1124 = vst [vmem:[#allocation7 + $0x130] sm:$0xff] %v1070
    %1125 = vst [vmem:[#allocation7 + $0x138] sm:$0xff] %v1075
    %1126 = vst [vmem:[#allocation7 + $0x140] sm:$0xff] %v1080
    %1127 = vst [vmem:[#allocation7 + $0x148] sm:$0xff] %v1085
    %1128 = vst [vmem:[#allocation7 + $0x150] sm:$0xff] %v1090
    %1129 = vst [vmem:[#allocation7 + $0x158] sm:$0xff] %v1095
    %1130 = vst [vmem:[#allocation7 + $0x160] sm:$0xff] %v1100
    %1131 = vst [vmem:[#allocation7 + $0x168] sm:$0xff] %v1105
    %1132 = vst [vmem:[#allocation7 + $0x170] sm:$0xff] %v1110
    %1133 = vst [vmem:[#allocation7 + $0x178] sm:$0xff] %v1115
    %1134 = vset.pattern.permute.xlu0 3
    %1135 = vperm.xlu0 %1134, %v106
    %v1136 = vpop.permute.xlu0 %1135
    %1137 = vset.pattern.permute.xlu0 3
    %1138 = vperm.xlu0 %1137, %v107
    %v1139 = vpop.permute.xlu0 %1138
    %1140 = vset.pattern.permute.xlu0 3
    %1141 = vperm.xlu0 %1140, %v108
    %v1142 = vpop.permute.xlu0 %1141
    %1143 = vset.pattern.permute.xlu0 3
    %1144 = vperm.xlu0 %1143, %v109
    %v1145 = vpop.permute.xlu0 %1144
    %1146 = vset.pattern.permute.xlu0 3
    %1147 = vperm.xlu0 %1146, %v110
    %v1148 = vpop.permute.xlu0 %1147
    %1149 = vset.pattern.permute.xlu0 3
    %1150 = vperm.xlu0 %1149, %v111
    %v1151 = vpop.permute.xlu0 %1150
    %1152 = vset.pattern.permute.xlu0 3
    %1153 = vperm.xlu0 %1152, %v112
    %v1154 = vpop.permute.xlu0 %1153
    %1155 = vset.pattern.permute.xlu0 3
    %1156 = vperm.xlu0 %1155, %v113
    %v1157 = vpop.permute.xlu0 %1156
    %1158 = vset.pattern.permute.xlu0 3
    %1159 = vperm.xlu0 %1158, %v114
    %v1160 = vpop.permute.xlu0 %1159
    %1161 = vset.pattern.permute.xlu0 3
    %1162 = vperm.xlu0 %1161, %v115
    %v1163 = vpop.permute.xlu0 %1162
    %1164 = vset.pattern.permute.xlu0 3
    %1165 = vperm.xlu0 %1164, %v116
    %v1166 = vpop.permute.xlu0 %1165
    %1167 = vset.pattern.permute.xlu0 3
    %1168 = vperm.xlu0 %1167, %v117
    %v1169 = vpop.permute.xlu0 %1168
    %1170 = vset.pattern.permute.xlu0 3
    %1171 = vperm.xlu0 %1170, %v118
    %v1172 = vpop.permute.xlu0 %1171
    %1173 = vset.pattern.permute.xlu0 3
    %1174 = vperm.xlu0 %1173, %v119
    %v1175 = vpop.permute.xlu0 %1174
    %1176 = vset.pattern.permute.xlu0 3
    %1177 = vperm.xlu0 %1176, %v120
    %v1178 = vpop.permute.xlu0 %1177
    %1179 = vset.pattern.permute.xlu0 3
    %1180 = vperm.xlu0 %1179, %v121
    %v1181 = vpop.permute.xlu0 %1180
    %vm1182 = vcmp.eq.s32.totalorder %v1136, %v43
    %vm1183 = vcmp.eq.s32.totalorder %v1136, %v122
    %vm1184 = vcmp.eq.s32.totalorder %v1139, %v43
    %vm1185 = vcmp.eq.s32.totalorder %v1139, %v122
    %vm1186 = vcmp.eq.s32.totalorder %v1142, %v43
    %vm1187 = vcmp.eq.s32.totalorder %v1142, %v122
    %vm1188 = vcmp.eq.s32.totalorder %v1145, %v43
    %vm1189 = vcmp.eq.s32.totalorder %v1145, %v122
    %vm1190 = vcmp.eq.s32.totalorder %v1148, %v43
    %vm1191 = vcmp.eq.s32.totalorder %v1148, %v122
    %vm1192 = vcmp.eq.s32.totalorder %v1151, %v43
    %vm1193 = vcmp.eq.s32.totalorder %v1151, %v122
    %vm1194 = vcmp.eq.s32.totalorder %v1154, %v43
    %vm1195 = vcmp.eq.s32.totalorder %v1154, %v122
    %vm1196 = vcmp.eq.s32.totalorder %v1157, %v43
    %vm1197 = vcmp.eq.s32.totalorder %v1157, %v122
    %vm1198 = vcmp.eq.s32.totalorder %v1160, %v43
    %vm1199 = vcmp.eq.s32.totalorder %v1160, %v122
    %vm1200 = vcmp.eq.s32.totalorder %v1163, %v43
    %vm1201 = vcmp.eq.s32.totalorder %v1163, %v122
    %vm1202 = vcmp.eq.s32.totalorder %v1166, %v43
    %vm1203 = vcmp.eq.s32.totalorder %v1166, %v122
    %vm1204 = vcmp.eq.s32.totalorder %v1169, %v43
    %vm1205 = vcmp.eq.s32.totalorder %v1169, %v122
    %vm1206 = vcmp.eq.s32.totalorder %v1172, %v43
    %vm1207 = vcmp.eq.s32.totalorder %v1172, %v122
    %vm1208 = vcmp.eq.s32.totalorder %v1175, %v43
    %vm1209 = vcmp.eq.s32.totalorder %v1175, %v122
    %vm1210 = vcmp.eq.s32.totalorder %v1178, %v43
    %vm1211 = vcmp.eq.s32.totalorder %v1178, %v122
    %vm1212 = vcmp.eq.s32.totalorder %v1181, %v43
    %vm1213 = vcmp.eq.s32.totalorder %v1181, %v122
    %v1214 = vsel %vm1182, 1, 0
    %v1215 = vsel %vm1183, 1, 0
    %v1216 = vsel %vm1184, 1, 0
    %v1217 = vsel %vm1185, 1, 0
    %v1218 = vsel %vm1186, 1, 0
    %v1219 = vsel %vm1187, 1, 0
    %v1220 = vsel %vm1188, 1, 0
    %v1221 = vsel %vm1189, 1, 0
    %v1222 = vsel %vm1190, 1, 0
    %v1223 = vsel %vm1191, 1, 0
    %v1224 = vsel %vm1192, 1, 0
    %v1225 = vsel %vm1193, 1, 0
    %v1226 = vsel %vm1194, 1, 0
    %v1227 = vsel %vm1195, 1, 0
    %v1228 = vsel %vm1196, 1, 0
    %v1229 = vsel %vm1197, 1, 0
    %v1230 = vsel %vm1198, 1, 0
    %v1231 = vsel %vm1199, 1, 0
    %v1232 = vsel %vm1200, 1, 0
    %v1233 = vsel %vm1201, 1, 0
    %v1234 = vsel %vm1202, 1, 0
    %v1235 = vsel %vm1203, 1, 0
    %v1236 = vsel %vm1204, 1, 0
    %v1237 = vsel %vm1205, 1, 0
    %v1238 = vsel %vm1206, 1, 0
    %v1239 = vsel %vm1207, 1, 0
    %v1240 = vsel %vm1208, 1, 0
    %v1241 = vsel %vm1209, 1, 0
    %v1242 = vsel %vm1210, 1, 0
    %v1243 = vsel %vm1211, 1, 0
    %v1244 = vsel %vm1212, 1, 0
    %v1245 = vsel %vm1213, 1, 0
    %v1246 = vcvt.s32.f32 %v1214
    %v1247 = vcvt.s32.f32 %v1215
    %v1248 = vcvt.s32.f32 %v1216
    %v1249 = vcvt.s32.f32 %v1217
    %v1250 = vcvt.s32.f32 %v1218
    %v1251 = vcvt.s32.f32 %v1219
    %v1252 = vcvt.s32.f32 %v1220
    %v1253 = vcvt.s32.f32 %v1221
    %v1254 = vcvt.s32.f32 %v1222
    %v1255 = vcvt.s32.f32 %v1223
    %v1256 = vcvt.s32.f32 %v1224
    %v1257 = vcvt.s32.f32 %v1225
    %v1258 = vcvt.s32.f32 %v1226
    %v1259 = vcvt.s32.f32 %v1227
    %v1260 = vcvt.s32.f32 %v1228
    %v1261 = vcvt.s32.f32 %v1229
    %v1262 = vcvt.s32.f32 %v1230
    %v1263 = vcvt.s32.f32 %v1231
    %v1264 = vcvt.s32.f32 %v1232
    %v1265 = vcvt.s32.f32 %v1233
    %v1266 = vcvt.s32.f32 %v1234
    %v1267 = vcvt.s32.f32 %v1235
    %v1268 = vcvt.s32.f32 %v1236
    %v1269 = vcvt.s32.f32 %v1237
    %v1270 = vcvt.s32.f32 %v1238
    %v1271 = vcvt.s32.f32 %v1239
    %v1272 = vcvt.s32.f32 %v1240
    %v1273 = vcvt.s32.f32 %v1241
    %v1274 = vcvt.s32.f32 %v1242
    %v1275 = vcvt.s32.f32 %v1243
    %v1276 = vcvt.s32.f32 %v1244
    %v1277 = vcvt.s32.f32 %v1245
    %v1278 = vld [vmem:[#allocation5] sm:$0xff]
    %v1279 = vld [vmem:[#allocation5 + $0x8] sm:$0xff]
    %v1280 = vld [vmem:[#allocation5 + $0x10] sm:$0xff]
    %v1281 = vld [vmem:[#allocation5 + $0x18] sm:$0xff]
    %v1282 = vld [vmem:[#allocation5 + $0x20] sm:$0xff]
    %v1283 = vld [vmem:[#allocation5 + $0x28] sm:$0xff]
    %v1284 = vld [vmem:[#allocation5 + $0x30] sm:$0xff]
    %v1285 = vld [vmem:[#allocation5 + $0x38] sm:$0xff]
    %v1286 = vld [vmem:[#allocation5 + $0x40] sm:$0xff]
    %v1287 = vld [vmem:[#allocation5 + $0x48] sm:$0xff]
    %v1288 = vld [vmem:[#allocation5 + $0x50] sm:$0xff]
    %v1289 = vld [vmem:[#allocation5 + $0x58] sm:$0xff]
    %v1290 = vld [vmem:[#allocation5 + $0x60] sm:$0xff]
    %v1291 = vld [vmem:[#allocation5 + $0x68] sm:$0xff]
    %v1292 = vld [vmem:[#allocation5 + $0x70] sm:$0xff]
    %v1293 = vld [vmem:[#allocation5 + $0x78] sm:$0xff]
    %v1294 = vld [vmem:[#allocation5 + $0x80] sm:$0xff]
    %v1295 = vld [vmem:[#allocation5 + $0x88] sm:$0xff]
    %v1296 = vld [vmem:[#allocation5 + $0x90] sm:$0xff]
    %v1297 = vld [vmem:[#allocation5 + $0x98] sm:$0xff]
    %v1298 = vld [vmem:[#allocation5 + $0xa0] sm:$0xff]
    %v1299 = vld [vmem:[#allocation5 + $0xa8] sm:$0xff]
    %v1300 = vld [vmem:[#allocation5 + $0xb0] sm:$0xff]
    %v1301 = vld [vmem:[#allocation5 + $0xb8] sm:$0xff]
    %v1302 = vld [vmem:[#allocation5 + $0xc0] sm:$0xff]
    %v1303 = vld [vmem:[#allocation5 + $0xc8] sm:$0xff]
    %v1304 = vld [vmem:[#allocation5 + $0xd0] sm:$0xff]
    %v1305 = vld [vmem:[#allocation5 + $0xd8] sm:$0xff]
    %v1306 = vld [vmem:[#allocation5 + $0xe0] sm:$0xff]
    %v1307 = vld [vmem:[#allocation5 + $0xe8] sm:$0xff]
    %v1308 = vld [vmem:[#allocation5 + $0xf0] sm:$0xff]
    %v1309 = vld [vmem:[#allocation5 + $0xf8] sm:$0xff]
    %1310 = vmatprep.subr.mxu0 0.0
    %1311 = vmatpush1.msra.mxu0 %v1278
    %1312 = vmatprep.subr.mxu0 0.0
    %1313 = vmatpush1.msra.mxu0 %v1279
    %1314 = vmatprep.subr.mxu0 0.0
    %1315 = vmatpush1.msra.mxu0 %v1280
    %1316 = vmatprep.subr.mxu0 0.0
    %1317 = vmatpush1.msra.mxu0 %v1281
    %1318 = vmatprep.subr.mxu0 0.0
    %1319 = vmatpush1.msra.mxu0 %v1282
    %1320 = vmatprep.subr.mxu0 0.0
    %1321 = vmatpush1.msra.mxu0 %v1283
    %1322 = vmatprep.subr.mxu0 0.0
    %1323 = vmatpush1.msra.mxu0 %v1284
    %1324 = vmatprep.subr.mxu0 0.0
    %1325 = vmatpush1.msra.mxu0 %v1285
    %1326 = vmatprep.subr.mxu0 0.0
    %1327 = vmatpush1.msra.mxu0 %v1286
    %1328 = vmatprep.subr.mxu0 0.0
    %1329 = vmatpush1.msra.mxu0 %v1287
    %1330 = vmatprep.subr.mxu0 0.0
    %1331 = vmatpush1.msra.mxu0 %v1288
    %1332 = vmatprep.subr.mxu0 0.0
    %1333 = vmatpush1.msra.mxu0 %v1289
    %1334 = vmatprep.subr.mxu0 0.0
    %1335 = vmatpush1.msra.mxu0 %v1290
    %1336 = vmatprep.subr.mxu0 0.0
    %1337 = vmatpush1.msra.mxu0 %v1291
    %1338 = vmatprep.subr.mxu0 0.0
    %1339 = vmatpush1.msra.mxu0 %v1292
    %1340 = vmatprep.subr.mxu0 0.0
    %1341 = vmatpush1.msra.mxu0 %v1293
    %1342 = vmatprep.subr.mxu0 0.0
    %1343 = vmatpush1.msra.mxu0 %v1294
    %1344 = vmatprep.subr.mxu0 0.0
    %1345 = vmatpush1.msra.mxu0 %v1295
    %1346 = vmatprep.subr.mxu0 0.0
    %1347 = vmatpush1.msra.mxu0 %v1296
    %1348 = vmatprep.subr.mxu0 0.0
    %1349 = vmatpush1.msra.mxu0 %v1297
    %1350 = vmatprep.subr.mxu0 0.0
    %1351 = vmatpush1.msra.mxu0 %v1298
    %1352 = vmatprep.subr.mxu0 0.0
    %1353 = vmatpush1.msra.mxu0 %v1299
    %1354 = vmatprep.subr.mxu0 0.0
    %1355 = vmatpush1.msra.mxu0 %v1300
    %1356 = vmatprep.subr.mxu0 0.0
    %1357 = vmatpush1.msra.mxu0 %v1301
    %1358 = vmatprep.subr.mxu0 0.0
    %1359 = vmatpush1.msra.mxu0 %v1302
    %1360 = vmatprep.subr.mxu0 0.0
    %1361 = vmatpush1.msra.mxu0 %v1303
    %1362 = vmatprep.subr.mxu0 0.0
    %1363 = vmatpush1.msra.mxu0 %v1304
    %1364 = vmatprep.subr.mxu0 0.0
    %1365 = vmatpush1.msra.mxu0 %v1305
    %1366 = vmatprep.subr.mxu0 0.0
    %1367 = vmatpush1.msra.mxu0 %v1306
    %1368 = vmatprep.subr.mxu0 0.0
    %1369 = vmatpush1.msra.mxu0 %v1307
    %1370 = vmatprep.subr.mxu0 0.0
    %1371 = vmatpush1.msra.mxu0 %v1308
    %1372 = vmatprep.subr.mxu0 0.0
    %1373 = vmatpush1.msra.mxu0 %v1309
    %1374 = vmatprep.mubr.f32.mxu0 %v1247
    %1375 = vmatmul.mubr.f32.gmra.mrb[0].mxu0 %v1246
    %v1376 = vpop.f32.mrb[0].mxu0
    %v1377 = vadd.f32 0.0, %v1376
    %v1378 = vpop.f32.mrb[0].mxu0
    %1379 = vmatprep.mubr.f32.mxu0 %v1249
    %1380 = vmatmul.mubr.f32.gmra.mrb[0].mxu0 %v1248
    %v1381 = vpop.f32.mrb[0].mxu0
    %v1382 = vadd.f32 0.0, %v1381
    %v1383 = vpop.f32.mrb[0].mxu0
    %1384 = vmatprep.mubr.f32.mxu0 %v1251
    %1385 = vmatmul.mubr.f32.gmra.mrb[0].mxu0 %v1250
    %v1386 = vpop.f32.mrb[0].mxu0
    %v1387 = vadd.f32 0.0, %v1386
    %v1388 = vpop.f32.mrb[0].mxu0
    %1389 = vmatprep.mubr.f32.mxu0 %v1253
    %1390 = vmatmul.mubr.f32.gmra.mrb[0].mxu0 %v1252
    %v1391 = vpop.f32.mrb[0].mxu0
    %v1392 = vadd.f32 0.0, %v1391
    %v1393 = vpop.f32.mrb[0].mxu0
    %1394 = vmatprep.mubr.f32.mxu0 %v1255
    %1395 = vmatmul.mubr.f32.gmra.mrb[0].mxu0 %v1254
    %v1396 = vpop.f32.mrb[0].mxu0
    %v1397 = vadd.f32 0.0, %v1396
    %v1398 = vpop.f32.mrb[0].mxu0
    %1399 = vmatprep.mubr.f32.mxu0 %v1257
    %1400 = vmatmul.mubr.f32.gmra.mrb[0].mxu0 %v1256
    %v1401 = vpop.f32.mrb[0].mxu0
    %v1402 = vadd.f32 0.0, %v1401
    %v1403 = vpop.f32.mrb[0].mxu0
    %1404 = vmatprep.mubr.f32.mxu0 %v1259
    %1405 = vmatmul.mubr.f32.gmra.mrb[0].mxu0 %v1258
    %v1406 = vpop.f32.mrb[0].mxu0
    %v1407 = vadd.f32 0.0, %v1406
    %v1408 = vpop.f32.mrb[0].mxu0
    %1409 = vmatprep.mubr.f32.mxu0 %v1261
    %1410 = vmatmul.mubr.f32.gmra.mrb[0].mxu0 %v1260
    %v1411 = vpop.f32.mrb[0].mxu0
    %v1412 = vadd.f32 0.0, %v1411
    %v1413 = vpop.f32.mrb[0].mxu0
    %1414 = vmatprep.mubr.f32.mxu0 %v1263
    %1415 = vmatmul.mubr.f32.gmra.mrb[0].mxu0 %v1262
    %v1416 = vpop.f32.mrb[0].mxu0
    %v1417 = vadd.f32 0.0, %v1416
    %v1418 = vpop.f32.mrb[0].mxu0
    %1419 = vmatprep.mubr.f32.mxu0 %v1265
    %1420 = vmatmul.mubr.f32.gmra.mrb[0].mxu0 %v1264
    %v1421 = vpop.f32.mrb[0].mxu0
    %v1422 = vadd.f32 0.0, %v1421
    %v1423 = vpop.f32.mrb[0].mxu0
    %1424 = vmatprep.mubr.f32.mxu0 %v1267
    %1425 = vmatmul.mubr.f32.gmra.mrb[0].mxu0 %v1266
    %v1426 = vpop.f32.mrb[0].mxu0
    %v1427 = vadd.f32 0.0, %v1426
    %v1428 = vpop.f32.mrb[0].mxu0
    %1429 = vmatprep.mubr.f32.mxu0 %v1269
    %1430 = vmatmul.mubr.f32.gmra.mrb[0].mxu0 %v1268
    %v1431 = vpop.f32.mrb[0].mxu0
    %v1432 = vadd.f32 0.0, %v1431
    %v1433 = vpop.f32.mrb[0].mxu0
    %1434 = vmatprep.mubr.f32.mxu0 %v1271
    %1435 = vmatmul.mubr.f32.gmra.mrb[0].mxu0 %v1270
    %v1436 = vpop.f32.mrb[0].mxu0
    %v1437 = vadd.f32 0.0, %v1436
    %v1438 = vpop.f32.mrb[0].mxu0
    %1439 = vmatprep.mubr.f32.mxu0 %v1273
    %1440 = vmatmul.mubr.f32.gmra.mrb[0].mxu0 %v1272
    %v1441 = vpop.f32.mrb[0].mxu0
    %v1442 = vadd.f32 0.0, %v1441
    %v1443 = vpop.f32.mrb[0].mxu0
    %1444 = vmatprep.mubr.f32.mxu0 %v1275
    %1445 = vmatmul.mubr.f32.gmra.mrb[0].mxu0 %v1274
    %v1446 = vpop.f32.mrb[0].mxu0
    %v1447 = vadd.f32 0.0, %v1446
    %v1448 = vpop.f32.mrb[0].mxu0
    %1449 = vmatprep.mubr.f32.mxu0 %v1277
    %1450 = vmatmul.mubr.f32.gmra.mrb[0].mxu0 %v1276
    %v1451 = vpop.f32.mrb[0].mxu0
    %v1452 = vadd.f32 0.0, %v1451
    %v1453 = vpop.f32.mrb[0].mxu0
    %1454 = vdwg.mxu0
    %1455 = vst [vmem:[#allocation7 + $0x180] sm:$0xff] %v1377
    %1456 = vst [vmem:[#allocation7 + $0x188] sm:$0xff] %v1382
    %1457 = vst [vmem:[#allocation7 + $0x190] sm:$0xff] %v1387
    %1458 = vst [vmem:[#allocation7 + $0x198] sm:$0xff] %v1392
    %1459 = vst [vmem:[#allocation7 + $0x1a0] sm:$0xff] %v1397
    %1460 = vst [vmem:[#allocation7 + $0x1a8] sm:$0xff] %v1402
    %1461 = vst [vmem:[#allocation7 + $0x1b0] sm:$0xff] %v1407
    %1462 = vst [vmem:[#allocation7 + $0x1b8] sm:$0xff] %v1412
    %1463 = vst [vmem:[#allocation7 + $0x1c0] sm:$0xff] %v1417
    %1464 = vst [vmem:[#allocation7 + $0x1c8] sm:$0xff] %v1422
    %1465 = vst [vmem:[#allocation7 + $0x1d0] sm:$0xff] %v1427
    %1466 = vst [vmem:[#allocation7 + $0x1d8] sm:$0xff] %v1432
    %1467 = vst [vmem:[#allocation7 + $0x1e0] sm:$0xff] %v1437
    %1468 = vst [vmem:[#allocation7 + $0x1e8] sm:$0xff] %v1442
    %1469 = vst [vmem:[#allocation7 + $0x1f0] sm:$0xff] %v1447
    %1470 = vst [vmem:[#allocation7 + $0x1f8] sm:$0xff] %v1452
    %1471 = vset.pattern.permute.xlu0 4
    %1472 = vperm.xlu0 %1471, %v106
    %v1473 = vpop.permute.xlu0 %1472
    %1474 = vset.pattern.permute.xlu0 4
    %1475 = vperm.xlu0 %1474, %v107
    %v1476 = vpop.permute.xlu0 %1475
    %1477 = vset.pattern.permute.xlu0 4
    %1478 = vperm.xlu0 %1477, %v108
    %v1479 = vpop.permute.xlu0 %1478
    %1480 = vset.pattern.permute.xlu0 4
    %1481 = vperm.xlu0 %1480, %v109
    %v1482 = vpop.permute.xlu0 %1481
    %1483 = vset.pattern.permute.xlu0 4
    %1484 = vperm.xlu0 %1483, %v110
    %v1485 = vpop.permute.xlu0 %1484
    %1486 = vset.pattern.permute.xlu0 4
    %1487 = vperm.xlu0 %1486, %v111
    %v1488 = vpop.permute.xlu0 %1487
    %1489 = vset.pattern.permute.xlu0 4
    %1490 = vperm.xlu0 %1489, %v112
    %v1491 = vpop.permute.xlu0 %1490
    %1492 = vset.pattern.permute.xlu0 4
    %1493 = vperm.xlu0 %1492, %v113
    %v1494 = vpop.permute.xlu0 %1493
    %1495 = vset.pattern.permute.xlu0 4
    %1496 = vperm.xlu0 %1495, %v114
    %v1497 = vpop.permute.xlu0 %1496
    %1498 = vset.pattern.permute.xlu0 4
    %1499 = vperm.xlu0 %1498, %v115
    %v1500 = vpop.permute.xlu0 %1499
    %1501 = vset.pattern.permute.xlu0 4
    %1502 = vperm.xlu0 %1501, %v116
    %v1503 = vpop.permute.xlu0 %1502
    %1504 = vset.pattern.permute.xlu0 4
    %1505 = vperm.xlu0 %1504, %v117
    %v1506 = vpop.permute.xlu0 %1505
    %1507 = vset.pattern.permute.xlu0 4
    %1508 = vperm.xlu0 %1507, %v118
    %v1509 = vpop.permute.xlu0 %1508
    %1510 = vset.pattern.permute.xlu0 4
    %1511 = vperm.xlu0 %1510, %v119
    %v1512 = vpop.permute.xlu0 %1511
    %1513 = vset.pattern.permute.xlu0 4
    %1514 = vperm.xlu0 %1513, %v120
    %v1515 = vpop.permute.xlu0 %1514
    %1516 = vset.pattern.permute.xlu0 4
    %1517 = vperm.xlu0 %1516, %v121
    %v1518 = vpop.permute.xlu0 %1517
    %vm1519 = vcmp.eq.s32.totalorder %v1473, %v43
    %vm1520 = vcmp.eq.s32.totalorder %v1473, %v122
    %vm1521 = vcmp.eq.s32.totalorder %v1476, %v43
    %vm1522 = vcmp.eq.s32.totalorder %v1476, %v122
    %vm1523 = vcmp.eq.s32.totalorder %v1479, %v43
    %vm1524 = vcmp.eq.s32.totalorder %v1479, %v122
    %vm1525 = vcmp.eq.s32.totalorder %v1482, %v43
    %vm1526 = vcmp.eq.s32.totalorder %v1482, %v122
    %vm1527 = vcmp.eq.s32.totalorder %v1485, %v43
    %vm1528 = vcmp.eq.s32.totalorder %v1485, %v122
    %vm1529 = vcmp.eq.s32.totalorder %v1488, %v43
    %vm1530 = vcmp.eq.s32.totalorder %v1488, %v122
    %vm1531 = vcmp.eq.s32.totalorder %v1491, %v43
    %vm1532 = vcmp.eq.s32.totalorder %v1491, %v122
    %vm1533 = vcmp.eq.s32.totalorder %v1494, %v43
    %vm1534 = vcmp.eq.s32.totalorder %v1494, %v122
    %vm1535 = vcmp.eq.s32.totalorder %v1497, %v43
    %vm1536 = vcmp.eq.s32.totalorder %v1497, %v122
    %vm1537 = vcmp.eq.s32.totalorder %v1500, %v43
    %vm1538 = vcmp.eq.s32.totalorder %v1500, %v122
    %vm1539 = vcmp.eq.s32.totalorder %v1503, %v43
    %vm1540 = vcmp.eq.s32.totalorder %v1503, %v122
    %vm1541 = vcmp.eq.s32.totalorder %v1506, %v43
    %vm1542 = vcmp.eq.s32.totalorder %v1506, %v122
    %vm1543 = vcmp.eq.s32.totalorder %v1509, %v43
    %vm1544 = vcmp.eq.s32.totalorder %v1509, %v122
    %vm1545 = vcmp.eq.s32.totalorder %v1512, %v43
    %vm1546 = vcmp.eq.s32.totalorder %v1512, %v122
    %vm1547 = vcmp.eq.s32.totalorder %v1515, %v43
    %vm1548 = vcmp.eq.s32.totalorder %v1515, %v122
    %vm1549 = vcmp.eq.s32.totalorder %v1518, %v43
    %vm1550 = vcmp.eq.s32.totalorder %v1518, %v122
    %v1551 = vsel %vm1519, 1, 0
    %v1552 = vsel %vm1520, 1, 0
    %v1553 = vsel %vm1521, 1, 0
    %v1554 = vsel %vm1522, 1, 0
    %v1555 = vsel %vm1523, 1, 0
    %v1556 = vsel %vm1524, 1, 0
    %v1557 = vsel %vm1525, 1, 0
    %v1558 = vsel %vm1526, 1, 0
    %v1559 = vsel %vm1527, 1, 0
    %v1560 = vsel %vm1528, 1, 0
    %v1561 = vsel %vm1529, 1, 0
    %v1562 = vsel %vm1530, 1, 0
    %v1563 = vsel %vm1531, 1, 0
    %v1564 = vsel %vm1532, 1, 0
    %v1565 = vsel %vm1533, 1, 0
    %v1566 = vsel %vm1534, 1, 0
    %v1567 = vsel %vm1535, 1, 0
    %v1568 = vsel %vm1536, 1, 0
    %v1569 = vsel %vm1537, 1, 0
    %v1570 = vsel %vm1538, 1, 0
    %v1571 = vsel %vm1539, 1, 0
    %v1572 = vsel %vm1540, 1, 0
    %v1573 = vsel %vm1541, 1, 0
    %v1574 = vsel %vm1542, 1, 0
    %v1575 = vsel %vm1543, 1, 0
    %v1576 = vsel %vm1544, 1, 0
    %v1577 = vsel %vm1545, 1, 0
    %v1578 = vsel %vm1546, 1, 0
    %v1579 = vsel %vm1547, 1, 0
    %v1580 = vsel %vm1548, 1, 0
    %v1581 = vsel %vm1549, 1, 0
    %v1582 = vsel %vm1550, 1, 0
    %v1583 = vcvt.s32.f32 %v1551
    %v1584 = vcvt.s32.f32 %v1552
    %v1585 = vcvt.s32.f32 %v1553
    %v1586 = vcvt.s32.f32 %v1554
    %v1587 = vcvt.s32.f32 %v1555
    %v1588 = vcvt.s32.f32 %v1556
    %v1589 = vcvt.s32.f32 %v1557
    %v1590 = vcvt.s32.f32 %v1558
    %v1591 = vcvt.s32.f32 %v1559
    %v1592 = vcvt.s32.f32 %v1560
    %v1593 = vcvt.s32.f32 %v1561
    %v1594 = vcvt.s32.f32 %v1562
    %v1595 = vcvt.s32.f32 %v1563
    %v1596 = vcvt.s32.f32 %v1564
    %v1597 = vcvt.s32.f32 %v1565
    %v1598 = vcvt.s32.f32 %v1566
    %v1599 = vcvt.s32.f32 %v1567
    %v1600 = vcvt.s32.f32 %v1568
    %v1601 = vcvt.s32.f32 %v1569
    %v1602 = vcvt.s32.f32 %v1570
    %v1603 = vcvt.s32.f32 %v1571
    %v1604 = vcvt.s32.f32 %v1572
    %v1605 = vcvt.s32.f32 %v1573
    %v1606 = vcvt.s32.f32 %v1574
    %v1607 = vcvt.s32.f32 %v1575
    %v1608 = vcvt.s32.f32 %v1576
    %v1609 = vcvt.s32.f32 %v1577
    %v1610 = vcvt.s32.f32 %v1578
    %v1611 = vcvt.s32.f32 %v1579
    %v1612 = vcvt.s32.f32 %v1580
    %v1613 = vcvt.s32.f32 %v1581
    %v1614 = vcvt.s32.f32 %v1582
    %v1615 = vld [vmem:[#allocation5] sm:$0xff]
    %v1616 = vld [vmem:[#allocation5 + $0x8] sm:$0xff]
    %v1617 = vld [vmem:[#allocation5 + $0x10] sm:$0xff]
    %v1618 = vld [vmem:[#allocation5 + $0x18] sm:$0xff]
    %v1619 = vld [vmem:[#allocation5 + $0x20] sm:$0xff]
    %v1620 = vld [vmem:[#allocation5 + $0x28] sm:$0xff]
    %v1621 = vld [vmem:[#allocation5 + $0x30] sm:$0xff]
    %v1622 = vld [vmem:[#allocation5 + $0x38] sm:$0xff]
    %v1623 = vld [vmem:[#allocation5 + $0x40] sm:$0xff]
    %v1624 = vld [vmem:[#allocation5 + $0x48] sm:$0xff]
    %v1625 = vld [vmem:[#allocation5 + $0x50] sm:$0xff]
    %v1626 = vld [vmem:[#allocation5 + $0x58] sm:$0xff]
    %v1627 = vld [vmem:[#allocation5 + $0x60] sm:$0xff]
    %v1628 = vld [vmem:[#allocation5 + $0x68] sm:$0xff]
    %v1629 = vld [vmem:[#allocation5 + $0x70] sm:$0xff]
    %v1630 = vld [vmem:[#allocation5 + $0x78] sm:$0xff]
    %v1631 = vld [vmem:[#allocation5 + $0x80] sm:$0xff]
    %v1632 = vld [vmem:[#allocation5 + $0x88] sm:$0xff]
    %v1633 = vld [vmem:[#allocation5 + $0x90] sm:$0xff]
    %v1634 = vld [vmem:[#allocation5 + $0x98] sm:$0xff]
    %v1635 = vld [vmem:[#allocation5 + $0xa0] sm:$0xff]
    %v1636 = vld [vmem:[#allocation5 + $0xa8] sm:$0xff]
    %v1637 = vld [vmem:[#allocation5 + $0xb0] sm:$0xff]
    %v1638 = vld [vmem:[#allocation5 + $0xb8] sm:$0xff]
    %v1639 = vld [vmem:[#allocation5 + $0xc0] sm:$0xff]
    %v1640 = vld [vmem:[#allocation5 + $0xc8] sm:$0xff]
    %v1641 = vld [vmem:[#allocation5 + $0xd0] sm:$0xff]
    %v1642 = vld [vmem:[#allocation5 + $0xd8] sm:$0xff]
    %v1643 = vld [vmem:[#allocation5 + $0xe0] sm:$0xff]
    %v1644 = vld [vmem:[#allocation5 + $0xe8] sm:$0xff]
    %v1645 = vld [vmem:[#allocation5 + $0xf0] sm:$0xff]
    %v1646 = vld [vmem:[#allocation5 + $0xf8] sm:$0xff]
    %1647 = vmatprep.subr.mxu0 0.0
    %1648 = vmatpush1.msra.mxu0 %v1615
    %1649 = vmatprep.subr.mxu0 0.0
    %1650 = vmatpush1.msra.mxu0 %v1616
    %1651 = vmatprep.subr.mxu0 0.0
    %1652 = vmatpush1.msra.mxu0 %v1617
    %1653 = vmatprep.subr.mxu0 0.0
    %1654 = vmatpush1.msra.mxu0 %v1618
    %1655 = vmatprep.subr.mxu0 0.0
    %1656 = vmatpush1.msra.mxu0 %v1619
    %1657 = vmatprep.subr.mxu0 0.0
    %1658 = vmatpush1.msra.mxu0 %v1620
    %1659 = vmatprep.subr.mxu0 0.0
    %1660 = vmatpush1.msra.mxu0 %v1621
    %1661 = vmatprep.subr.mxu0 0.0
    %1662 = vmatpush1.msra.mxu0 %v1622
    %1663 = vmatprep.subr.mxu0 0.0
    %1664 = vmatpush1.msra.mxu0 %v1623
    %1665 = vmatprep.subr.mxu0 0.0
    %1666 = vmatpush1.msra.mxu0 %v1624
    %1667 = vmatprep.subr.mxu0 0.0
    %1668 = vmatpush1.msra.mxu0 %v1625
    %1669 = vmatprep.subr.mxu0 0.0
    %1670 = vmatpush1.msra.mxu0 %v1626
    %1671 = vmatprep.subr.mxu0 0.0
    %1672 = vmatpush1.msra.mxu0 %v1627
    %1673 = vmatprep.subr.mxu0 0.0
    %1674 = vmatpush1.msra.mxu0 %v1628
    %1675 = vmatprep.subr.mxu0 0.0
    %1676 = vmatpush1.msra.mxu0 %v1629
    %1677 = vmatprep.subr.mxu0 0.0
    %1678 = vmatpush1.msra.mxu0 %v1630
    %1679 = vmatprep.subr.mxu0 0.0
    %1680 = vmatpush1.msra.mxu0 %v1631
    %1681 = vmatprep.subr.mxu0 0.0
    %1682 = vmatpush1.msra.mxu0 %v1632
    %1683 = vmatprep.subr.mxu0 0.0
    %1684 = vmatpush1.msra.mxu0 %v1633
    %1685 = vmatprep.subr.mxu0 0.0
    %1686 = vmatpush1.msra.mxu0 %v1634
    %1687 = vmatprep.subr.mxu0 0.0
    %1688 = vmatpush1.msra.mxu0 %v1635
    %1689 = vmatprep.subr.mxu0 0.0
    %1690 = vmatpush1.msra.mxu0 %v1636
    %1691 = vmatprep.subr.mxu0 0.0
    %1692 = vmatpush1.msra.mxu0 %v1637
    %1693 = vmatprep.subr.mxu0 0.0
    %1694 = vmatpush1.msra.mxu0 %v1638
    %1695 = vmatprep.subr.mxu0 0.0
    %1696 = vmatpush1.msra.mxu0 %v1639
    %1697 = vmatprep.subr.mxu0 0.0
    %1698 = vmatpush1.msra.mxu0 %v1640
    %1699 = vmatprep.subr.mxu0 0.0
    %1700 = vmatpush1.msra.mxu0 %v1641
    %1701 = vmatprep.subr.mxu0 0.0
    %1702 = vmatpush1.msra.mxu0 %v1642
    %1703 = vmatprep.subr.mxu0 0.0
    %1704 = vmatpush1.msra.mxu0 %v1643
    %1705 = vmatprep.subr.mxu0 0.0
    %1706 = vmatpush1.msra.mxu0 %v1644
    %1707 = vmatprep.subr.mxu0 0.0
    %1708 = vmatpush1.msra.mxu0 %v1645
    %1709 = vmatprep.subr.mxu0 0.0
    %1710 = vmatpush1.msra.mxu0 %v1646
    %1711 = vmatprep.mubr.f32.mxu0 %v1584
    %1712 = vmatmul.mubr.f32.gmra.mrb[0].mxu0 %v1583
    %v1713 = vpop.f32.mrb[0].mxu0
    %v1714 = vadd.f32 0.0, %v1713
    %v1715 = vpop.f32.mrb[0].mxu0
    %1716 = vmatprep.mubr.f32.mxu0 %v1586
    %1717 = vmatmul.mubr.f32.gmra.mrb[0].mxu0 %v1585
    %v1718 = vpop.f32.mrb[0].mxu0
    %v1719 = vadd.f32 0.0, %v1718
    %v1720 = vpop.f32.mrb[0].mxu0
    %1721 = vmatprep.mubr.f32.mxu0 %v1588
    %1722 = vmatmul.mubr.f32.gmra.mrb[0].mxu0 %v1587
    %v1723 = vpop.f32.mrb[0].mxu0
    %v1724 = vadd.f32 0.0, %v1723
    %v1725 = vpop.f32.mrb[0].mxu0
    %1726 = vmatprep.mubr.f32.mxu0 %v1590
    %1727 = vmatmul.mubr.f32.gmra.mrb[0].mxu0 %v1589
    %v1728 = vpop.f32.mrb[0].mxu0
    %v1729 = vadd.f32 0.0, %v1728
    %v1730 = vpop.f32.mrb[0].mxu0
    %1731 = vmatprep.mubr.f32.mxu0 %v1592
    %1732 = vmatmul.mubr.f32.gmra.mrb[0].mxu0 %v1591
    %v1733 = vpop.f32.mrb[0].mxu0
    %v1734 = vadd.f32 0.0, %v1733
    %v1735 = vpop.f32.mrb[0].mxu0
    %1736 = vmatprep.mubr.f32.mxu0 %v1594
    %1737 = vmatmul.mubr.f32.gmra.mrb[0].mxu0 %v1593
    %v1738 = vpop.f32.mrb[0].mxu0
    %v1739 = vadd.f32 0.0, %v1738
    %v1740 = vpop.f32.mrb[0].mxu0
    %1741 = vmatprep.mubr.f32.mxu0 %v1596
    %1742 = vmatmul.mubr.f32.gmra.mrb[0].mxu0 %v1595
    %v1743 = vpop.f32.mrb[0].mxu0
    %v1744 = vadd.f32 0.0, %v1743
    %v1745 = vpop.f32.mrb[0].mxu0
    %1746 = vmatprep.mubr.f32.mxu0 %v1598
    %1747 = vmatmul.mubr.f32.gmra.mrb[0].mxu0 %v1597
    %v1748 = vpop.f32.mrb[0].mxu0
    %v1749 = vadd.f32 0.0, %v1748
    %v1750 = vpop.f32.mrb[0].mxu0
    %1751 = vmatprep.mubr.f32.mxu0 %v1600
    %1752 = vmatmul.mubr.f32.gmra.mrb[0].mxu0 %v1599
    %v1753 = vpop.f32.mrb[0].mxu0
    %v1754 = vadd.f32 0.0, %v1753
    %v1755 = vpop.f32.mrb[0].mxu0
    %1756 = vmatprep.mubr.f32.mxu0 %v1602
    %1757 = vmatmul.mubr.f32.gmra.mrb[0].mxu0 %v1601
    %v1758 = vpop.f32.mrb[0].mxu0
    %v1759 = vadd.f32 0.0, %v1758
    %v1760 = vpop.f32.mrb[0].mxu0
    %1761 = vmatprep.mubr.f32.mxu0 %v1604
    %1762 = vmatmul.mubr.f32.gmra.mrb[0].mxu0 %v1603
    %v1763 = vpop.f32.mrb[0].mxu0
    %v1764 = vadd.f32 0.0, %v1763
    %v1765 = vpop.f32.mrb[0].mxu0
    %1766 = vmatprep.mubr.f32.mxu0 %v1606
    %1767 = vmatmul.mubr.f32.gmra.mrb[0].mxu0 %v1605
    %v1768 = vpop.f32.mrb[0].mxu0
    %v1769 = vadd.f32 0.0, %v1768
    %v1770 = vpop.f32.mrb[0].mxu0
    %1771 = vmatprep.mubr.f32.mxu0 %v1608
    %1772 = vmatmul.mubr.f32.gmra.mrb[0].mxu0 %v1607
    %v1773 = vpop.f32.mrb[0].mxu0
    %v1774 = vadd.f32 0.0, %v1773
    %v1775 = vpop.f32.mrb[0].mxu0
    %1776 = vmatprep.mubr.f32.mxu0 %v1610
    %1777 = vmatmul.mubr.f32.gmra.mrb[0].mxu0 %v1609
    %v1778 = vpop.f32.mrb[0].mxu0
    %v1779 = vadd.f32 0.0, %v1778
    %v1780 = vpop.f32.mrb[0].mxu0
    %1781 = vmatprep.mubr.f32.mxu0 %v1612
    %1782 = vmatmul.mubr.f32.gmra.mrb[0].mxu0 %v1611
    %v1783 = vpop.f32.mrb[0].mxu0
    %v1784 = vadd.f32 0.0, %v1783
    %v1785 = vpop.f32.mrb[0].mxu0
    %1786 = vmatprep.mubr.f32.mxu0 %v1614
    %1787 = vmatmul.mubr.f32.gmra.mrb[0].mxu0 %v1613
    %v1788 = vpop.f32.mrb[0].mxu0
    %v1789 = vadd.f32 0.0, %v1788
    %v1790 = vpop.f32.mrb[0].mxu0
    %1791 = vdwg.mxu0
    %1792 = vst [vmem:[#allocation7 + $0x200] sm:$0xff] %v1714
    %1793 = vst [vmem:[#allocation7 + $0x208] sm:$0xff] %v1719
    %1794 = vst [vmem:[#allocation7 + $0x210] sm:$0xff] %v1724
    %1795 = vst [vmem:[#allocation7 + $0x218] sm:$0xff] %v1729
    %1796 = vst [vmem:[#allocation7 + $0x220] sm:$0xff] %v1734
    %1797 = vst [vmem:[#allocation7 + $0x228] sm:$0xff] %v1739
    %1798 = vst [vmem:[#allocation7 + $0x230] sm:$0xff] %v1744
    %1799 = vst [vmem:[#allocation7 + $0x238] sm:$0xff] %v1749
    %1800 = vst [vmem:[#allocation7 + $0x240] sm:$0xff] %v1754
    %1801 = vst [vmem:[#allocation7 + $0x248] sm:$0xff] %v1759
    %1802 = vst [vmem:[#allocation7 + $0x250] sm:$0xff] %v1764
    %1803 = vst [vmem:[#allocation7 + $0x258] sm:$0xff] %v1769
    %1804 = vst [vmem:[#allocation7 + $0x260] sm:$0xff] %v1774
    %1805 = vst [vmem:[#allocation7 + $0x268] sm:$0xff] %v1779
    %1806 = vst [vmem:[#allocation7 + $0x270] sm:$0xff] %v1784
    %1807 = vst [vmem:[#allocation7 + $0x278] sm:$0xff] %v1789
    %1808 = vset.pattern.permute.xlu0 5
    %1809 = vperm.xlu0 %1808, %v106
    %v1810 = vpop.permute.xlu0 %1809
    %1811 = vset.pattern.permute.xlu0 5
    %1812 = vperm.xlu0 %1811, %v107
    %v1813 = vpop.permute.xlu0 %1812
    %1814 = vset.pattern.permute.xlu0 5
    %1815 = vperm.xlu0 %1814, %v108
    %v1816 = vpop.permute.xlu0 %1815
    %1817 = vset.pattern.permute.xlu0 5
    %1818 = vperm.xlu0 %1817, %v109
    %v1819 = vpop.permute.xlu0 %1818
    %1820 = vset.pattern.permute.xlu0 5
    %1821 = vperm.xlu0 %1820, %v110
    %v1822 = vpop.permute.xlu0 %1821
    %1823 = vset.pattern.permute.xlu0 5
    %1824 = vperm.xlu0 %1823, %v111
    %v1825 = vpop.permute.xlu0 %1824
    %1826 = vset.pattern.permute.xlu0 5
    %1827 = vperm.xlu0 %1826, %v112
    %v1828 = vpop.permute.xlu0 %1827
    %1829 = vset.pattern.permute.xlu0 5
    %1830 = vperm.xlu0 %1829, %v113
    %v1831 = vpop.permute.xlu0 %1830
    %1832 = vset.pattern.permute.xlu0 5
    %1833 = vperm.xlu0 %1832, %v114
    %v1834 = vpop.permute.xlu0 %1833
    %1835 = vset.pattern.permute.xlu0 5
    %1836 = vperm.xlu0 %1835, %v115
    %v1837 = vpop.permute.xlu0 %1836
    %1838 = vset.pattern.permute.xlu0 5
    %1839 = vperm.xlu0 %1838, %v116
    %v1840 = vpop.permute.xlu0 %1839
    %1841 = vset.pattern.permute.xlu0 5
    %1842 = vperm.xlu0 %1841, %v117
    %v1843 = vpop.permute.xlu0 %1842
    %1844 = vset.pattern.permute.xlu0 5
    %1845 = vperm.xlu0 %1844, %v118
    %v1846 = vpop.permute.xlu0 %1845
    %1847 = vset.pattern.permute.xlu0 5
    %1848 = vperm.xlu0 %1847, %v119
    %v1849 = vpop.permute.xlu0 %1848
    %1850 = vset.pattern.permute.xlu0 5
    %1851 = vperm.xlu0 %1850, %v120
    %v1852 = vpop.permute.xlu0 %1851
    %1853 = vset.pattern.permute.xlu0 5
    %1854 = vperm.xlu0 %1853, %v121
    %v1855 = vpop.permute.xlu0 %1854
    %vm1856 = vcmp.eq.s32.totalorder %v1810, %v43
    %vm1857 = vcmp.eq.s32.totalorder %v1810, %v122
    %vm1858 = vcmp.eq.s32.totalorder %v1813, %v43
    %vm1859 = vcmp.eq.s32.totalorder %v1813, %v122
    %vm1860 = vcmp.eq.s32.totalorder %v1816, %v43
    %vm1861 = vcmp.eq.s32.totalorder %v1816, %v122
    %vm1862 = vcmp.eq.s32.totalorder %v1819, %v43
    %vm1863 = vcmp.eq.s32.totalorder %v1819, %v122
    %vm1864 = vcmp.eq.s32.totalorder %v1822, %v43
    %vm1865 = vcmp.eq.s32.totalorder %v1822, %v122
    %vm1866 = vcmp.eq.s32.totalorder %v1825, %v43
    %vm1867 = vcmp.eq.s32.totalorder %v1825, %v122
    %vm1868 = vcmp.eq.s32.totalorder %v1828, %v43
    %vm1869 = vcmp.eq.s32.totalorder %v1828, %v122
    %vm1870 = vcmp.eq.s32.totalorder %v1831, %v43
    %vm1871 = vcmp.eq.s32.totalorder %v1831, %v122
    %vm1872 = vcmp.eq.s32.totalorder %v1834, %v43
    %vm1873 = vcmp.eq.s32.totalorder %v1834, %v122
    %vm1874 = vcmp.eq.s32.totalorder %v1837, %v43
    %vm1875 = vcmp.eq.s32.totalorder %v1837, %v122
    %vm1876 = vcmp.eq.s32.totalorder %v1840, %v43
    %vm1877 = vcmp.eq.s32.totalorder %v1840, %v122
    %vm1878 = vcmp.eq.s32.totalorder %v1843, %v43
    %vm1879 = vcmp.eq.s32.totalorder %v1843, %v122
    %vm1880 = vcmp.eq.s32.totalorder %v1846, %v43
    %vm1881 = vcmp.eq.s32.totalorder %v1846, %v122
    %vm1882 = vcmp.eq.s32.totalorder %v1849, %v43
    %vm1883 = vcmp.eq.s32.totalorder %v1849, %v122
    %vm1884 = vcmp.eq.s32.totalorder %v1852, %v43
    %vm1885 = vcmp.eq.s32.totalorder %v1852, %v122
    %vm1886 = vcmp.eq.s32.totalorder %v1855, %v43
    %vm1887 = vcmp.eq.s32.totalorder %v1855, %v122
    %v1888 = vsel %vm1856, 1, 0
    %v1889 = vsel %vm1857, 1, 0
    %v1890 = vsel %vm1858, 1, 0
    %v1891 = vsel %vm1859, 1, 0
    %v1892 = vsel %vm1860, 1, 0
    %v1893 = vsel %vm1861, 1, 0
    %v1894 = vsel %vm1862, 1, 0
    %v1895 = vsel %vm1863, 1, 0
    %v1896 = vsel %vm1864, 1, 0
    %v1897 = vsel %vm1865, 1, 0
    %v1898 = vsel %vm1866, 1, 0
    %v1899 = vsel %vm1867, 1, 0
    %v1900 = vsel %vm1868, 1, 0
    %v1901 = vsel %vm1869, 1, 0
    %v1902 = vsel %vm1870, 1, 0
    %v1903 = vsel %vm1871, 1, 0
    %v1904 = vsel %vm1872, 1, 0
    %v1905 = vsel %vm1873, 1, 0
    %v1906 = vsel %vm1874, 1, 0
    %v1907 = vsel %vm1875, 1, 0
    %v1908 = vsel %vm1876, 1, 0
    %v1909 = vsel %vm1877, 1, 0
    %v1910 = vsel %vm1878, 1, 0
    %v1911 = vsel %vm1879, 1, 0
    %v1912 = vsel %vm1880, 1, 0
    %v1913 = vsel %vm1881, 1, 0
    %v1914 = vsel %vm1882, 1, 0
    %v1915 = vsel %vm1883, 1, 0
    %v1916 = vsel %vm1884, 1, 0
    %v1917 = vsel %vm1885, 1, 0
    %v1918 = vsel %vm1886, 1, 0
    %v1919 = vsel %vm1887, 1, 0
    %v1920 = vcvt.s32.f32 %v1888
    %v1921 = vcvt.s32.f32 %v1889
    %v1922 = vcvt.s32.f32 %v1890
    %v1923 = vcvt.s32.f32 %v1891
    %v1924 = vcvt.s32.f32 %v1892
    %v1925 = vcvt.s32.f32 %v1893
    %v1926 = vcvt.s32.f32 %v1894
    %v1927 = vcvt.s32.f32 %v1895
    %v1928 = vcvt.s32.f32 %v1896
    %v1929 = vcvt.s32.f32 %v1897
    %v1930 = vcvt.s32.f32 %v1898
    %v1931 = vcvt.s32.f32 %v1899
    %v1932 = vcvt.s32.f32 %v1900
    %v1933 = vcvt.s32.f32 %v1901
    %v1934 = vcvt.s32.f32 %v1902
    %v1935 = vcvt.s32.f32 %v1903
    %v1936 = vcvt.s32.f32 %v1904
    %v1937 = vcvt.s32.f32 %v1905
    %v1938 = vcvt.s32.f32 %v1906
    %v1939 = vcvt.s32.f32 %v1907
    %v1940 = vcvt.s32.f32 %v1908
    %v1941 = vcvt.s32.f32 %v1909
    %v1942 = vcvt.s32.f32 %v1910
    %v1943 = vcvt.s32.f32 %v1911
    %v1944 = vcvt.s32.f32 %v1912
    %v1945 = vcvt.s32.f32 %v1913
    %v1946 = vcvt.s32.f32 %v1914
    %v1947 = vcvt.s32.f32 %v1915
    %v1948 = vcvt.s32.f32 %v1916
    %v1949 = vcvt.s32.f32 %v1917
    %v1950 = vcvt.s32.f32 %v1918
    %v1951 = vcvt.s32.f32 %v1919
    %v1952 = vld [vmem:[#allocation5] sm:$0xff]
    %v1953 = vld [vmem:[#allocation5 + $0x8] sm:$0xff]
    %v1954 = vld [vmem:[#allocation5 + $0x10] sm:$0xff]
    %v1955 = vld [vmem:[#allocation5 + $0x18] sm:$0xff]
    %v1956 = vld [vmem:[#allocation5 + $0x20] sm:$0xff]
    %v1957 = vld [vmem:[#allocation5 + $0x28] sm:$0xff]
    %v1958 = vld [vmem:[#allocation5 + $0x30] sm:$0xff]
    %v1959 = vld [vmem:[#allocation5 + $0x38] sm:$0xff]
    %v1960 = vld [vmem:[#allocation5 + $0x40] sm:$0xff]
    %v1961 = vld [vmem:[#allocation5 + $0x48] sm:$0xff]
    %v1962 = vld [vmem:[#allocation5 + $0x50] sm:$0xff]
    %v1963 = vld [vmem:[#allocation5 + $0x58] sm:$0xff]
    %v1964 = vld [vmem:[#allocation5 + $0x60] sm:$0xff]
    %v1965 = vld [vmem:[#allocation5 + $0x68] sm:$0xff]
    %v1966 = vld [vmem:[#allocation5 + $0x70] sm:$0xff]
    %v1967 = vld [vmem:[#allocation5 + $0x78] sm:$0xff]
    %v1968 = vld [vmem:[#allocation5 + $0x80] sm:$0xff]
    %v1969 = vld [vmem:[#allocation5 + $0x88] sm:$0xff]
    %v1970 = vld [vmem:[#allocation5 + $0x90] sm:$0xff]
    %v1971 = vld [vmem:[#allocation5 + $0x98] sm:$0xff]
    %v1972 = vld [vmem:[#allocation5 + $0xa0] sm:$0xff]
    %v1973 = vld [vmem:[#allocation5 + $0xa8] sm:$0xff]
    %v1974 = vld [vmem:[#allocation5 + $0xb0] sm:$0xff]
    %v1975 = vld [vmem:[#allocation5 + $0xb8] sm:$0xff]
    %v1976 = vld [vmem:[#allocation5 + $0xc0] sm:$0xff]
    %v1977 = vld [vmem:[#allocation5 + $0xc8] sm:$0xff]
    %v1978 = vld [vmem:[#allocation5 + $0xd0] sm:$0xff]
    %v1979 = vld [vmem:[#allocation5 + $0xd8] sm:$0xff]
    %v1980 = vld [vmem:[#allocation5 + $0xe0] sm:$0xff]
    %v1981 = vld [vmem:[#allocation5 + $0xe8] sm:$0xff]
    %v1982 = vld [vmem:[#allocation5 + $0xf0] sm:$0xff]
    %v1983 = vld [vmem:[#allocation5 + $0xf8] sm:$0xff]
    %1984 = vmatprep.subr.mxu0 0.0
    %1985 = vmatpush1.msra.mxu0 %v1952
    %1986 = vmatprep.subr.mxu0 0.0
    %1987 = vmatpush1.msra.mxu0 %v1953
    %1988 = vmatprep.subr.mxu0 0.0
    %1989 = vmatpush1.msra.mxu0 %v1954
    %1990 = vmatprep.subr.mxu0 0.0
    %1991 = vmatpush1.msra.mxu0 %v1955
    %1992 = vmatprep.subr.mxu0 0.0
    %1993 = vmatpush1.msra.mxu0 %v1956
    %1994 = vmatprep.subr.mxu0 0.0
    %1995 = vmatpush1.msra.mxu0 %v1957
    %1996 = vmatprep.subr.mxu0 0.0
    %1997 = vmatpush1.msra.mxu0 %v1958
    %1998 = vmatprep.subr.mxu0 0.0
    %1999 = vmatpush1.msra.mxu0 %v1959
    %2000 = vmatprep.subr.mxu0 0.0
    %2001 = vmatpush1.msra.mxu0 %v1960
    %2002 = vmatprep.subr.mxu0 0.0
    %2003 = vmatpush1.msra.mxu0 %v1961
    %2004 = vmatprep.subr.mxu0 0.0
    %2005 = vmatpush1.msra.mxu0 %v1962
    %2006 = vmatprep.subr.mxu0 0.0
    %2007 = vmatpush1.msra.mxu0 %v1963
    %2008 = vmatprep.subr.mxu0 0.0
    %2009 = vmatpush1.msra.mxu0 %v1964
    %2010 = vmatprep.subr.mxu0 0.0
    %2011 = vmatpush1.msra.mxu0 %v1965
    %2012 = vmatprep.subr.mxu0 0.0
    %2013 = vmatpush1.msra.mxu0 %v1966
    %2014 = vmatprep.subr.mxu0 0.0
    %2015 = vmatpush1.msra.mxu0 %v1967
    %2016 = vmatprep.subr.mxu0 0.0
    %2017 = vmatpush1.msra.mxu0 %v1968
    %2018 = vmatprep.subr.mxu0 0.0
    %2019 = vmatpush1.msra.mxu0 %v1969
    %2020 = vmatprep.subr.mxu0 0.0
    %2021 = vmatpush1.msra.mxu0 %v1970
    %2022 = vmatprep.subr.mxu0 0.0
    %2023 = vmatpush1.msra.mxu0 %v1971
    %2024 = vmatprep.subr.mxu0 0.0
    %2025 = vmatpush1.msra.mxu0 %v1972
    %2026 = vmatprep.subr.mxu0 0.0
    %2027 = vmatpush1.msra.mxu0 %v1973
    %2028 = vmatprep.subr.mxu0 0.0
    %2029 = vmatpush1.msra.mxu0 %v1974
    %2030 = vmatprep.subr.mxu0 0.0
    %2031 = vmatpush1.msra.mxu0 %v1975
    %2032 = vmatprep.subr.mxu0 0.0
    %2033 = vmatpush1.msra.mxu0 %v1976
    %2034 = vmatprep.subr.mxu0 0.0
    %2035 = vmatpush1.msra.mxu0 %v1977
    %2036 = vmatprep.subr.mxu0 0.0
    %2037 = vmatpush1.msra.mxu0 %v1978
    %2038 = vmatprep.subr.mxu0 0.0
    %2039 = vmatpush1.msra.mxu0 %v1979
    %2040 = vmatprep.subr.mxu0 0.0
    %2041 = vmatpush1.msra.mxu0 %v1980
    %2042 = vmatprep.subr.mxu0 0.0
    %2043 = vmatpush1.msra.mxu0 %v1981
    %2044 = vmatprep.subr.mxu0 0.0
    %2045 = vmatpush1.msra.mxu0 %v1982
    %2046 = vmatprep.subr.mxu0 0.0
    %2047 = vmatpush1.msra.mxu0 %v1983
    %2048 = vmatprep.mubr.f32.mxu0 %v1921
    %2049 = vmatmul.mubr.f32.gmra.mrb[0].mxu0 %v1920
    %v2050 = vpop.f32.mrb[0].mxu0
    %v2051 = vadd.f32 0.0, %v2050
    %v2052 = vpop.f32.mrb[0].mxu0
    %2053 = vmatprep.mubr.f32.mxu0 %v1923
    %2054 = vmatmul.mubr.f32.gmra.mrb[0].mxu0 %v1922
    %v2055 = vpop.f32.mrb[0].mxu0
    %v2056 = vadd.f32 0.0, %v2055
    %v2057 = vpop.f32.mrb[0].mxu0
    %2058 = vmatprep.mubr.f32.mxu0 %v1925
    %2059 = vmatmul.mubr.f32.gmra.mrb[0].mxu0 %v1924
    %v2060 = vpop.f32.mrb[0].mxu0
    %v2061 = vadd.f32 0.0, %v2060
    %v2062 = vpop.f32.mrb[0].mxu0
    %2063 = vmatprep.mubr.f32.mxu0 %v1927
    %2064 = vmatmul.mubr.f32.gmra.mrb[0].mxu0 %v1926
    %v2065 = vpop.f32.mrb[0].mxu0
    %v2066 = vadd.f32 0.0, %v2065
    %v2067 = vpop.f32.mrb[0].mxu0
    %2068 = vmatprep.mubr.f32.mxu0 %v1929
    %2069 = vmatmul.mubr.f32.gmra.mrb[0].mxu0 %v1928
    %v2070 = vpop.f32.mrb[0].mxu0
    %v2071 = vadd.f32 0.0, %v2070
    %v2072 = vpop.f32.mrb[0].mxu0
    %2073 = vmatprep.mubr.f32.mxu0 %v1931
    %2074 = vmatmul.mubr.f32.gmra.mrb[0].mxu0 %v1930
    %v2075 = vpop.f32.mrb[0].mxu0
    %v2076 = vadd.f32 0.0, %v2075
    %v2077 = vpop.f32.mrb[0].mxu0
    %2078 = vmatprep.mubr.f32.mxu0 %v1933
    %2079 = vmatmul.mubr.f32.gmra.mrb[0].mxu0 %v1932
    %v2080 = vpop.f32.mrb[0].mxu0
    %v2081 = vadd.f32 0.0, %v2080
    %v2082 = vpop.f32.mrb[0].mxu0
    %2083 = vmatprep.mubr.f32.mxu0 %v1935
    %2084 = vmatmul.mubr.f32.gmra.mrb[0].mxu0 %v1934
    %v2085 = vpop.f32.mrb[0].mxu0
    %v2086 = vadd.f32 0.0, %v2085
    %v2087 = vpop.f32.mrb[0].mxu0
    %2088 = vmatprep.mubr.f32.mxu0 %v1937
    %2089 = vmatmul.mubr.f32.gmra.mrb[0].mxu0 %v1936
    %v2090 = vpop.f32.mrb[0].mxu0
    %v2091 = vadd.f32 0.0, %v2090
    %v2092 = vpop.f32.mrb[0].mxu0
    %2093 = vmatprep.mubr.f32.mxu0 %v1939
    %2094 = vmatmul.mubr.f32.gmra.mrb[0].mxu0 %v1938
    %v2095 = vpop.f32.mrb[0].mxu0
    %v2096 = vadd.f32 0.0, %v2095
    %v2097 = vpop.f32.mrb[0].mxu0
    %2098 = vmatprep.mubr.f32.mxu0 %v1941
    %2099 = vmatmul.mubr.f32.gmra.mrb[0].mxu0 %v1940
    %v2100 = vpop.f32.mrb[0].mxu0
    %v2101 = vadd.f32 0.0, %v2100
    %v2102 = vpop.f32.mrb[0].mxu0
    %2103 = vmatprep.mubr.f32.mxu0 %v1943
    %2104 = vmatmul.mubr.f32.gmra.mrb[0].mxu0 %v1942
    %v2105 = vpop.f32.mrb[0].mxu0
    %v2106 = vadd.f32 0.0, %v2105
    %v2107 = vpop.f32.mrb[0].mxu0
    %2108 = vmatprep.mubr.f32.mxu0 %v1945
    %2109 = vmatmul.mubr.f32.gmra.mrb[0].mxu0 %v1944
    %v2110 = vpop.f32.mrb[0].mxu0
    %v2111 = vadd.f32 0.0, %v2110
    %v2112 = vpop.f32.mrb[0].mxu0
    %2113 = vmatprep.mubr.f32.mxu0 %v1947
    %2114 = vmatmul.mubr.f32.gmra.mrb[0].mxu0 %v1946
    %v2115 = vpop.f32.mrb[0].mxu0
    %v2116 = vadd.f32 0.0, %v2115
    %v2117 = vpop.f32.mrb[0].mxu0
    %2118 = vmatprep.mubr.f32.mxu0 %v1949
    %2119 = vmatmul.mubr.f32.gmra.mrb[0].mxu0 %v1948
    %v2120 = vpop.f32.mrb[0].mxu0
    %v2121 = vadd.f32 0.0, %v2120
    %v2122 = vpop.f32.mrb[0].mxu0
    %2123 = vmatprep.mubr.f32.mxu0 %v1951
    %2124 = vmatmul.mubr.f32.gmra.mrb[0].mxu0 %v1950
    %v2125 = vpop.f32.mrb[0].mxu0
    %v2126 = vadd.f32 0.0, %v2125
    %v2127 = vpop.f32.mrb[0].mxu0
    %2128 = vdwg.mxu0
    %2129 = vst [vmem:[#allocation7 + $0x280] sm:$0xff] %v2051
    %2130 = vst [vmem:[#allocation7 + $0x288] sm:$0xff] %v2056
    %2131 = vst [vmem:[#allocation7 + $0x290] sm:$0xff] %v2061
    %2132 = vst [vmem:[#allocation7 + $0x298] sm:$0xff] %v2066
    %2133 = vst [vmem:[#allocation7 + $0x2a0] sm:$0xff] %v2071
    %2134 = vst [vmem:[#allocation7 + $0x2a8] sm:$0xff] %v2076
    %2135 = vst [vmem:[#allocation7 + $0x2b0] sm:$0xff] %v2081
    %2136 = vst [vmem:[#allocation7 + $0x2b8] sm:$0xff] %v2086
    %2137 = vst [vmem:[#allocation7 + $0x2c0] sm:$0xff] %v2091
    %2138 = vst [vmem:[#allocation7 + $0x2c8] sm:$0xff] %v2096
    %2139 = vst [vmem:[#allocation7 + $0x2d0] sm:$0xff] %v2101
    %2140 = vst [vmem:[#allocation7 + $0x2d8] sm:$0xff] %v2106
    %2141 = vst [vmem:[#allocation7 + $0x2e0] sm:$0xff] %v2111
    %2142 = vst [vmem:[#allocation7 + $0x2e8] sm:$0xff] %v2116
    %2143 = vst [vmem:[#allocation7 + $0x2f0] sm:$0xff] %v2121
    %2144 = vst [vmem:[#allocation7 + $0x2f8] sm:$0xff] %v2126
    %2145 = vset.pattern.permute.xlu0 6
    %2146 = vperm.xlu0 %2145, %v106
    %v2147 = vpop.permute.xlu0 %2146
    %2148 = vset.pattern.permute.xlu0 6
    %2149 = vperm.xlu0 %2148, %v107
    %v2150 = vpop.permute.xlu0 %2149
    %2151 = vset.pattern.permute.xlu0 6
    %2152 = vperm.xlu0 %2151, %v108
    %v2153 = vpop.permute.xlu0 %2152
    %2154 = vset.pattern.permute.xlu0 6
    %2155 = vperm.xlu0 %2154, %v109
    %v2156 = vpop.permute.xlu0 %2155
    %2157 = vset.pattern.permute.xlu0 6
    %2158 = vperm.xlu0 %2157, %v110
    %v2159 = vpop.permute.xlu0 %2158
    %2160 = vset.pattern.permute.xlu0 6
    %2161 = vperm.xlu0 %2160, %v111
    %v2162 = vpop.permute.xlu0 %2161
    %2163 = vset.pattern.permute.xlu0 6
    %2164 = vperm.xlu0 %2163, %v112
    %v2165 = vpop.permute.xlu0 %2164
    %2166 = vset.pattern.permute.xlu0 6
    %2167 = vperm.xlu0 %2166, %v113
    %v2168 = vpop.permute.xlu0 %2167
    %2169 = vset.pattern.permute.xlu0 6
    %2170 = vperm.xlu0 %2169, %v114
    %v2171 = vpop.permute.xlu0 %2170
    %2172 = vset.pattern.permute.xlu0 6
    %2173 = vperm.xlu0 %2172, %v115
    %v2174 = vpop.permute.xlu0 %2173
    %2175 = vset.pattern.permute.xlu0 6
    %2176 = vperm.xlu0 %2175, %v116
    %v2177 = vpop.permute.xlu0 %2176
    %2178 = vset.pattern.permute.xlu0 6
    %2179 = vperm.xlu0 %2178, %v117
    %v2180 = vpop.permute.xlu0 %2179
    %2181 = vset.pattern.permute.xlu0 6
    %2182 = vperm.xlu0 %2181, %v118
    %v2183 = vpop.permute.xlu0 %2182
    %2184 = vset.pattern.permute.xlu0 6
    %2185 = vperm.xlu0 %2184, %v119
    %v2186 = vpop.permute.xlu0 %2185
    %2187 = vset.pattern.permute.xlu0 6
    %2188 = vperm.xlu0 %2187, %v120
    %v2189 = vpop.permute.xlu0 %2188
    %2190 = vset.pattern.permute.xlu0 6
    %2191 = vperm.xlu0 %2190, %v121
    %v2192 = vpop.permute.xlu0 %2191
    %vm2193 = vcmp.eq.s32.totalorder %v2147, %v43
    %vm2194 = vcmp.eq.s32.totalorder %v2147, %v122
    %vm2195 = vcmp.eq.s32.totalorder %v2150, %v43
    %vm2196 = vcmp.eq.s32.totalorder %v2150, %v122
    %vm2197 = vcmp.eq.s32.totalorder %v2153, %v43
    %vm2198 = vcmp.eq.s32.totalorder %v2153, %v122
    %vm2199 = vcmp.eq.s32.totalorder %v2156, %v43
    %vm2200 = vcmp.eq.s32.totalorder %v2156, %v122
    %vm2201 = vcmp.eq.s32.totalorder %v2159, %v43
    %vm2202 = vcmp.eq.s32.totalorder %v2159, %v122
    %vm2203 = vcmp.eq.s32.totalorder %v2162, %v43
    %vm2204 = vcmp.eq.s32.totalorder %v2162, %v122
    %vm2205 = vcmp.eq.s32.totalorder %v2165, %v43
    %vm2206 = vcmp.eq.s32.totalorder %v2165, %v122
    %vm2207 = vcmp.eq.s32.totalorder %v2168, %v43
    %vm2208 = vcmp.eq.s32.totalorder %v2168, %v122
    %vm2209 = vcmp.eq.s32.totalorder %v2171, %v43
    %vm2210 = vcmp.eq.s32.totalorder %v2171, %v122
    %vm2211 = vcmp.eq.s32.totalorder %v2174, %v43
    %vm2212 = vcmp.eq.s32.totalorder %v2174, %v122
    %vm2213 = vcmp.eq.s32.totalorder %v2177, %v43
    %vm2214 = vcmp.eq.s32.totalorder %v2177, %v122
    %vm2215 = vcmp.eq.s32.totalorder %v2180, %v43
    %vm2216 = vcmp.eq.s32.totalorder %v2180, %v122
    %vm2217 = vcmp.eq.s32.totalorder %v2183, %v43
    %vm2218 = vcmp.eq.s32.totalorder %v2183, %v122
    %vm2219 = vcmp.eq.s32.totalorder %v2186, %v43
    %vm2220 = vcmp.eq.s32.totalorder %v2186, %v122
    %vm2221 = vcmp.eq.s32.totalorder %v2189, %v43
    %vm2222 = vcmp.eq.s32.totalorder %v2189, %v122
    %vm2223 = vcmp.eq.s32.totalorder %v2192, %v43
    %vm2224 = vcmp.eq.s32.totalorder %v2192, %v122
    %v2225 = vsel %vm2193, 1, 0
    %v2226 = vsel %vm2194, 1, 0
    %v2227 = vsel %vm2195, 1, 0
    %v2228 = vsel %vm2196, 1, 0
    %v2229 = vsel %vm2197, 1, 0
    %v2230 = vsel %vm2198, 1, 0
    %v2231 = vsel %vm2199, 1, 0
    %v2232 = vsel %vm2200, 1, 0
    %v2233 = vsel %vm2201, 1, 0
    %v2234 = vsel %vm2202, 1, 0
    %v2235 = vsel %vm2203, 1, 0
    %v2236 = vsel %vm2204, 1, 0
    %v2237 = vsel %vm2205, 1, 0
    %v2238 = vsel %vm2206, 1, 0
    %v2239 = vsel %vm2207, 1, 0
    %v2240 = vsel %vm2208, 1, 0
    %v2241 = vsel %vm2209, 1, 0
    %v2242 = vsel %vm2210, 1, 0
    %v2243 = vsel %vm2211, 1, 0
    %v2244 = vsel %vm2212, 1, 0
    %v2245 = vsel %vm2213, 1, 0
    %v2246 = vsel %vm2214, 1, 0
    %v2247 = vsel %vm2215, 1, 0
    %v2248 = vsel %vm2216, 1, 0
    %v2249 = vsel %vm2217, 1, 0
    %v2250 = vsel %vm2218, 1, 0
    %v2251 = vsel %vm2219, 1, 0
    %v2252 = vsel %vm2220, 1, 0
    %v2253 = vsel %vm2221, 1, 0
    %v2254 = vsel %vm2222, 1, 0
    %v2255 = vsel %vm2223, 1, 0
    %v2256 = vsel %vm2224, 1, 0
    %v2257 = vcvt.s32.f32 %v2225
    %v2258 = vcvt.s32.f32 %v2226
    %v2259 = vcvt.s32.f32 %v2227
    %v2260 = vcvt.s32.f32 %v2228
    %v2261 = vcvt.s32.f32 %v2229
    %v2262 = vcvt.s32.f32 %v2230
    %v2263 = vcvt.s32.f32 %v2231
    %v2264 = vcvt.s32.f32 %v2232
    %v2265 = vcvt.s32.f32 %v2233
    %v2266 = vcvt.s32.f32 %v2234
    %v2267 = vcvt.s32.f32 %v2235
    %v2268 = vcvt.s32.f32 %v2236
    %v2269 = vcvt.s32.f32 %v2237
    %v2270 = vcvt.s32.f32 %v2238
    %v2271 = vcvt.s32.f32 %v2239
    %v2272 = vcvt.s32.f32 %v2240
    %v2273 = vcvt.s32.f32 %v2241
    %v2274 = vcvt.s32.f32 %v2242
    %v2275 = vcvt.s32.f32 %v2243
    %v2276 = vcvt.s32.f32 %v2244
    %v2277 = vcvt.s32.f32 %v2245
    %v2278 = vcvt.s32.f32 %v2246
    %v2279 = vcvt.s32.f32 %v2247
    %v2280 = vcvt.s32.f32 %v2248
    %v2281 = vcvt.s32.f32 %v2249
    %v2282 = vcvt.s32.f32 %v2250
    %v2283 = vcvt.s32.f32 %v2251
    %v2284 = vcvt.s32.f32 %v2252
    %v2285 = vcvt.s32.f32 %v2253
    %v2286 = vcvt.s32.f32 %v2254
    %v2287 = vcvt.s32.f32 %v2255
    %v2288 = vcvt.s32.f32 %v2256
    %v2289 = vld [vmem:[#allocation5] sm:$0xff]
    %v2290 = vld [vmem:[#allocation5 + $0x8] sm:$0xff]
    %v2291 = vld [vmem:[#allocation5 + $0x10] sm:$0xff]
    %v2292 = vld [vmem:[#allocation5 + $0x18] sm:$0xff]
    %v2293 = vld [vmem:[#allocation5 + $0x20] sm:$0xff]
    %v2294 = vld [vmem:[#allocation5 + $0x28] sm:$0xff]
    %v2295 = vld [vmem:[#allocation5 + $0x30] sm:$0xff]
    %v2296 = vld [vmem:[#allocation5 + $0x38] sm:$0xff]
    %v2297 = vld [vmem:[#allocation5 + $0x40] sm:$0xff]
    %v2298 = vld [vmem:[#allocation5 + $0x48] sm:$0xff]
    %v2299 = vld [vmem:[#allocation5 + $0x50] sm:$0xff]
    %v2300 = vld [vmem:[#allocation5 + $0x58] sm:$0xff]
    %v2301 = vld [vmem:[#allocation5 + $0x60] sm:$0xff]
    %v2302 = vld [vmem:[#allocation5 + $0x68] sm:$0xff]
    %v2303 = vld [vmem:[#allocation5 + $0x70] sm:$0xff]
    %v2304 = vld [vmem:[#allocation5 + $0x78] sm:$0xff]
    %v2305 = vld [vmem:[#allocation5 + $0x80] sm:$0xff]
    %v2306 = vld [vmem:[#allocation5 + $0x88] sm:$0xff]
    %v2307 = vld [vmem:[#allocation5 + $0x90] sm:$0xff]
    %v2308 = vld [vmem:[#allocation5 + $0x98] sm:$0xff]
    %v2309 = vld [vmem:[#allocation5 + $0xa0] sm:$0xff]
    %v2310 = vld [vmem:[#allocation5 + $0xa8] sm:$0xff]
    %v2311 = vld [vmem:[#allocation5 + $0xb0] sm:$0xff]
    %v2312 = vld [vmem:[#allocation5 + $0xb8] sm:$0xff]
    %v2313 = vld [vmem:[#allocation5 + $0xc0] sm:$0xff]
    %v2314 = vld [vmem:[#allocation5 + $0xc8] sm:$0xff]
    %v2315 = vld [vmem:[#allocation5 + $0xd0] sm:$0xff]
    %v2316 = vld [vmem:[#allocation5 + $0xd8] sm:$0xff]
    %v2317 = vld [vmem:[#allocation5 + $0xe0] sm:$0xff]
    %v2318 = vld [vmem:[#allocation5 + $0xe8] sm:$0xff]
    %v2319 = vld [vmem:[#allocation5 + $0xf0] sm:$0xff]
    %v2320 = vld [vmem:[#allocation5 + $0xf8] sm:$0xff]
    %2321 = vmatprep.subr.mxu0 0.0
    %2322 = vmatpush1.msra.mxu0 %v2289
    %2323 = vmatprep.subr.mxu0 0.0
    %2324 = vmatpush1.msra.mxu0 %v2290
    %2325 = vmatprep.subr.mxu0 0.0
    %2326 = vmatpush1.msra.mxu0 %v2291
    %2327 = vmatprep.subr.mxu0 0.0
    %2328 = vmatpush1.msra.mxu0 %v2292
    %2329 = vmatprep.subr.mxu0 0.0
    %2330 = vmatpush1.msra.mxu0 %v2293
    %2331 = vmatprep.subr.mxu0 0.0
    %2332 = vmatpush1.msra.mxu0 %v2294
    %2333 = vmatprep.subr.mxu0 0.0
    %2334 = vmatpush1.msra.mxu0 %v2295
    %2335 = vmatprep.subr.mxu0 0.0
    %2336 = vmatpush1.msra.mxu0 %v2296
    %2337 = vmatprep.subr.mxu0 0.0
    %2338 = vmatpush1.msra.mxu0 %v2297
    %2339 = vmatprep.subr.mxu0 0.0
    %2340 = vmatpush1.msra.mxu0 %v2298
    %2341 = vmatprep.subr.mxu0 0.0
    %2342 = vmatpush1.msra.mxu0 %v2299
    %2343 = vmatprep.subr.mxu0 0.0
    %2344 = vmatpush1.msra.mxu0 %v2300
    %2345 = vmatprep.subr.mxu0 0.0
    %2346 = vmatpush1.msra.mxu0 %v2301
    %2347 = vmatprep.subr.mxu0 0.0
    %2348 = vmatpush1.msra.mxu0 %v2302
    %2349 = vmatprep.subr.mxu0 0.0
    %2350 = vmatpush1.msra.mxu0 %v2303
    %2351 = vmatprep.subr.mxu0 0.0
    %2352 = vmatpush1.msra.mxu0 %v2304
    %2353 = vmatprep.subr.mxu0 0.0
    %2354 = vmatpush1.msra.mxu0 %v2305
    %2355 = vmatprep.subr.mxu0 0.0
    %2356 = vmatpush1.msra.mxu0 %v2306
    %2357 = vmatprep.subr.mxu0 0.0
    %2358 = vmatpush1.msra.mxu0 %v2307
    %2359 = vmatprep.subr.mxu0 0.0
    %2360 = vmatpush1.msra.mxu0 %v2308
    %2361 = vmatprep.subr.mxu0 0.0
    %2362 = vmatpush1.msra.mxu0 %v2309
    %2363 = vmatprep.subr.mxu0 0.0
    %2364 = vmatpush1.msra.mxu0 %v2310
    %2365 = vmatprep.subr.mxu0 0.0
    %2366 = vmatpush1.msra.mxu0 %v2311
    %2367 = vmatprep.subr.mxu0 0.0
    %2368 = vmatpush1.msra.mxu0 %v2312
    %2369 = vmatprep.subr.mxu0 0.0
    %2370 = vmatpush1.msra.mxu0 %v2313
    %2371 = vmatprep.subr.mxu0 0.0
    %2372 = vmatpush1.msra.mxu0 %v2314
    %2373 = vmatprep.subr.mxu0 0.0
    %2374 = vmatpush1.msra.mxu0 %v2315
    %2375 = vmatprep.subr.mxu0 0.0
    %2376 = vmatpush1.msra.mxu0 %v2316
    %2377 = vmatprep.subr.mxu0 0.0
    %2378 = vmatpush1.msra.mxu0 %v2317
    %2379 = vmatprep.subr.mxu0 0.0
    %2380 = vmatpush1.msra.mxu0 %v2318
    %2381 = vmatprep.subr.mxu0 0.0
    %2382 = vmatpush1.msra.mxu0 %v2319
    %2383 = vmatprep.subr.mxu0 0.0
    %2384 = vmatpush1.msra.mxu0 %v2320
    %2385 = vmatprep.mubr.f32.mxu0 %v2258
    %2386 = vmatmul.mubr.f32.gmra.mrb[0].mxu0 %v2257
    %v2387 = vpop.f32.mrb[0].mxu0
    %v2388 = vadd.f32 0.0, %v2387
    %v2389 = vpop.f32.mrb[0].mxu0
    %2390 = vmatprep.mubr.f32.mxu0 %v2260
    %2391 = vmatmul.mubr.f32.gmra.mrb[0].mxu0 %v2259
    %v2392 = vpop.f32.mrb[0].mxu0
    %v2393 = vadd.f32 0.0, %v2392
    %v2394 = vpop.f32.mrb[0].mxu0
    %2395 = vmatprep.mubr.f32.mxu0 %v2262
    %2396 = vmatmul.mubr.f32.gmra.mrb[0].mxu0 %v2261
    %v2397 = vpop.f32.mrb[0].mxu0
    %v2398 = vadd.f32 0.0, %v2397
    %v2399 = vpop.f32.mrb[0].mxu0
    %2400 = vmatprep.mubr.f32.mxu0 %v2264
    %2401 = vmatmul.mubr.f32.gmra.mrb[0].mxu0 %v2263
    %v2402 = vpop.f32.mrb[0].mxu0
    %v2403 = vadd.f32 0.0, %v2402
    %v2404 = vpop.f32.mrb[0].mxu0
    %2405 = vmatprep.mubr.f32.mxu0 %v2266
    %2406 = vmatmul.mubr.f32.gmra.mrb[0].mxu0 %v2265
    %v2407 = vpop.f32.mrb[0].mxu0
    %v2408 = vadd.f32 0.0, %v2407
    %v2409 = vpop.f32.mrb[0].mxu0
    %2410 = vmatprep.mubr.f32.mxu0 %v2268
    %2411 = vmatmul.mubr.f32.gmra.mrb[0].mxu0 %v2267
    %v2412 = vpop.f32.mrb[0].mxu0
    %v2413 = vadd.f32 0.0, %v2412
    %v2414 = vpop.f32.mrb[0].mxu0
    %2415 = vmatprep.mubr.f32.mxu0 %v2270
    %2416 = vmatmul.mubr.f32.gmra.mrb[0].mxu0 %v2269
    %v2417 = vpop.f32.mrb[0].mxu0
    %v2418 = vadd.f32 0.0, %v2417
    %v2419 = vpop.f32.mrb[0].mxu0
    %2420 = vmatprep.mubr.f32.mxu0 %v2272
    %2421 = vmatmul.mubr.f32.gmra.mrb[0].mxu0 %v2271
    %v2422 = vpop.f32.mrb[0].mxu0
    %v2423 = vadd.f32 0.0, %v2422
    %v2424 = vpop.f32.mrb[0].mxu0
    %2425 = vmatprep.mubr.f32.mxu0 %v2274
    %2426 = vmatmul.mubr.f32.gmra.mrb[0].mxu0 %v2273
    %v2427 = vpop.f32.mrb[0].mxu0
    %v2428 = vadd.f32 0.0, %v2427
    %v2429 = vpop.f32.mrb[0].mxu0
    %2430 = vmatprep.mubr.f32.mxu0 %v2276
    %2431 = vmatmul.mubr.f32.gmra.mrb[0].mxu0 %v2275
    %v2432 = vpop.f32.mrb[0].mxu0
    %v2433 = vadd.f32 0.0, %v2432
    %v2434 = vpop.f32.mrb[0].mxu0
    %2435 = vmatprep.mubr.f32.mxu0 %v2278
    %2436 = vmatmul.mubr.f32.gmra.mrb[0].mxu0 %v2277
    %v2437 = vpop.f32.mrb[0].mxu0
    %v2438 = vadd.f32 0.0, %v2437
    %v2439 = vpop.f32.mrb[0].mxu0
    %2440 = vmatprep.mubr.f32.mxu0 %v2280
    %2441 = vmatmul.mubr.f32.gmra.mrb[0].mxu0 %v2279
    %v2442 = vpop.f32.mrb[0].mxu0
    %v2443 = vadd.f32 0.0, %v2442
    %v2444 = vpop.f32.mrb[0].mxu0
    %2445 = vmatprep.mubr.f32.mxu0 %v2282
    %2446 = vmatmul.mubr.f32.gmra.mrb[0].mxu0 %v2281
    %v2447 = vpop.f32.mrb[0].mxu0
    %v2448 = vadd.f32 0.0, %v2447
    %v2449 = vpop.f32.mrb[0].mxu0
    %2450 = vmatprep.mubr.f32.mxu0 %v2284
    %2451 = vmatmul.mubr.f32.gmra.mrb[0].mxu0 %v2283
    %v2452 = vpop.f32.mrb[0].mxu0
    %v2453 = vadd.f32 0.0, %v2452
    %v2454 = vpop.f32.mrb[0].mxu0
    %2455 = vmatprep.mubr.f32.mxu0 %v2286
    %2456 = vmatmul.mubr.f32.gmra.mrb[0].mxu0 %v2285
    %v2457 = vpop.f32.mrb[0].mxu0
    %v2458 = vadd.f32 0.0, %v2457
    %v2459 = vpop.f32.mrb[0].mxu0
    %2460 = vmatprep.mubr.f32.mxu0 %v2288
    %2461 = vmatmul.mubr.f32.gmra.mrb[0].mxu0 %v2287
    %v2462 = vpop.f32.mrb[0].mxu0
    %v2463 = vadd.f32 0.0, %v2462
    %v2464 = vpop.f32.mrb[0].mxu0
    %2465 = vdwg.mxu0
    %2466 = vst [vmem:[#allocation7 + $0x300] sm:$0xff] %v2388
    %2467 = vst [vmem:[#allocation7 + $0x308] sm:$0xff] %v2393
    %2468 = vst [vmem:[#allocation7 + $0x310] sm:$0xff] %v2398
    %2469 = vst [vmem:[#allocation7 + $0x318] sm:$0xff] %v2403
    %2470 = vst [vmem:[#allocation7 + $0x320] sm:$0xff] %v2408
    %2471 = vst [vmem:[#allocation7 + $0x328] sm:$0xff] %v2413
    %2472 = vst [vmem:[#allocation7 + $0x330] sm:$0xff] %v2418
    %2473 = vst [vmem:[#allocation7 + $0x338] sm:$0xff] %v2423
    %2474 = vst [vmem:[#allocation7 + $0x340] sm:$0xff] %v2428
    %2475 = vst [vmem:[#allocation7 + $0x348] sm:$0xff] %v2433
    %2476 = vst [vmem:[#allocation7 + $0x350] sm:$0xff] %v2438
    %2477 = vst [vmem:[#allocation7 + $0x358] sm:$0xff] %v2443
    %2478 = vst [vmem:[#allocation7 + $0x360] sm:$0xff] %v2448
    %2479 = vst [vmem:[#allocation7 + $0x368] sm:$0xff] %v2453
    %2480 = vst [vmem:[#allocation7 + $0x370] sm:$0xff] %v2458
    %2481 = vst [vmem:[#allocation7 + $0x378] sm:$0xff] %v2463
    %2482 = vset.pattern.permute.xlu0 7
    %2483 = vperm.xlu0 %2482, %v106
    %v2484 = vpop.permute.xlu0 %2483
    %2485 = vset.pattern.permute.xlu0 7
    %2486 = vperm.xlu0 %2485, %v107
    %v2487 = vpop.permute.xlu0 %2486
    %2488 = vset.pattern.permute.xlu0 7
    %2489 = vperm.xlu0 %2488, %v108
    %v2490 = vpop.permute.xlu0 %2489
    %2491 = vset.pattern.permute.xlu0 7
    %2492 = vperm.xlu0 %2491, %v109
    %v2493 = vpop.permute.xlu0 %2492
    %2494 = vset.pattern.permute.xlu0 7
    %2495 = vperm.xlu0 %2494, %v110
    %v2496 = vpop.permute.xlu0 %2495
    %2497 = vset.pattern.permute.xlu0 7
    %2498 = vperm.xlu0 %2497, %v111
    %v2499 = vpop.permute.xlu0 %2498
    %2500 = vset.pattern.permute.xlu0 7
    %2501 = vperm.xlu0 %2500, %v112
    %v2502 = vpop.permute.xlu0 %2501
    %2503 = vset.pattern.permute.xlu0 7
    %2504 = vperm.xlu0 %2503, %v113
    %v2505 = vpop.permute.xlu0 %2504
    %2506 = vset.pattern.permute.xlu0 7
    %2507 = vperm.xlu0 %2506, %v114
    %v2508 = vpop.permute.xlu0 %2507
    %2509 = vset.pattern.permute.xlu0 7
    %2510 = vperm.xlu0 %2509, %v115
    %v2511 = vpop.permute.xlu0 %2510
    %2512 = vset.pattern.permute.xlu0 7
    %2513 = vperm.xlu0 %2512, %v116
    %v2514 = vpop.permute.xlu0 %2513
    %2515 = vset.pattern.permute.xlu0 7
    %2516 = vperm.xlu0 %2515, %v117
    %v2517 = vpop.permute.xlu0 %2516
    %2518 = vset.pattern.permute.xlu0 7
    %2519 = vperm.xlu0 %2518, %v118
    %v2520 = vpop.permute.xlu0 %2519
    %2521 = vset.pattern.permute.xlu0 7
    %2522 = vperm.xlu0 %2521, %v119
    %v2523 = vpop.permute.xlu0 %2522
    %2524 = vset.pattern.permute.xlu0 7
    %2525 = vperm.xlu0 %2524, %v120
    %v2526 = vpop.permute.xlu0 %2525
    %2527 = vset.pattern.permute.xlu0 7
    %2528 = vperm.xlu0 %2527, %v121
    %v2529 = vpop.permute.xlu0 %2528
    %vm2530 = vcmp.eq.s32.totalorder %v2484, %v43
    %vm2531 = vcmp.eq.s32.totalorder %v2484, %v122
    %vm2532 = vcmp.eq.s32.totalorder %v2487, %v43
    %vm2533 = vcmp.eq.s32.totalorder %v2487, %v122
    %vm2534 = vcmp.eq.s32.totalorder %v2490, %v43
    %vm2535 = vcmp.eq.s32.totalorder %v2490, %v122
    %vm2536 = vcmp.eq.s32.totalorder %v2493, %v43
    %vm2537 = vcmp.eq.s32.totalorder %v2493, %v122
    %vm2538 = vcmp.eq.s32.totalorder %v2496, %v43
    %vm2539 = vcmp.eq.s32.totalorder %v2496, %v122
    %vm2540 = vcmp.eq.s32.totalorder %v2499, %v43
    %vm2541 = vcmp.eq.s32.totalorder %v2499, %v122
    %vm2542 = vcmp.eq.s32.totalorder %v2502, %v43
    %vm2543 = vcmp.eq.s32.totalorder %v2502, %v122
    %vm2544 = vcmp.eq.s32.totalorder %v2505, %v43
    %vm2545 = vcmp.eq.s32.totalorder %v2505, %v122
    %vm2546 = vcmp.eq.s32.totalorder %v2508, %v43
    %vm2547 = vcmp.eq.s32.totalorder %v2508, %v122
    %vm2548 = vcmp.eq.s32.totalorder %v2511, %v43
    %vm2549 = vcmp.eq.s32.totalorder %v2511, %v122
    %vm2550 = vcmp.eq.s32.totalorder %v2514, %v43
    %vm2551 = vcmp.eq.s32.totalorder %v2514, %v122
    %vm2552 = vcmp.eq.s32.totalorder %v2517, %v43
    %vm2553 = vcmp.eq.s32.totalorder %v2517, %v122
    %vm2554 = vcmp.eq.s32.totalorder %v2520, %v43
    %vm2555 = vcmp.eq.s32.totalorder %v2520, %v122
    %vm2556 = vcmp.eq.s32.totalorder %v2523, %v43
    %vm2557 = vcmp.eq.s32.totalorder %v2523, %v122
    %vm2558 = vcmp.eq.s32.totalorder %v2526, %v43
    %vm2559 = vcmp.eq.s32.totalorder %v2526, %v122
    %vm2560 = vcmp.eq.s32.totalorder %v2529, %v43
    %vm2561 = vcmp.eq.s32.totalorder %v2529, %v122
    %v2562 = vsel %vm2530, 1, 0
    %v2563 = vsel %vm2531, 1, 0
    %v2564 = vsel %vm2532, 1, 0
    %v2565 = vsel %vm2533, 1, 0
    %v2566 = vsel %vm2534, 1, 0
    %v2567 = vsel %vm2535, 1, 0
    %v2568 = vsel %vm2536, 1, 0
    %v2569 = vsel %vm2537, 1, 0
    %v2570 = vsel %vm2538, 1, 0
    %v2571 = vsel %vm2539, 1, 0
    %v2572 = vsel %vm2540, 1, 0
    %v2573 = vsel %vm2541, 1, 0
    %v2574 = vsel %vm2542, 1, 0
    %v2575 = vsel %vm2543, 1, 0
    %v2576 = vsel %vm2544, 1, 0
    %v2577 = vsel %vm2545, 1, 0
    %v2578 = vsel %vm2546, 1, 0
    %v2579 = vsel %vm2547, 1, 0
    %v2580 = vsel %vm2548, 1, 0
    %v2581 = vsel %vm2549, 1, 0
    %v2582 = vsel %vm2550, 1, 0
    %v2583 = vsel %vm2551, 1, 0
    %v2584 = vsel %vm2552, 1, 0
    %v2585 = vsel %vm2553, 1, 0
    %v2586 = vsel %vm2554, 1, 0
    %v2587 = vsel %vm2555, 1, 0
    %v2588 = vsel %vm2556, 1, 0
    %v2589 = vsel %vm2557, 1, 0
    %v2590 = vsel %vm2558, 1, 0
    %v2591 = vsel %vm2559, 1, 0
    %v2592 = vsel %vm2560, 1, 0
    %v2593 = vsel %vm2561, 1, 0
    %v2594 = vcvt.s32.f32 %v2562
    %v2595 = vcvt.s32.f32 %v2563
    %v2596 = vcvt.s32.f32 %v2564
    %v2597 = vcvt.s32.f32 %v2565
    %v2598 = vcvt.s32.f32 %v2566
    %v2599 = vcvt.s32.f32 %v2567
    %v2600 = vcvt.s32.f32 %v2568
    %v2601 = vcvt.s32.f32 %v2569
    %v2602 = vcvt.s32.f32 %v2570
    %v2603 = vcvt.s32.f32 %v2571
    %v2604 = vcvt.s32.f32 %v2572
    %v2605 = vcvt.s32.f32 %v2573
    %v2606 = vcvt.s32.f32 %v2574
    %v2607 = vcvt.s32.f32 %v2575
    %v2608 = vcvt.s32.f32 %v2576
    %v2609 = vcvt.s32.f32 %v2577
    %v2610 = vcvt.s32.f32 %v2578
    %v2611 = vcvt.s32.f32 %v2579
    %v2612 = vcvt.s32.f32 %v2580
    %v2613 = vcvt.s32.f32 %v2581
    %v2614 = vcvt.s32.f32 %v2582
    %v2615 = vcvt.s32.f32 %v2583
    %v2616 = vcvt.s32.f32 %v2584
    %v2617 = vcvt.s32.f32 %v2585
    %v2618 = vcvt.s32.f32 %v2586
    %v2619 = vcvt.s32.f32 %v2587
    %v2620 = vcvt.s32.f32 %v2588
    %v2621 = vcvt.s32.f32 %v2589
    %v2622 = vcvt.s32.f32 %v2590
    %v2623 = vcvt.s32.f32 %v2591
    %v2624 = vcvt.s32.f32 %v2592
    %v2625 = vcvt.s32.f32 %v2593
    %v2626 = vld [vmem:[#allocation5] sm:$0xff]
    %v2627 = vld [vmem:[#allocation5 + $0x8] sm:$0xff]
    %v2628 = vld [vmem:[#allocation5 + $0x10] sm:$0xff]
    %v2629 = vld [vmem:[#allocation5 + $0x18] sm:$0xff]
    %v2630 = vld [vmem:[#allocation5 + $0x20] sm:$0xff]
    %v2631 = vld [vmem:[#allocation5 + $0x28] sm:$0xff]
    %v2632 = vld [vmem:[#allocation5 + $0x30] sm:$0xff]
    %v2633 = vld [vmem:[#allocation5 + $0x38] sm:$0xff]
    %v2634 = vld [vmem:[#allocation5 + $0x40] sm:$0xff]
    %v2635 = vld [vmem:[#allocation5 + $0x48] sm:$0xff]
    %v2636 = vld [vmem:[#allocation5 + $0x50] sm:$0xff]
    %v2637 = vld [vmem:[#allocation5 + $0x58] sm:$0xff]
    %v2638 = vld [vmem:[#allocation5 + $0x60] sm:$0xff]
    %v2639 = vld [vmem:[#allocation5 + $0x68] sm:$0xff]
    %v2640 = vld [vmem:[#allocation5 + $0x70] sm:$0xff]
    %v2641 = vld [vmem:[#allocation5 + $0x78] sm:$0xff]
    %v2642 = vld [vmem:[#allocation5 + $0x80] sm:$0xff]
    %v2643 = vld [vmem:[#allocation5 + $0x88] sm:$0xff]
    %v2644 = vld [vmem:[#allocation5 + $0x90] sm:$0xff]
    %v2645 = vld [vmem:[#allocation5 + $0x98] sm:$0xff]
    %v2646 = vld [vmem:[#allocation5 + $0xa0] sm:$0xff]
    %v2647 = vld [vmem:[#allocation5 + $0xa8] sm:$0xff]
    %v2648 = vld [vmem:[#allocation5 + $0xb0] sm:$0xff]
    %v2649 = vld [vmem:[#allocation5 + $0xb8] sm:$0xff]
    %v2650 = vld [vmem:[#allocation5 + $0xc0] sm:$0xff]
    %v2651 = vld [vmem:[#allocation5 + $0xc8] sm:$0xff]
    %v2652 = vld [vmem:[#allocation5 + $0xd0] sm:$0xff]
    %v2653 = vld [vmem:[#allocation5 + $0xd8] sm:$0xff]
    %v2654 = vld [vmem:[#allocation5 + $0xe0] sm:$0xff]
    %v2655 = vld [vmem:[#allocation5 + $0xe8] sm:$0xff]
    %v2656 = vld [vmem:[#allocation5 + $0xf0] sm:$0xff]
    %v2657 = vld [vmem:[#allocation5 + $0xf8] sm:$0xff]
    %2658 = vmatprep.subr.mxu0 0.0
    %2659 = vmatpush1.msra.mxu0 %v2626
    %2660 = vmatprep.subr.mxu0 0.0
    %2661 = vmatpush1.msra.mxu0 %v2627
    %2662 = vmatprep.subr.mxu0 0.0
    %2663 = vmatpush1.msra.mxu0 %v2628
    %2664 = vmatprep.subr.mxu0 0.0
    %2665 = vmatpush1.msra.mxu0 %v2629
    %2666 = vmatprep.subr.mxu0 0.0
    %2667 = vmatpush1.msra.mxu0 %v2630
    %2668 = vmatprep.subr.mxu0 0.0
    %2669 = vmatpush1.msra.mxu0 %v2631
    %2670 = vmatprep.subr.mxu0 0.0
    %2671 = vmatpush1.msra.mxu0 %v2632
    %2672 = vmatprep.subr.mxu0 0.0
    %2673 = vmatpush1.msra.mxu0 %v2633
    %2674 = vmatprep.subr.mxu0 0.0
    %2675 = vmatpush1.msra.mxu0 %v2634
    %2676 = vmatprep.subr.mxu0 0.0
    %2677 = vmatpush1.msra.mxu0 %v2635
    %2678 = vmatprep.subr.mxu0 0.0
    %2679 = vmatpush1.msra.mxu0 %v2636
    %2680 = vmatprep.subr.mxu0 0.0
    %2681 = vmatpush1.msra.mxu0 %v2637
    %2682 = vmatprep.subr.mxu0 0.0
    %2683 = vmatpush1.msra.mxu0 %v2638
    %2684 = vmatprep.subr.mxu0 0.0
    %2685 = vmatpush1.msra.mxu0 %v2639
    %2686 = vmatprep.subr.mxu0 0.0
    %2687 = vmatpush1.msra.mxu0 %v2640
    %2688 = vmatprep.subr.mxu0 0.0
    %2689 = vmatpush1.msra.mxu0 %v2641
    %2690 = vmatprep.subr.mxu0 0.0
    %2691 = vmatpush1.msra.mxu0 %v2642
    %2692 = vmatprep.subr.mxu0 0.0
    %2693 = vmatpush1.msra.mxu0 %v2643
    %2694 = vmatprep.subr.mxu0 0.0
    %2695 = vmatpush1.msra.mxu0 %v2644
    %2696 = vmatprep.subr.mxu0 0.0
    %2697 = vmatpush1.msra.mxu0 %v2645
    %2698 = vmatprep.subr.mxu0 0.0
    %2699 = vmatpush1.msra.mxu0 %v2646
    %2700 = vmatprep.subr.mxu0 0.0
    %2701 = vmatpush1.msra.mxu0 %v2647
    %2702 = vmatprep.subr.mxu0 0.0
    %2703 = vmatpush1.msra.mxu0 %v2648
    %2704 = vmatprep.subr.mxu0 0.0
    %2705 = vmatpush1.msra.mxu0 %v2649
    %2706 = vmatprep.subr.mxu0 0.0
    %2707 = vmatpush1.msra.mxu0 %v2650
    %2708 = vmatprep.subr.mxu0 0.0
    %2709 = vmatpush1.msra.mxu0 %v2651
    %2710 = vmatprep.subr.mxu0 0.0
    %2711 = vmatpush1.msra.mxu0 %v2652
    %2712 = vmatprep.subr.mxu0 0.0
    %2713 = vmatpush1.msra.mxu0 %v2653
    %2714 = vmatprep.subr.mxu0 0.0
    %2715 = vmatpush1.msra.mxu0 %v2654
    %2716 = vmatprep.subr.mxu0 0.0
    %2717 = vmatpush1.msra.mxu0 %v2655
    %2718 = vmatprep.subr.mxu0 0.0
    %2719 = vmatpush1.msra.mxu0 %v2656
    %2720 = vmatprep.subr.mxu0 0.0
    %2721 = vmatpush1.msra.mxu0 %v2657
    %2722 = vmatprep.mubr.f32.mxu0 %v2595
    %2723 = vmatmul.mubr.f32.gmra.mrb[0].mxu0 %v2594
    %v2724 = vpop.f32.mrb[0].mxu0
    %v2725 = vadd.f32 0.0, %v2724
    %v2726 = vpop.f32.mrb[0].mxu0
    %2727 = vmatprep.mubr.f32.mxu0 %v2597
    %2728 = vmatmul.mubr.f32.gmra.mrb[0].mxu0 %v2596
    %v2729 = vpop.f32.mrb[0].mxu0
    %v2730 = vadd.f32 0.0, %v2729
    %v2731 = vpop.f32.mrb[0].mxu0
    %2732 = vmatprep.mubr.f32.mxu0 %v2599
    %2733 = vmatmul.mubr.f32.gmra.mrb[0].mxu0 %v2598
    %v2734 = vpop.f32.mrb[0].mxu0
    %v2735 = vadd.f32 0.0, %v2734
    %v2736 = vpop.f32.mrb[0].mxu0
    %2737 = vmatprep.mubr.f32.mxu0 %v2601
    %2738 = vmatmul.mubr.f32.gmra.mrb[0].mxu0 %v2600
    %v2739 = vpop.f32.mrb[0].mxu0
    %v2740 = vadd.f32 0.0, %v2739
    %v2741 = vpop.f32.mrb[0].mxu0
    %2742 = vmatprep.mubr.f32.mxu0 %v2603
    %2743 = vmatmul.mubr.f32.gmra.mrb[0].mxu0 %v2602
    %v2744 = vpop.f32.mrb[0].mxu0
    %v2745 = vadd.f32 0.0, %v2744
    %v2746 = vpop.f32.mrb[0].mxu0
    %2747 = vmatprep.mubr.f32.mxu0 %v2605
    %2748 = vmatmul.mubr.f32.gmra.mrb[0].mxu0 %v2604
    %v2749 = vpop.f32.mrb[0].mxu0
    %v2750 = vadd.f32 0.0, %v2749
    %v2751 = vpop.f32.mrb[0].mxu0
    %2752 = vmatprep.mubr.f32.mxu0 %v2607
    %2753 = vmatmul.mubr.f32.gmra.mrb[0].mxu0 %v2606
    %v2754 = vpop.f32.mrb[0].mxu0
    %v2755 = vadd.f32 0.0, %v2754
    %v2756 = vpop.f32.mrb[0].mxu0
    %2757 = vmatprep.mubr.f32.mxu0 %v2609
    %2758 = vmatmul.mubr.f32.gmra.mrb[0].mxu0 %v2608
    %v2759 = vpop.f32.mrb[0].mxu0
    %v2760 = vadd.f32 0.0, %v2759
    %v2761 = vpop.f32.mrb[0].mxu0
    %2762 = vmatprep.mubr.f32.mxu0 %v2611
    %2763 = vmatmul.mubr.f32.gmra.mrb[0].mxu0 %v2610
    %v2764 = vpop.f32.mrb[0].mxu0
    %v2765 = vadd.f32 0.0, %v2764
    %v2766 = vpop.f32.mrb[0].mxu0
    %2767 = vmatprep.mubr.f32.mxu0 %v2613
    %2768 = vmatmul.mubr.f32.gmra.mrb[0].mxu0 %v2612
    %v2769 = vpop.f32.mrb[0].mxu0
    %v2770 = vadd.f32 0.0, %v2769
    %v2771 = vpop.f32.mrb[0].mxu0
    %2772 = vmatprep.mubr.f32.mxu0 %v2615
    %2773 = vmatmul.mubr.f32.gmra.mrb[0].mxu0 %v2614
    %v2774 = vpop.f32.mrb[0].mxu0
    %v2775 = vadd.f32 0.0, %v2774
    %v2776 = vpop.f32.mrb[0].mxu0
    %2777 = vmatprep.mubr.f32.mxu0 %v2617
    %2778 = vmatmul.mubr.f32.gmra.mrb[0].mxu0 %v2616
    %v2779 = vpop.f32.mrb[0].mxu0
    %v2780 = vadd.f32 0.0, %v2779
    %v2781 = vpop.f32.mrb[0].mxu0
    %2782 = vmatprep.mubr.f32.mxu0 %v2619
    %2783 = vmatmul.mubr.f32.gmra.mrb[0].mxu0 %v2618
    %v2784 = vpop.f32.mrb[0].mxu0
    %v2785 = vadd.f32 0.0, %v2784
    %v2786 = vpop.f32.mrb[0].mxu0
    %2787 = vmatprep.mubr.f32.mxu0 %v2621
    %2788 = vmatmul.mubr.f32.gmra.mrb[0].mxu0 %v2620
    %v2789 = vpop.f32.mrb[0].mxu0
    %v2790 = vadd.f32 0.0, %v2789
    %v2791 = vpop.f32.mrb[0].mxu0
    %2792 = vmatprep.mubr.f32.mxu0 %v2623
    %2793 = vmatmul.mubr.f32.gmra.mrb[0].mxu0 %v2622
    %v2794 = vpop.f32.mrb[0].mxu0
    %v2795 = vadd.f32 0.0, %v2794
    %v2796 = vpop.f32.mrb[0].mxu0
    %2797 = vmatprep.mubr.f32.mxu0 %v2625
    %2798 = vmatmul.mubr.f32.gmra.mrb[0].mxu0 %v2624
    %v2799 = vpop.f32.mrb[0].mxu0
    %v2800 = vadd.f32 0.0, %v2799
    %v2801 = vpop.f32.mrb[0].mxu0
    %2802 = vdwg.mxu0
    %2803 = vst [vmem:[#allocation7 + $0x380] sm:$0xff] %v2725
    %2804 = vst [vmem:[#allocation7 + $0x388] sm:$0xff] %v2730
    %2805 = vst [vmem:[#allocation7 + $0x390] sm:$0xff] %v2735
    %2806 = vst [vmem:[#allocation7 + $0x398] sm:$0xff] %v2740
    %2807 = vst [vmem:[#allocation7 + $0x3a0] sm:$0xff] %v2745
    %2808 = vst [vmem:[#allocation7 + $0x3a8] sm:$0xff] %v2750
    %2809 = vst [vmem:[#allocation7 + $0x3b0] sm:$0xff] %v2755
    %2810 = vst [vmem:[#allocation7 + $0x3b8] sm:$0xff] %v2760
    %2811 = vst [vmem:[#allocation7 + $0x3c0] sm:$0xff] %v2765
    %2812 = vst [vmem:[#allocation7 + $0x3c8] sm:$0xff] %v2770
    %2813 = vst [vmem:[#allocation7 + $0x3d0] sm:$0xff] %v2775
    %2814 = vst [vmem:[#allocation7 + $0x3d8] sm:$0xff] %v2780
    %2815 = vst [vmem:[#allocation7 + $0x3e0] sm:$0xff] %v2785
    %2816 = vst [vmem:[#allocation7 + $0x3e8] sm:$0xff] %v2790
    %2817 = vst [vmem:[#allocation7 + $0x3f0] sm:$0xff] %v2795
    %2818 = vst [vmem:[#allocation7 + $0x3f8] sm:$0xff] %v2800
    // Predicated region
    $region18: #{tpu_custom_call.1} parent=1 // pred_check
      _
    $region19: #{tpu_custom_call.1} parent=1 // pred_check_branch
      %2820 = sbr.rel (0) target = $region21
    $region20: #{tpu_custom_call.1} parent=1 // pred_region
      %s2822 = ssub.s32 16384, 16384
      %2823 = vsyncadd [#allocation4], %s2822
      %s2824 = sshll.u32 [#allocation7], 4
      %s2825 = int_to_ptr.vmem [resolvable:$true] %s2824
      %2830 = dma.vmem_to_hbm [thread:$0]  %s2825, 16384, %s2, [#allocation4], 128, 128, 8
    $region21: #{tpu_custom_call.1} parent=1 // pred_fallthru
      _
    // Predicated region
    $region22: #{tpu_custom_call.1} parent=1 // pred_check
      _
    $region23: #{tpu_custom_call.1} parent=1 // pred_check_branch
      %2832 = sbr.rel (0) target = $region25
    $region24: #{tpu_custom_call.1} parent=1 // pred_region
      %2833 = dma.done [#allocation4], 16384
    $region25: #{tpu_custom_call.1} parent=1 // pred_fallthru
      _
    %2834 = vsyncpa [#allocation3], 1
    %2835 = vsyncpa [#allocation6], 1
    %2836 = vsyncpa [#allocation4], 1

</llo_original>
